<compile_context>
chip_gen: v7x
topology: tpu7x:2x2x1
jax: 0.10.0
libtpu: 0.0.40
codegen_flags: <defaults>
</compile_context>

<pallas_src>
import functools

import jax
import jax.numpy as jnp
from jax.experimental import pallas as pl
from jax.experimental.pallas import tpu as pltpu


# ----------------------------- kernel helpers ------------------------------
def _layernorm(x, scale, shift, eps=1e-5):
    mean = jnp.mean(x, axis=-1, keepdims=True)
    var = jnp.mean((x - mean) ** 2, axis=-1, keepdims=True)   # unbiased=False
    return scale * ((x - mean) / jnp.sqrt(var + eps)) + shift


def _gelu_tanh(x):
    c = jnp.sqrt(2.0 / jnp.pi).astype(x.dtype)
    return 0.5 * x * (1.0 + jnp.tanh(c * (x + 0.044715 * x * x * x)))


# ------------------------------- the kernel --------------------------------
def transformer_block_kernel(x_ref, ln1_s, ln1_b, wq, wk, wv, wproj, bproj,
                             ln2_s, ln2_b, w1, b1, w2, b2, o_ref, ctx_ref,
                             *, num_heads, ff_chunk):
    f32 = jnp.float32
    bf16 = jnp.bfloat16

    x = x_ref[0].astype(f32)                           # (S, E)
    S, E = x.shape
    Dh = E // num_heads

    # ---------------- attention branch (pre-LN) ----------------
    h = _layernorm(x, ln1_s[0], ln1_b[0])              # f32 VPU math
    hb = h.astype(bf16)

    # Three large bf16 MXU matmuls (split qkv), f32 accumulation.  The
    # 1/sqrt(Dh) softmax scale is folded into wq in the wrapper; q/k/v are
    # dropped to bf16 once (halves their live VMEM/vreg footprint).
    q = jnp.dot(hb, wq[...], preferred_element_type=f32).astype(bf16)   # (S, E)
    k = jnp.dot(hb, wk[...], preferred_element_type=f32).astype(bf16)   # (S, E)
    v = jnp.dot(hb, wv[...], preferred_element_type=f32).astype(bf16)   # (S, E)

    # Causal mask in one expression: only the bool (S, S) stays live.
    causal = (jax.lax.broadcasted_iota(jnp.int32, (S, S), 0)
              >= jax.lax.broadcasted_iota(jnp.int32, (S, S), 1))

    # Per-head attention.  Each head's bf16 context is written at a static
    # lane offset into the (S, E) VMEM scratch, so the output projection is a
    # single full-depth (S,E)@(E,E) MXU matmul afterwards.  All per-head
    # temporaries ((S,S) scores / probs, (S,Dh) ctx) die at the scratch store,
    # so the static loop does not grow live vreg ranges across heads.
    for hd in range(num_heads):                        # static loop over heads
        sl = slice(hd * Dh, (hd + 1) * Dh)
        qh = q[:, sl]
        kh = k[:, sl]
        vh = v[:, sl]
        # Scores without materializing kh.T: contract dim 1 of both operands.
        s = jax.lax.dot_general(qh, kh, (((1,), (1,)), ((), ())),
                                preferred_element_type=f32)       # (S, S)
        s = jnp.where(causal, s, -1e30)
        p = jnp.exp(s - jnp.max(s, axis=-1, keepdims=True))
        denom = jnp.sum(p, axis=-1, keepdims=True)
        ctx = jnp.dot(p.astype(bf16), vh, preferred_element_type=f32)
        ctx = ctx * pl.reciprocal(denom, approx=True)  # EUP, off the VALU path
        ctx_ref[:, sl] = ctx.astype(bf16)

    # Single full-depth output projection + bias.
    attn = jnp.dot(ctx_ref[...], wproj[...], preferred_element_type=f32) \
        + bproj[0]

    # drop_shortcut: identity in eval mode
    x1 = x + attn

    # ---------------- feed-forward branch (pre-LN) ----------------
    # Tiled over the hidden (4E) dim when large: never materializes the full
    # (S, 4E) intermediate unless it comfortably fits.
    h2 = _layernorm(x1, ln2_s[0], ln2_b[0]).astype(bf16)
    b1v = b1[...]                                      # (1, 4E) f32
    H4 = b1v.shape[-1]
    acc = x1 + b2[0]                                   # residual + ff bias2
    for c in range(H4 // ff_chunk):                    # static loop
        csl = slice(c * ff_chunk, (c + 1) * ff_chunk)
        ff = jnp.dot(h2, w1[:, csl], preferred_element_type=f32) + b1v[:, csl]
        ff = _gelu_tanh(ff)                            # f32 VPU math
        acc = acc + jnp.dot(ff.astype(bf16), w2[csl, :],
                            preferred_element_type=f32)

    # drop_shortcut: identity in eval mode
    o_ref[0] = acc.astype(o_ref.dtype)


# ------------------------------- wrapper ------------------------------------
def _vmem_limit_bytes():
    """Per-generation VMEM limit: physical minus ~16 MiB headroom, <= ~100 MiB
    (so ~48 MiB on v7x, ~100 MiB on v5e/v6e)."""
    cap = None
    try:
        cap = int(getattr(pltpu.get_tpu_info(), "vmem_capacity_bytes", 0)) or None
    except Exception:
        cap = None
    if cap is None:
        kind = ""
        try:
            kind = jax.devices()[0].device_kind.lower()
        except Exception:
            pass
        cap = 64 * 1024 * 1024 if ("v7" in kind or "7x" in kind) \
            else 128 * 1024 * 1024
    return max(32 * 1024 * 1024,
               min(cap - 16 * 1024 * 1024, 100 * 1024 * 1024))


def transformer_block(x, params, num_heads):
    (ln1_s, ln1_b, wqkv, wproj, bproj, ln2_s, ln2_b, w1, b1, w2, b2) = params
    B, S, E = x.shape
    assert E % num_heads == 0
    Dh = E // num_heads
    H4 = w1.shape[-1]

    bf16 = jnp.bfloat16
    # Split fused qkv weight (no (S,3E) lane slicing in-kernel); fold the
    # 1/sqrt(Dh) softmax scale into wq; cast all MXU operands to bf16.
    wq_b = (wqkv[:, 0 * E:1 * E] * (Dh ** -0.5)).astype(bf16)
    wk_b = wqkv[:, 1 * E:2 * E].astype(bf16)
    wv_b = wqkv[:, 2 * E:3 * E].astype(bf16)
    wproj_b = wproj.astype(bf16)
    w1_b = w1.astype(bf16)
    w2_b = w2.astype(bf16)

    vmem_limit = _vmem_limit_bytes()

    # FFN hidden-dim tile: skip chunking if the (S, 4E) f32 intermediate is
    # small; otherwise 2048-wide on big-VMEM parts (v5e/v6e), 1024 on v7x.
    if S * H4 * 4 <= 8 * 1024 * 1024:
        ff_chunk = H4
    else:
        ff_chunk = 2048 if vmem_limit >= 96 * 1024 * 1024 else 1024
        while H4 % ff_chunk:
            ff_chunk //= 2
    assert H4 % ff_chunk == 0

    # Advisory cost hint for the XLA scheduler (weights counted once: they are
    # grid-resident with a constant index_map).
    flops = int(B * (24 * S * E * E + 4 * S * S * E))
    transcendentals = int(B * (S * S * num_heads + S * 4 * E + 2 * S * E))
    weight_bytes = 2 * (3 * E * E + E * E + E * H4 + H4 * E) \
        + 4 * (6 * E + H4)
    bytes_accessed = int(2 * B * S * E * 4 + weight_bytes)

    kernel = functools.partial(transformer_block_kernel,
                               num_heads=num_heads, ff_chunk=ff_chunk)

    def _const_spec(shape, mode):
        if mode is None:
            return pl.BlockSpec(shape, lambda b: (0,) * len(shape))
        return pl.BlockSpec(shape, lambda b: (0,) * len(shape),
                            pipeline_mode=mode)

    def _call(weight_mode):
        in_specs = [
            pl.BlockSpec((1, S, E), lambda b: (b, 0, 0)),     # x: one batch/step
            _const_spec((1, E), weight_mode),                 # ln1 scale
            _const_spec((1, E), weight_mode),                 # ln1 shift
            _const_spec((E, E), weight_mode),                 # wq (bf16, scaled)
            _const_spec((E, E), weight_mode),                 # wk (bf16)
            _const_spec((E, E), weight_mode),                 # wv (bf16)
            _const_spec((E, E), weight_mode),                 # wproj (bf16)
            _const_spec((1, E), weight_mode),                 # proj bias
            _const_spec((1, E), weight_mode),                 # ln2 scale
            _const_spec((1, E), weight_mode),                 # ln2 shift
            _const_spec((E, H4), weight_mode),                # ff W1 (bf16)
            _const_spec((1, H4), weight_mode),                # ff b1
            _const_spec((H4, E), weight_mode),                # ff W2 (bf16)
            _const_spec((1, E), weight_mode),                 # ff b2
        ]
        out_spec = pl.BlockSpec((1, S, E), lambda b: (b, 0, 0))
        return pl.pallas_call(
            kernel,
            out_shape=jax.ShapeDtypeStruct((B, S, E), x.dtype),
            grid_spec=pltpu.PrefetchScalarGridSpec(
                num_scalar_prefetch=0,
                grid=(B,),
                in_specs=in_specs,
                out_specs=out_spec,
                scratch_shapes=[pltpu.VMEM((S, E), jnp.bfloat16)],  # ctx slab
            ),
            compiler_params=pltpu.CompilerParams(
                dimension_semantics=("parallel",),         # megacore-friendly
                vmem_limit_bytes=vmem_limit,
            ),
            cost_estimate=pl.CostEstimate(
                flops=flops,
                transcendentals=transcendentals,
                bytes_accessed=bytes_accessed,
            ),
        )(x, ln1_s, ln1_b, wq_b, wk_b, wv_b, wproj_b, bproj,
          ln2_s, ln2_b, w1_b, b1, w2_b, b2)

    # Grid-constant weights only need a single VMEM buffer; fall back to the
    # default double-buffering if this Pallas/Mosaic version rejects Buffered(1).
    try:
        return _call(pl.Buffered(1))
    except Exception:
        return _call(None)


# --------------------------- pure-JAX reference -----------------------------
def reference_block(x, params, num_heads):
    (ln1_s, ln1_b, wqkv, wproj, bproj, ln2_s, ln2_b, w1, b1, w2, b2) = params
    B, S, E = x.shape
    Dh = E // num_heads

    def ln(z, s, b):
        m = jnp.mean(z, axis=-1, keepdims=True)
        v = jnp.mean((z - m) ** 2, axis=-1, keepdims=True)
        return s[0] * ((z - m) / jnp.sqrt(v + 1e-5)) + b[0]

    h = ln(x, ln1_s, ln1_b)
    qkv = h @ wqkv                                             # (B, S, 3E)
    qkv = qkv.reshape(B, S, 3, num_heads, Dh).transpose(2, 0, 3, 1, 4)
    q, k, v = qkv[0], qkv[1], qkv[2]                           # (B, H, S, Dh)
    s = jnp.einsum("bhqd,bhkd->bhqk", q, k) / jnp.sqrt(Dh)
    mask = jnp.tril(jnp.ones((S, S), bool))
    s = jnp.where(mask, s, -jnp.inf)
    p = jax.nn.softmax(s, axis=-1)
    ctx = jnp.einsum("bhqk,bhkd->bhqd", p, v)
    ctx = ctx.transpose(0, 2, 1, 3).reshape(B, S, E)
    attn = ctx @ wproj + bproj[0]
    x1 = x + attn

    h2 = ln(x1, ln2_s, ln2_b)
    ff = h2 @ w1 + b1[0]
    c = jnp.sqrt(2.0 / jnp.pi)
    ff = 0.5 * ff * (1.0 + jnp.tanh(c * (ff + 0.044715 * ff ** 3)))
    ff = ff @ w2 + b2[0]
    return x1 + ff


# --------------------------------- main --------------------------------------
if __name__ == "__main__":
    def make_params(key, E):
        keys = jax.random.split(key, 8)
        scale = 0.02
        return (
            jnp.ones((1, E), jnp.float32),                                 # ln1 scale
            jnp.zeros((1, E), jnp.float32),                                # ln1 shift
            scale * jax.random.normal(keys[1], (E, 3 * E), jnp.float32),   # qkv W
            scale * jax.random.normal(keys[2], (E, E), jnp.float32),       # proj W
            scale * jax.random.normal(keys[3], (1, E), jnp.float32),       # proj b
            jnp.ones((1, E), jnp.float32),                                 # ln2 scale
            jnp.zeros((1, E), jnp.float32),                                # ln2 shift
            scale * jax.random.normal(keys[4], (E, 4 * E), jnp.float32),   # ff W1
            scale * jax.random.normal(keys[5], (1, 4 * E), jnp.float32),   # ff b1
            scale * jax.random.normal(keys[6], (4 * E, E), jnp.float32),   # ff W2
            scale * jax.random.normal(keys[7], (1, E), jnp.float32),       # ff b2
        )

    key = jax.random.PRNGKey(0)
    # Small GPT2Settings-style shapes: one sub-tile case (numerics) and one
    # lane-aligned case (exercises the real (8,128) layout paths).
    for (B, S, E, H) in [(2, 8, 32, 4), (2, 128, 128, 4)]:
        kx, kp, key = jax.random.split(key, 3)
        x = jax.random.normal(kx, (B, S, E), jnp.float32)
        params = make_params(kp, E)

        out = jax.block_until_ready(transformer_block(x, params, num_heads=H))
        ref = reference_block(x, params, num_heads=H)
        assert out.shape == (B, S, E)
        # bf16 MXU operands + approximate reciprocal -> relaxed tolerance.
        max_err = float(jnp.max(jnp.abs(out - ref)))
        assert jnp.allclose(out, ref, atol=2e-2, rtol=2e-2), \
            f"(B,S,E,H)={(B, S, E, H)} max err {max_err}"

    print("KERNEL_OK")
</pallas_src>

<mosaic_0001>
module attributes {stable_mosaic.version = 11 : i64} {
  func.func @transformer_block_kernel(%arg0: i32, %arg1: memref<1x8x32xf32, #tpu.memory_space<vmem>>, %arg2: memref<1x32xf32, #tpu.memory_space<vmem>>, %arg3: memref<1x32xf32, #tpu.memory_space<vmem>>, %arg4: memref<32x32xbf16, #tpu.memory_space<vmem>>, %arg5: memref<32x32xbf16, #tpu.memory_space<vmem>>, %arg6: memref<32x32xbf16, #tpu.memory_space<vmem>>, %arg7: memref<32x32xbf16, #tpu.memory_space<vmem>>, %arg8: memref<1x32xf32, #tpu.memory_space<vmem>>, %arg9: memref<1x32xf32, #tpu.memory_space<vmem>>, %arg10: memref<1x32xf32, #tpu.memory_space<vmem>>, %arg11: memref<32x128xbf16, #tpu.memory_space<vmem>>, %arg12: memref<1x128xf32, #tpu.memory_space<vmem>>, %arg13: memref<128x32xbf16, #tpu.memory_space<vmem>>, %arg14: memref<1x32xf32, #tpu.memory_space<vmem>>, %arg15: memref<1x8x32xf32, #tpu.memory_space<vmem>>, %arg16: memref<8x32xbf16, #tpu.memory_space<vmem>>) attributes {dimension_semantics = [#tpu.dimension_semantics<parallel>], iteration_bounds = array<i64: 2>, scalar_prefetch = 0 : i64, scratch_operands = 1 : i64, tpu.core_type = #tpu.core_type<tc>, window_params = [{transform_indices = @transform_0, window_bounds = array<i64: 1, 8, 32>}, {pipeline_mode = #tpu.pipeline_mode<synchronous>, transform_indices = @transform_1, window_bounds = array<i64: 1, 32>}, {pipeline_mode = #tpu.pipeline_mode<synchronous>, transform_indices = @transform_2, window_bounds = array<i64: 1, 32>}, {pipeline_mode = #tpu.pipeline_mode<synchronous>, transform_indices = @transform_3, window_bounds = array<i64: 32, 32>}, {pipeline_mode = #tpu.pipeline_mode<synchronous>, transform_indices = @transform_4, window_bounds = array<i64: 32, 32>}, {pipeline_mode = #tpu.pipeline_mode<synchronous>, transform_indices = @transform_5, window_bounds = array<i64: 32, 32>}, {pipeline_mode = #tpu.pipeline_mode<synchronous>, transform_indices = @transform_6, window_bounds = array<i64: 32, 32>}, {pipeline_mode = #tpu.pipeline_mode<synchronous>, transform_indices = @transform_7, window_bounds = array<i64: 1, 32>}, {pipeline_mode = #tpu.pipeline_mode<synchronous>, transform_indices = @transform_8, window_bounds = array<i64: 1, 32>}, {pipeline_mode = #tpu.pipeline_mode<synchronous>, transform_indices = @transform_9, window_bounds = array<i64: 1, 32>}, {pipeline_mode = #tpu.pipeline_mode<synchronous>, transform_indices = @transform_10, window_bounds = array<i64: 32, 128>}, {pipeline_mode = #tpu.pipeline_mode<synchronous>, transform_indices = @transform_11, window_bounds = array<i64: 1, 128>}, {pipeline_mode = #tpu.pipeline_mode<synchronous>, transform_indices = @transform_12, window_bounds = array<i64: 128, 32>}, {pipeline_mode = #tpu.pipeline_mode<synchronous>, transform_indices = @transform_13, window_bounds = array<i64: 1, 32>}, {transform_indices = @transform_14, window_bounds = array<i64: 1, 8, 32>}]} {
    %c0 = arith.constant 0 : index
    %c0_0 = arith.constant 0 : index
    %c0_1 = arith.constant 0 : index
    %0 = vector.load %arg1[%c0, %c0_0, %c0_1] : memref<1x8x32xf32, #tpu.memory_space<vmem>>, vector<1x8x32xf32>
    %1 = vector.shape_cast %0 : vector<1x8x32xf32> to vector<8x32xf32>
    %c0_2 = arith.constant 0 : index
    %c0_3 = arith.constant 0 : index
    %2 = vector.load %arg2[%c0_2, %c0_3] : memref<1x32xf32, #tpu.memory_space<vmem>>, vector<1x32xf32>
    %3 = vector.shape_cast %2 : vector<1x32xf32> to vector<32xf32>
    %c0_4 = arith.constant 0 : index
    %c0_5 = arith.constant 0 : index
    %4 = vector.load %arg3[%c0_4, %c0_5] : memref<1x32xf32, #tpu.memory_space<vmem>>, vector<1x32xf32>
    %5 = vector.shape_cast %4 : vector<1x32xf32> to vector<32xf32>
    %cst = arith.constant dense<0.000000e+00> : vector<8xf32>
    %6 = vector.multi_reduction <add>, %1, %cst [1] : vector<8x32xf32> to vector<8xf32>
    %7 = vector.shape_cast %6 : vector<8xf32> to vector<8x1xf32>
    %cst_6 = arith.constant 3.200000e+01 : f32
    %8 = vector.broadcast %cst_6 : f32 to vector<8x1xf32>
    %9 = arith.divf %7, %8 : vector<8x1xf32>
    %10 = vector.broadcast %9 : vector<8x1xf32> to vector<8x32xf32>
    %11 = arith.subf %1, %10 : vector<8x32xf32>
    %12 = arith.mulf %11, %11 : vector<8x32xf32>
    %cst_7 = arith.constant dense<0.000000e+00> : vector<8xf32>
    %13 = vector.multi_reduction <add>, %12, %cst_7 [1] : vector<8x32xf32> to vector<8xf32>
    %14 = vector.shape_cast %13 : vector<8xf32> to vector<8x1xf32>
    %cst_8 = arith.constant 3.200000e+01 : f32
    %15 = vector.broadcast %cst_8 : f32 to vector<8x1xf32>
    %16 = arith.divf %14, %15 : vector<8x1xf32>
    %17 = vector.broadcast %9 : vector<8x1xf32> to vector<8x32xf32>
    %18 = arith.subf %1, %17 : vector<8x32xf32>
    %cst_9 = arith.constant 9.99999974E-6 : f32
    %19 = vector.broadcast %cst_9 : f32 to vector<8x1xf32>
    %20 = arith.addf %16, %19 : vector<8x1xf32>
    %21 = math.sqrt %20 : vector<8x1xf32>
    %22 = vector.broadcast %21 : vector<8x1xf32> to vector<8x32xf32>
    %23 = arith.divf %18, %22 : vector<8x32xf32>
    %24 = vector.shape_cast %3 : vector<32xf32> to vector<1x32xf32>
    %25 = vector.broadcast %24 : vector<1x32xf32> to vector<8x32xf32>
    %26 = arith.mulf %25, %23 : vector<8x32xf32>
    %27 = vector.shape_cast %5 : vector<32xf32> to vector<1x32xf32>
    %28 = vector.broadcast %27 : vector<1x32xf32> to vector<8x32xf32>
    %29 = arith.addf %26, %28 : vector<8x32xf32>
    %30 = arith.truncf %29 : vector<8x32xf32> to vector<8x32xbf16>
    %c0_10 = arith.constant 0 : index
    %c0_11 = arith.constant 0 : index
    %31 = vector.load %arg4[%c0_10, %c0_11] : memref<32x32xbf16, #tpu.memory_space<vmem>>, vector<32x32xbf16>
    %cst_12 = arith.constant dense<0.000000e+00> : vector<8x32xf32>
    %32 = tpu.matmul %30, %31, %cst_12 {dimension_numbers = #tpu.dot_dimension_numbers<[1], [0], [0], [1], [0, 0, 1, 1], [], []>} : vector<8x32xbf16>, vector<32x32xbf16>, vector<8x32xf32> -> vector<8x32xf32>
    %33 = arith.truncf %32 : vector<8x32xf32> to vector<8x32xbf16>
    %c0_13 = arith.constant 0 : index
    %c0_14 = arith.constant 0 : index
    %34 = vector.load %arg5[%c0_13, %c0_14] : memref<32x32xbf16, #tpu.memory_space<vmem>>, vector<32x32xbf16>
    %cst_15 = arith.constant dense<0.000000e+00> : vector<8x32xf32>
    %35 = tpu.matmul %30, %34, %cst_15 {dimension_numbers = #tpu.dot_dimension_numbers<[1], [0], [0], [1], [0, 0, 1, 1], [], []>} : vector<8x32xbf16>, vector<32x32xbf16>, vector<8x32xf32> -> vector<8x32xf32>
    %36 = arith.truncf %35 : vector<8x32xf32> to vector<8x32xbf16>
    %c0_16 = arith.constant 0 : index
    %c0_17 = arith.constant 0 : index
    %37 = vector.load %arg6[%c0_16, %c0_17] : memref<32x32xbf16, #tpu.memory_space<vmem>>, vector<32x32xbf16>
    %cst_18 = arith.constant dense<0.000000e+00> : vector<8x32xf32>
    %38 = tpu.matmul %30, %37, %cst_18 {dimension_numbers = #tpu.dot_dimension_numbers<[1], [0], [0], [1], [0, 0, 1, 1], [], []>} : vector<8x32xbf16>, vector<32x32xbf16>, vector<8x32xf32> -> vector<8x32xf32>
    %39 = arith.truncf %38 : vector<8x32xf32> to vector<8x32xbf16>
    %40 = tpu.iota {dimensions = array<i32: 0>} : vector<8x8xi32>
    %41 = tpu.iota {dimensions = array<i32: 1>} : vector<8x8xi32>
    %42 = arith.cmpi sge, %40, %41 : vector<8x8xi32>
    %43 = vector.extract_strided_slice %33 {offsets = [0, 0], sizes = [8, 8], strides = [1, 1]} : vector<8x32xbf16> to vector<8x8xbf16>
    %44 = vector.extract_strided_slice %36 {offsets = [0, 0], sizes = [8, 8], strides = [1, 1]} : vector<8x32xbf16> to vector<8x8xbf16>
    %45 = vector.extract_strided_slice %39 {offsets = [0, 0], sizes = [8, 8], strides = [1, 1]} : vector<8x32xbf16> to vector<8x8xbf16>
    %cst_19 = arith.constant dense<0.000000e+00> : vector<8x8xf32>
    %46 = tpu.matmul %43, %44, %cst_19 {dimension_numbers = #tpu.dot_dimension_numbers<[1], [1], [0], [0], [0, 0, 1, 0], [], []>} : vector<8x8xbf16>, vector<8x8xbf16>, vector<8x8xf32> -> vector<8x8xf32>
    %cst_20 = arith.constant -1.000000e+30 : f32
    %47 = vector.broadcast %cst_20 : f32 to vector<8x8xf32>
    %48 = arith.select %42, %46, %47 : vector<8x8xi1>, vector<8x8xf32>
    %cst_21 = arith.constant dense<0xFF800000> : vector<8xf32>
    %49 = vector.multi_reduction <maximumf>, %48, %cst_21 [1] : vector<8x8xf32> to vector<8xf32>
    %50 = vector.shape_cast %49 : vector<8xf32> to vector<8x1xf32>
    %51 = vector.broadcast %50 : vector<8x1xf32> to vector<8x8xf32>
    %52 = arith.subf %48, %51 : vector<8x8xf32>
    %53 = math.exp %52 : vector<8x8xf32>
    %cst_22 = arith.constant dense<0.000000e+00> : vector<8xf32>
    %54 = vector.multi_reduction <add>, %53, %cst_22 [1] : vector<8x8xf32> to vector<8xf32>
    %55 = vector.shape_cast %54 : vector<8xf32> to vector<8x1xf32>
    %56 = arith.truncf %53 : vector<8x8xf32> to vector<8x8xbf16>
    %cst_23 = arith.constant dense<0.000000e+00> : vector<8x8xf32>
    %57 = tpu.matmul %56, %45, %cst_23 {dimension_numbers = #tpu.dot_dimension_numbers<[1], [0], [0], [1], [0, 0, 1, 1], [], []>} : vector<8x8xbf16>, vector<8x8xbf16>, vector<8x8xf32> -> vector<8x8xf32>
    %58 = tpu.reciprocal %55 {approx = true} : vector<8x1xf32> -> vector<8x1xf32>
    %59 = vector.broadcast %58 : vector<8x1xf32> to vector<8x8xf32>
    %60 = arith.mulf %57, %59 : vector<8x8xf32>
    %61 = arith.truncf %60 : vector<8x8xf32> to vector<8x8xbf16>
    %c0_24 = arith.constant 0 : index
    %c0_25 = arith.constant 0 : index
    %62 = vector.load %arg16[%c0_24, %c0_25] : memref<8x32xbf16, #tpu.memory_space<vmem>>, vector<8x8xbf16>
    tpu.vector_store %arg16[%c0_24, %c0_25], %61 {strides = array<i32>} : memref<8x32xbf16, #tpu.memory_space<vmem>>, vector<8x8xbf16>,
    %63 = vector.extract_strided_slice %33 {offsets = [0, 8], sizes = [8, 8], strides = [1, 1]} : vector<8x32xbf16> to vector<8x8xbf16>
    %64 = vector.extract_strided_slice %36 {offsets = [0, 8], sizes = [8, 8], strides = [1, 1]} : vector<8x32xbf16> to vector<8x8xbf16>
    %65 = vector.extract_strided_slice %39 {offsets = [0, 8], sizes = [8, 8], strides = [1, 1]} : vector<8x32xbf16> to vector<8x8xbf16>
    %cst_26 = arith.constant dense<0.000000e+00> : vector<8x8xf32>
    %66 = tpu.matmul %63, %64, %cst_26 {dimension_numbers = #tpu.dot_dimension_numbers<[1], [1], [0], [0], [0, 0, 1, 0], [], []>} : vector<8x8xbf16>, vector<8x8xbf16>, vector<8x8xf32> -> vector<8x8xf32>
    %cst_27 = arith.constant -1.000000e+30 : f32
    %67 = vector.broadcast %cst_27 : f32 to vector<8x8xf32>
    %68 = arith.select %42, %66, %67 : vector<8x8xi1>, vector<8x8xf32>
    %cst_28 = arith.constant dense<0xFF800000> : vector<8xf32>
    %69 = vector.multi_reduction <maximumf>, %68, %cst_28 [1] : vector<8x8xf32> to vector<8xf32>
    %70 = vector.shape_cast %69 : vector<8xf32> to vector<8x1xf32>
    %71 = vector.broadcast %70 : vector<8x1xf32> to vector<8x8xf32>
    %72 = arith.subf %68, %71 : vector<8x8xf32>
    %73 = math.exp %72 : vector<8x8xf32>
    %cst_29 = arith.constant dense<0.000000e+00> : vector<8xf32>
    %74 = vector.multi_reduction <add>, %73, %cst_29 [1] : vector<8x8xf32> to vector<8xf32>
    %75 = vector.shape_cast %74 : vector<8xf32> to vector<8x1xf32>
    %76 = arith.truncf %73 : vector<8x8xf32> to vector<8x8xbf16>
    %cst_30 = arith.constant dense<0.000000e+00> : vector<8x8xf32>
    %77 = tpu.matmul %76, %65, %cst_30 {dimension_numbers = #tpu.dot_dimension_numbers<[1], [0], [0], [1], [0, 0, 1, 1], [], []>} : vector<8x8xbf16>, vector<8x8xbf16>, vector<8x8xf32> -> vector<8x8xf32>
    %78 = tpu.reciprocal %75 {approx = true} : vector<8x1xf32> -> vector<8x1xf32>
    %79 = vector.broadcast %78 : vector<8x1xf32> to vector<8x8xf32>
    %80 = arith.mulf %77, %79 : vector<8x8xf32>
    %81 = arith.truncf %80 : vector<8x8xf32> to vector<8x8xbf16>
    %c0_31 = arith.constant 0 : index
    %c8 = arith.constant 8 : index
    %82 = vector.load %arg16[%c0_31, %c8] : memref<8x32xbf16, #tpu.memory_space<vmem>>, vector<8x8xbf16>
    tpu.vector_store %arg16[%c0_31, %c8], %81 {strides = array<i32>} : memref<8x32xbf16, #tpu.memory_space<vmem>>, vector<8x8xbf16>,
    %83 = vector.extract_strided_slice %33 {offsets = [0, 16], sizes = [8, 8], strides = [1, 1]} : vector<8x32xbf16> to vector<8x8xbf16>
    %84 = vector.extract_strided_slice %36 {offsets = [0, 16], sizes = [8, 8], strides = [1, 1]} : vector<8x32xbf16> to vector<8x8xbf16>
    %85 = vector.extract_strided_slice %39 {offsets = [0, 16], sizes = [8, 8], strides = [1, 1]} : vector<8x32xbf16> to vector<8x8xbf16>
    %cst_32 = arith.constant dense<0.000000e+00> : vector<8x8xf32>
    %86 = tpu.matmul %83, %84, %cst_32 {dimension_numbers = #tpu.dot_dimension_numbers<[1], [1], [0], [0], [0, 0, 1, 0], [], []>} : vector<8x8xbf16>, vector<8x8xbf16>, vector<8x8xf32> -> vector<8x8xf32>
    %cst_33 = arith.constant -1.000000e+30 : f32
    %87 = vector.broadcast %cst_33 : f32 to vector<8x8xf32>
    %88 = arith.select %42, %86, %87 : vector<8x8xi1>, vector<8x8xf32>
    %cst_34 = arith.constant dense<0xFF800000> : vector<8xf32>
    %89 = vector.multi_reduction <maximumf>, %88, %cst_34 [1] : vector<8x8xf32> to vector<8xf32>
    %90 = vector.shape_cast %89 : vector<8xf32> to vector<8x1xf32>
    %91 = vector.broadcast %90 : vector<8x1xf32> to vector<8x8xf32>
    %92 = arith.subf %88, %91 : vector<8x8xf32>
    %93 = math.exp %92 : vector<8x8xf32>
    %cst_35 = arith.constant dense<0.000000e+00> : vector<8xf32>
    %94 = vector.multi_reduction <add>, %93, %cst_35 [1] : vector<8x8xf32> to vector<8xf32>
    %95 = vector.shape_cast %94 : vector<8xf32> to vector<8x1xf32>
    %96 = arith.truncf %93 : vector<8x8xf32> to vector<8x8xbf16>
    %cst_36 = arith.constant dense<0.000000e+00> : vector<8x8xf32>
    %97 = tpu.matmul %96, %85, %cst_36 {dimension_numbers = #tpu.dot_dimension_numbers<[1], [0], [0], [1], [0, 0, 1, 1], [], []>} : vector<8x8xbf16>, vector<8x8xbf16>, vector<8x8xf32> -> vector<8x8xf32>
    %98 = tpu.reciprocal %95 {approx = true} : vector<8x1xf32> -> vector<8x1xf32>
    %99 = vector.broadcast %98 : vector<8x1xf32> to vector<8x8xf32>
    %100 = arith.mulf %97, %99 : vector<8x8xf32>
    %101 = arith.truncf %100 : vector<8x8xf32> to vector<8x8xbf16>
    %c0_37 = arith.constant 0 : index
    %c16 = arith.constant 16 : index
    %102 = vector.load %arg16[%c0_37, %c16] : memref<8x32xbf16, #tpu.memory_space<vmem>>, vector<8x8xbf16>
    tpu.vector_store %arg16[%c0_37, %c16], %101 {strides = array<i32>} : memref<8x32xbf16, #tpu.memory_space<vmem>>, vector<8x8xbf16>,
    %103 = vector.extract_strided_slice %33 {offsets = [0, 24], sizes = [8, 8], strides = [1, 1]} : vector<8x32xbf16> to vector<8x8xbf16>
    %104 = vector.extract_strided_slice %36 {offsets = [0, 24], sizes = [8, 8], strides = [1, 1]} : vector<8x32xbf16> to vector<8x8xbf16>
    %105 = vector.extract_strided_slice %39 {offsets = [0, 24], sizes = [8, 8], strides = [1, 1]} : vector<8x32xbf16> to vector<8x8xbf16>
    %cst_38 = arith.constant dense<0.000000e+00> : vector<8x8xf32>
    %106 = tpu.matmul %103, %104, %cst_38 {dimension_numbers = #tpu.dot_dimension_numbers<[1], [1], [0], [0], [0, 0, 1, 0], [], []>} : vector<8x8xbf16>, vector<8x8xbf16>, vector<8x8xf32> -> vector<8x8xf32>
    %cst_39 = arith.constant -1.000000e+30 : f32
    %107 = vector.broadcast %cst_39 : f32 to vector<8x8xf32>
    %108 = arith.select %42, %106, %107 : vector<8x8xi1>, vector<8x8xf32>
    %cst_40 = arith.constant dense<0xFF800000> : vector<8xf32>
    %109 = vector.multi_reduction <maximumf>, %108, %cst_40 [1] : vector<8x8xf32> to vector<8xf32>
    %110 = vector.shape_cast %109 : vector<8xf32> to vector<8x1xf32>
    %111 = vector.broadcast %110 : vector<8x1xf32> to vector<8x8xf32>
    %112 = arith.subf %108, %111 : vector<8x8xf32>
    %113 = math.exp %112 : vector<8x8xf32>
    %cst_41 = arith.constant dense<0.000000e+00> : vector<8xf32>
    %114 = vector.multi_reduction <add>, %113, %cst_41 [1] : vector<8x8xf32> to vector<8xf32>
    %115 = vector.shape_cast %114 : vector<8xf32> to vector<8x1xf32>
    %116 = arith.truncf %113 : vector<8x8xf32> to vector<8x8xbf16>
    %cst_42 = arith.constant dense<0.000000e+00> : vector<8x8xf32>
    %117 = tpu.matmul %116, %105, %cst_42 {dimension_numbers = #tpu.dot_dimension_numbers<[1], [0], [0], [1], [0, 0, 1, 1], [], []>} : vector<8x8xbf16>, vector<8x8xbf16>, vector<8x8xf32> -> vector<8x8xf32>
    %118 = tpu.reciprocal %115 {approx = true} : vector<8x1xf32> -> vector<8x1xf32>
    %119 = vector.broadcast %118 : vector<8x1xf32> to vector<8x8xf32>
    %120 = arith.mulf %117, %119 : vector<8x8xf32>
    %121 = arith.truncf %120 : vector<8x8xf32> to vector<8x8xbf16>
    %c0_43 = arith.constant 0 : index
    %c24 = arith.constant 24 : index
    %122 = vector.load %arg16[%c0_43, %c24] : memref<8x32xbf16, #tpu.memory_space<vmem>>, vector<8x8xbf16>
    tpu.vector_store %arg16[%c0_43, %c24], %121 {strides = array<i32>} : memref<8x32xbf16, #tpu.memory_space<vmem>>, vector<8x8xbf16>,
    %c0_44 = arith.constant 0 : index
    %c0_45 = arith.constant 0 : index
    %123 = vector.load %arg16[%c0_44, %c0_45] : memref<8x32xbf16, #tpu.memory_space<vmem>>, vector<8x32xbf16>
    %c0_46 = arith.constant 0 : index
    %c0_47 = arith.constant 0 : index
    %124 = vector.load %arg7[%c0_46, %c0_47] : memref<32x32xbf16, #tpu.memory_space<vmem>>, vector<32x32xbf16>
    %cst_48 = arith.constant dense<0.000000e+00> : vector<8x32xf32>
    %125 = tpu.matmul %123, %124, %cst_48 {dimension_numbers = #tpu.dot_dimension_numbers<[1], [0], [0], [1], [0, 0, 1, 1], [], []>} : vector<8x32xbf16>, vector<32x32xbf16>, vector<8x32xf32> -> vector<8x32xf32>
    %c0_49 = arith.constant 0 : index
    %c0_50 = arith.constant 0 : index
    %126 = vector.load %arg8[%c0_49, %c0_50] : memref<1x32xf32, #tpu.memory_space<vmem>>, vector<1x32xf32>
    %127 = vector.shape_cast %126 : vector<1x32xf32> to vector<32xf32>
    %128 = vector.shape_cast %127 : vector<32xf32> to vector<1x32xf32>
    %129 = vector.broadcast %128 : vector<1x32xf32> to vector<8x32xf32>
    %130 = arith.addf %125, %129 : vector<8x32xf32>
    %131 = arith.addf %1, %130 : vector<8x32xf32>
    %c0_51 = arith.constant 0 : index
    %c0_52 = arith.constant 0 : index
    %132 = vector.load %arg9[%c0_51, %c0_52] : memref<1x32xf32, #tpu.memory_space<vmem>>, vector<1x32xf32>
    %133 = vector.shape_cast %132 : vector<1x32xf32> to vector<32xf32>
    %c0_53 = arith.constant 0 : index
    %c0_54 = arith.constant 0 : index
    %134 = vector.load %arg10[%c0_53, %c0_54] : memref<1x32xf32, #tpu.memory_space<vmem>>, vector<1x32xf32>
    %135 = vector.shape_cast %134 : vector<1x32xf32> to vector<32xf32>
    %cst_55 = arith.constant dense<0.000000e+00> : vector<8xf32>
    %136 = vector.multi_reduction <add>, %131, %cst_55 [1] : vector<8x32xf32> to vector<8xf32>
    %137 = vector.shape_cast %136 : vector<8xf32> to vector<8x1xf32>
    %cst_56 = arith.constant 3.200000e+01 : f32
    %138 = vector.broadcast %cst_56 : f32 to vector<8x1xf32>
    %139 = arith.divf %137, %138 : vector<8x1xf32>
    %140 = vector.broadcast %139 : vector<8x1xf32> to vector<8x32xf32>
    %141 = arith.subf %131, %140 : vector<8x32xf32>
    %142 = arith.mulf %141, %141 : vector<8x32xf32>
    %cst_57 = arith.constant dense<0.000000e+00> : vector<8xf32>
    %143 = vector.multi_reduction <add>, %142, %cst_57 [1] : vector<8x32xf32> to vector<8xf32>
    %144 = vector.shape_cast %143 : vector<8xf32> to vector<8x1xf32>
    %cst_58 = arith.constant 3.200000e+01 : f32
    %145 = vector.broadcast %cst_58 : f32 to vector<8x1xf32>
    %146 = arith.divf %144, %145 : vector<8x1xf32>
    %147 = vector.broadcast %139 : vector<8x1xf32> to vector<8x32xf32>
    %148 = arith.subf %131, %147 : vector<8x32xf32>
    %cst_59 = arith.constant 9.99999974E-6 : f32
    %149 = vector.broadcast %cst_59 : f32 to vector<8x1xf32>
    %150 = arith.addf %146, %149 : vector<8x1xf32>
    %151 = math.sqrt %150 : vector<8x1xf32>
    %152 = vector.broadcast %151 : vector<8x1xf32> to vector<8x32xf32>
    %153 = arith.divf %148, %152 : vector<8x32xf32>
    %154 = vector.shape_cast %133 : vector<32xf32> to vector<1x32xf32>
    %155 = vector.broadcast %154 : vector<1x32xf32> to vector<8x32xf32>
    %156 = arith.mulf %155, %153 : vector<8x32xf32>
    %157 = vector.shape_cast %135 : vector<32xf32> to vector<1x32xf32>
    %158 = vector.broadcast %157 : vector<1x32xf32> to vector<8x32xf32>
    %159 = arith.addf %156, %158 : vector<8x32xf32>
    %160 = arith.truncf %159 : vector<8x32xf32> to vector<8x32xbf16>
    %c0_60 = arith.constant 0 : index
    %c0_61 = arith.constant 0 : index
    %161 = vector.load %arg12[%c0_60, %c0_61] : memref<1x128xf32, #tpu.memory_space<vmem>>, vector<1x128xf32>
    %c0_62 = arith.constant 0 : index
    %c0_63 = arith.constant 0 : index
    %162 = vector.load %arg14[%c0_62, %c0_63] : memref<1x32xf32, #tpu.memory_space<vmem>>, vector<1x32xf32>
    %163 = vector.shape_cast %162 : vector<1x32xf32> to vector<32xf32>
    %164 = vector.shape_cast %163 : vector<32xf32> to vector<1x32xf32>
    %165 = vector.broadcast %164 : vector<1x32xf32> to vector<8x32xf32>
    %166 = arith.addf %131, %165 : vector<8x32xf32>
    %c0_64 = arith.constant 0 : index
    %c0_65 = arith.constant 0 : index
    %167 = vector.load %arg11[%c0_64, %c0_65] : memref<32x128xbf16, #tpu.memory_space<vmem>>, vector<32x128xbf16>
    %cst_66 = arith.constant dense<0.000000e+00> : vector<8x128xf32>
    %168 = tpu.matmul %160, %167, %cst_66 {dimension_numbers = #tpu.dot_dimension_numbers<[1], [0], [0], [1], [0, 0, 1, 1], [], []>} : vector<8x32xbf16>, vector<32x128xbf16>, vector<8x128xf32> -> vector<8x128xf32>
    %169 = vector.broadcast %161 : vector<1x128xf32> to vector<8x128xf32>
    %170 = arith.addf %168, %169 : vector<8x128xf32>
    %cst_67 = arith.constant 0.636619746 : f32
    %171 = math.sqrt %cst_67 : f32
    %cst_68 = arith.constant 5.000000e-01 : f32
    %172 = vector.broadcast %cst_68 : f32 to vector<8x128xf32>
    %173 = arith.mulf %172, %170 : vector<8x128xf32>
    %cst_69 = arith.constant 4.471500e-02 : f32
    %174 = vector.broadcast %cst_69 : f32 to vector<8x128xf32>
    %175 = arith.mulf %174, %170 : vector<8x128xf32>
    %176 = arith.mulf %175, %170 : vector<8x128xf32>
    %177 = arith.mulf %176, %170 : vector<8x128xf32>
    %178 = arith.addf %170, %177 : vector<8x128xf32>
    %179 = vector.broadcast %171 : f32 to vector<8x128xf32>
    %180 = arith.mulf %179, %178 : vector<8x128xf32>
    %181 = math.tanh %180 : vector<8x128xf32>
    %cst_70 = arith.constant 1.000000e+00 : f32
    %182 = vector.broadcast %cst_70 : f32 to vector<8x128xf32>
    %183 = arith.addf %182, %181 : vector<8x128xf32>
    %184 = arith.mulf %173, %183 : vector<8x128xf32>
    %185 = arith.truncf %184 : vector<8x128xf32> to vector<8x128xbf16>
    %c0_71 = arith.constant 0 : index
    %c0_72 = arith.constant 0 : index
    %186 = vector.load %arg13[%c0_71, %c0_72] : memref<128x32xbf16, #tpu.memory_space<vmem>>, vector<128x32xbf16>
    %cst_73 = arith.constant dense<0.000000e+00> : vector<8x32xf32>
    %187 = tpu.matmul %185, %186, %cst_73 {dimension_numbers = #tpu.dot_dimension_numbers<[1], [0], [0], [1], [0, 0, 1, 1], [], []>} : vector<8x128xbf16>, vector<128x32xbf16>, vector<8x32xf32> -> vector<8x32xf32>
    %188 = arith.addf %166, %187 : vector<8x32xf32>
    %c0_74 = arith.constant 0 : index
    %c0_75 = arith.constant 0 : index
    %c0_76 = arith.constant 0 : index
    %189 = vector.load %arg15[%c0_74, %c0_75, %c0_76] : memref<1x8x32xf32, #tpu.memory_space<vmem>>, vector<1x8x32xf32>
    %190 = vector.shape_cast %189 : vector<1x8x32xf32> to vector<8x32xf32>
    %191 = vector.shape_cast %188 : vector<8x32xf32> to vector<1x8x32xf32>
    tpu.vector_store %arg15[%c0_74, %c0_75, %c0_76], %191 {strides = array<i32>} : memref<1x8x32xf32, #tpu.memory_space<vmem>>, vector<1x8x32xf32>,
    return
  }
  func.func @transform_0(%arg0: i32) -> (i32, i32, i32) {
    %c0_i32 = arith.constant 0 : i32
    %c0_i32_0 = arith.constant 0 : i32
    %c0_i32_1 = arith.constant 0 : i32
    return %arg0, %c0_i32, %c0_i32_0 : i32, i32, i32
  }
  func.func @transform_1(%arg0: i32) -> (i32, i32) {
    %c0_i32 = arith.constant 0 : i32
    %c0_i32_0 = arith.constant 0 : i32
    %c0_i32_1 = arith.constant 0 : i32
    return %c0_i32, %c0_i32_0 : i32, i32
  }
  func.func @transform_2(%arg0: i32) -> (i32, i32) {
    %c0_i32 = arith.constant 0 : i32
    %c0_i32_0 = arith.constant 0 : i32
    %c0_i32_1 = arith.constant 0 : i32
    return %c0_i32, %c0_i32_0 : i32, i32
  }
  func.func @transform_3(%arg0: i32) -> (i32, i32) {
    %c0_i32 = arith.constant 0 : i32
    %c0_i32_0 = arith.constant 0 : i32
    %c0_i32_1 = arith.constant 0 : i32
    return %c0_i32, %c0_i32_0 : i32, i32
  }
  func.func @transform_4(%arg0: i32) -> (i32, i32) {
    %c0_i32 = arith.constant 0 : i32
    %c0_i32_0 = arith.constant 0 : i32
    %c0_i32_1 = arith.constant 0 : i32
    return %c0_i32, %c0_i32_0 : i32, i32
  }
  func.func @transform_5(%arg0: i32) -> (i32, i32) {
    %c0_i32 = arith.constant 0 : i32
    %c0_i32_0 = arith.constant 0 : i32
    %c0_i32_1 = arith.constant 0 : i32
    return %c0_i32, %c0_i32_0 : i32, i32
  }
  func.func @transform_6(%arg0: i32) -> (i32, i32) {
    %c0_i32 = arith.constant 0 : i32
    %c0_i32_0 = arith.constant 0 : i32
    %c0_i32_1 = arith.constant 0 : i32
    return %c0_i32, %c0_i32_0 : i32, i32
  }
  func.func @transform_7(%arg0: i32) -> (i32, i32) {
    %c0_i32 = arith.constant 0 : i32
    %c0_i32_0 = arith.constant 0 : i32
    %c0_i32_1 = arith.constant 0 : i32
    return %c0_i32, %c0_i32_0 : i32, i32
  }
  func.func @transform_8(%arg0: i32) -> (i32, i32) {
    %c0_i32 = arith.constant 0 : i32
    %c0_i32_0 = arith.constant 0 : i32
    %c0_i32_1 = arith.constant 0 : i32
    return %c0_i32, %c0_i32_0 : i32, i32
  }
  func.func @transform_9(%arg0: i32) -> (i32, i32) {
    %c0_i32 = arith.constant 0 : i32
    %c0_i32_0 = arith.constant 0 : i32
    %c0_i32_1 = arith.constant 0 : i32
    return %c0_i32, %c0_i32_0 : i32, i32
  }
  func.func @transform_10(%arg0: i32) -> (i32, i32) {
    %c0_i32 = arith.constant 0 : i32
    %c0_i32_0 = arith.constant 0 : i32
    %c0_i32_1 = arith.constant 0 : i32
    return %c0_i32, %c0_i32_0 : i32, i32
  }
  func.func @transform_11(%arg0: i32) -> (i32, i32) {
    %c0_i32 = arith.constant 0 : i32
    %c0_i32_0 = arith.constant 0 : i32
    %c0_i32_1 = arith.constant 0 : i32
    return %c0_i32, %c0_i32_0 : i32, i32
  }
  func.func @transform_12(%arg0: i32) -> (i32, i32) {
    %c0_i32 = arith.constant 0 : i32
    %c0_i32_0 = arith.constant 0 : i32
    %c0_i32_1 = arith.constant 0 : i32
    return %c0_i32, %c0_i32_0 : i32, i32
  }
  func.func @transform_13(%arg0: i32) -> (i32, i32) {
    %c0_i32 = arith.constant 0 : i32
    %c0_i32_0 = arith.constant 0 : i32
    %c0_i32_1 = arith.constant 0 : i32
    return %c0_i32, %c0_i32_0 : i32, i32
  }
  func.func @transform_14(%arg0: i32) -> (i32, i32, i32) {
    %c0_i32 = arith.constant 0 : i32
    %c0_i32_0 = arith.constant 0 : i32
    %c0_i32_1 = arith.constant 0 : i32
    return %arg0, %c0_i32, %c0_i32_0 : i32, i32, i32
  }
}

module attributes {stable_mosaic.version = 11 : i64} {
  func.func @transformer_block_kernel(%arg0: i32, %arg1: memref<1x8x32xf32, #tpu.memory_space<vmem>>, %arg2: memref<1x32xf32, #tpu.memory_space<vmem>>, %arg3: memref<1x32xf32, #tpu.memory_space<vmem>>, %arg4: memref<32x32xbf16, #tpu.memory_space<vmem>>, %arg5: memref<32x32xbf16, #tpu.memory_space<vmem>>, %arg6: memref<32x32xbf16, #tpu.memory_space<vmem>>, %arg7: memref<32x32xbf16, #tpu.memory_space<vmem>>, %arg8: memref<1x32xf32, #tpu.memory_space<vmem>>, %arg9: memref<1x32xf32, #tpu.memory_space<vmem>>, %arg10: memref<1x32xf32, #tpu.memory_space<vmem>>, %arg11: memref<32x128xbf16, #tpu.memory_space<vmem>>, %arg12: memref<1x128xf32, #tpu.memory_space<vmem>>, %arg13: memref<128x32xbf16, #tpu.memory_space<vmem>>, %arg14: memref<1x32xf32, #tpu.memory_space<vmem>>, %arg15: memref<1x8x32xf32, #tpu.memory_space<vmem>>, %arg16: memref<8x32xbf16, #tpu.memory_space<vmem>>) attributes {dimension_semantics = [#tpu.dimension_semantics<parallel>], iteration_bounds = array<i64: 2>, scalar_prefetch = 0 : i64, scratch_operands = 1 : i64, tpu.core_type = #tpu.core_type<tc>, window_params = [{transform_indices = @transform_0, window_bounds = array<i64: 1, 8, 32>}, {pipeline_mode = #tpu.pipeline_mode<synchronous>, transform_indices = @transform_1, window_bounds = array<i64: 1, 32>}, {pipeline_mode = #tpu.pipeline_mode<synchronous>, transform_indices = @transform_2, window_bounds = array<i64: 1, 32>}, {pipeline_mode = #tpu.pipeline_mode<synchronous>, transform_indices = @transform_3, window_bounds = array<i64: 32, 32>}, {pipeline_mode = #tpu.pipeline_mode<synchronous>, transform_indices = @transform_4, window_bounds = array<i64: 32, 32>}, {pipeline_mode = #tpu.pipeline_mode<synchronous>, transform_indices = @transform_5, window_bounds = array<i64: 32, 32>}, {pipeline_mode = #tpu.pipeline_mode<synchronous>, transform_indices = @transform_6, window_bounds = array<i64: 32, 32>}, {pipeline_mode = #tpu.pipeline_mode<synchronous>, transform_indices = @transform_7, window_bounds = array<i64: 1, 32>}, {pipeline_mode = #tpu.pipeline_mode<synchronous>, transform_indices = @transform_8, window_bounds = array<i64: 1, 32>}, {pipeline_mode = #tpu.pipeline_mode<synchronous>, transform_indices = @transform_9, window_bounds = array<i64: 1, 32>}, {pipeline_mode = #tpu.pipeline_mode<synchronous>, transform_indices = @transform_10, window_bounds = array<i64: 32, 128>}, {pipeline_mode = #tpu.pipeline_mode<synchronous>, transform_indices = @transform_11, window_bounds = array<i64: 1, 128>}, {pipeline_mode = #tpu.pipeline_mode<synchronous>, transform_indices = @transform_12, window_bounds = array<i64: 128, 32>}, {pipeline_mode = #tpu.pipeline_mode<synchronous>, transform_indices = @transform_13, window_bounds = array<i64: 1, 32>}, {transform_indices = @transform_14, window_bounds = array<i64: 1, 8, 32>}]} {
    %c0 = arith.constant 0 : index
    %c0_0 = arith.constant 0 : index
    %c0_1 = arith.constant 0 : index
    %0 = vector.load %arg1[%c0, %c0_0, %c0_1] : memref<1x8x32xf32, #tpu.memory_space<vmem>>, vector<1x8x32xf32>
    %1 = vector.shape_cast %0 : vector<1x8x32xf32> to vector<8x32xf32>
    %c0_2 = arith.constant 0 : index
    %c0_3 = arith.constant 0 : index
    %2 = vector.load %arg2[%c0_2, %c0_3] : memref<1x32xf32, #tpu.memory_space<vmem>>, vector<1x32xf32>
    %3 = vector.shape_cast %2 : vector<1x32xf32> to vector<32xf32>
    %c0_4 = arith.constant 0 : index
    %c0_5 = arith.constant 0 : index
    %4 = vector.load %arg3[%c0_4, %c0_5] : memref<1x32xf32, #tpu.memory_space<vmem>>, vector<1x32xf32>
    %5 = vector.shape_cast %4 : vector<1x32xf32> to vector<32xf32>
    %cst = arith.constant dense<0.000000e+00> : vector<8xf32>
    %6 = vector.multi_reduction <add>, %1, %cst [1] : vector<8x32xf32> to vector<8xf32>
    %7 = vector.shape_cast %6 : vector<8xf32> to vector<8x1xf32>
    %cst_6 = arith.constant 3.200000e+01 : f32
    %8 = vector.broadcast %cst_6 : f32 to vector<8x1xf32>
    %9 = arith.divf %7, %8 : vector<8x1xf32>
    %10 = vector.broadcast %9 : vector<8x1xf32> to vector<8x32xf32>
    %11 = arith.subf %1, %10 : vector<8x32xf32>
    %12 = arith.mulf %11, %11 : vector<8x32xf32>
    %cst_7 = arith.constant dense<0.000000e+00> : vector<8xf32>
    %13 = vector.multi_reduction <add>, %12, %cst_7 [1] : vector<8x32xf32> to vector<8xf32>
    %14 = vector.shape_cast %13 : vector<8xf32> to vector<8x1xf32>
    %cst_8 = arith.constant 3.200000e+01 : f32
    %15 = vector.broadcast %cst_8 : f32 to vector<8x1xf32>
    %16 = arith.divf %14, %15 : vector<8x1xf32>
    %17 = vector.broadcast %9 : vector<8x1xf32> to vector<8x32xf32>
    %18 = arith.subf %1, %17 : vector<8x32xf32>
    %cst_9 = arith.constant 9.99999974E-6 : f32
    %19 = vector.broadcast %cst_9 : f32 to vector<8x1xf32>
    %20 = arith.addf %16, %19 : vector<8x1xf32>
    %21 = math.sqrt %20 : vector<8x1xf32>
    %22 = vector.broadcast %21 : vector<8x1xf32> to vector<8x32xf32>
    %23 = arith.divf %18, %22 : vector<8x32xf32>
    %24 = vector.shape_cast %3 : vector<32xf32> to vector<1x32xf32>
    %25 = vector.broadcast %24 : vector<1x32xf32> to vector<8x32xf32>
    %26 = arith.mulf %25, %23 : vector<8x32xf32>
    %27 = vector.shape_cast %5 : vector<32xf32> to vector<1x32xf32>
    %28 = vector.broadcast %27 : vector<1x32xf32> to vector<8x32xf32>
    %29 = arith.addf %26, %28 : vector<8x32xf32>
    %30 = arith.truncf %29 : vector<8x32xf32> to vector<8x32xbf16>
    %c0_10 = arith.constant 0 : index
    %c0_11 = arith.constant 0 : index
    %31 = vector.load %arg4[%c0_10, %c0_11] : memref<32x32xbf16, #tpu.memory_space<vmem>>, vector<32x32xbf16>
    %cst_12 = arith.constant dense<0.000000e+00> : vector<8x32xf32>
    %32 = tpu.matmul %30, %31, %cst_12 {dimension_numbers = #tpu.dot_dimension_numbers<[1], [0], [0], [1], [0, 0, 1, 1], [], []>} : vector<8x32xbf16>, vector<32x32xbf16>, vector<8x32xf32> -> vector<8x32xf32>
    %33 = arith.truncf %32 : vector<8x32xf32> to vector<8x32xbf16>
    %c0_13 = arith.constant 0 : index
    %c0_14 = arith.constant 0 : index
    %34 = vector.load %arg5[%c0_13, %c0_14] : memref<32x32xbf16, #tpu.memory_space<vmem>>, vector<32x32xbf16>
    %cst_15 = arith.constant dense<0.000000e+00> : vector<8x32xf32>
    %35 = tpu.matmul %30, %34, %cst_15 {dimension_numbers = #tpu.dot_dimension_numbers<[1], [0], [0], [1], [0, 0, 1, 1], [], []>} : vector<8x32xbf16>, vector<32x32xbf16>, vector<8x32xf32> -> vector<8x32xf32>
    %36 = arith.truncf %35 : vector<8x32xf32> to vector<8x32xbf16>
    %c0_16 = arith.constant 0 : index
    %c0_17 = arith.constant 0 : index
    %37 = vector.load %arg6[%c0_16, %c0_17] : memref<32x32xbf16, #tpu.memory_space<vmem>>, vector<32x32xbf16>
    %cst_18 = arith.constant dense<0.000000e+00> : vector<8x32xf32>
    %38 = tpu.matmul %30, %37, %cst_18 {dimension_numbers = #tpu.dot_dimension_numbers<[1], [0], [0], [1], [0, 0, 1, 1], [], []>} : vector<8x32xbf16>, vector<32x32xbf16>, vector<8x32xf32> -> vector<8x32xf32>
    %39 = arith.truncf %38 : vector<8x32xf32> to vector<8x32xbf16>
    %40 = tpu.iota {dimensions = array<i32: 0>} : vector<8x8xi32>
    %41 = tpu.iota {dimensions = array<i32: 1>} : vector<8x8xi32>
    %42 = arith.cmpi sge, %40, %41 : vector<8x8xi32>
    %43 = vector.extract_strided_slice %33 {offsets = [0, 0], sizes = [8, 8], strides = [1, 1]} : vector<8x32xbf16> to vector<8x8xbf16>
    %44 = vector.extract_strided_slice %36 {offsets = [0, 0], sizes = [8, 8], strides = [1, 1]} : vector<8x32xbf16> to vector<8x8xbf16>
    %45 = vector.extract_strided_slice %39 {offsets = [0, 0], sizes = [8, 8], strides = [1, 1]} : vector<8x32xbf16> to vector<8x8xbf16>
    %cst_19 = arith.constant dense<0.000000e+00> : vector<8x8xf32>
    %46 = tpu.matmul %43, %44, %cst_19 {dimension_numbers = #tpu.dot_dimension_numbers<[1], [1], [0], [0], [0, 0, 1, 0], [], []>} : vector<8x8xbf16>, vector<8x8xbf16>, vector<8x8xf32> -> vector<8x8xf32>
    %cst_20 = arith.constant -1.000000e+30 : f32
    %47 = vector.broadcast %cst_20 : f32 to vector<8x8xf32>
    %48 = arith.select %42, %46, %47 : vector<8x8xi1>, vector<8x8xf32>
    %cst_21 = arith.constant dense<0xFF800000> : vector<8xf32>
    %49 = vector.multi_reduction <maximumf>, %48, %cst_21 [1] : vector<8x8xf32> to vector<8xf32>
    %50 = vector.shape_cast %49 : vector<8xf32> to vector<8x1xf32>
    %51 = vector.broadcast %50 : vector<8x1xf32> to vector<8x8xf32>
    %52 = arith.subf %48, %51 : vector<8x8xf32>
    %53 = math.exp %52 : vector<8x8xf32>
    %cst_22 = arith.constant dense<0.000000e+00> : vector<8xf32>
    %54 = vector.multi_reduction <add>, %53, %cst_22 [1] : vector<8x8xf32> to vector<8xf32>
    %55 = vector.shape_cast %54 : vector<8xf32> to vector<8x1xf32>
    %56 = arith.truncf %53 : vector<8x8xf32> to vector<8x8xbf16>
    %cst_23 = arith.constant dense<0.000000e+00> : vector<8x8xf32>
    %57 = tpu.matmul %56, %45, %cst_23 {dimension_numbers = #tpu.dot_dimension_numbers<[1], [0], [0], [1], [0, 0, 1, 1], [], []>} : vector<8x8xbf16>, vector<8x8xbf16>, vector<8x8xf32> -> vector<8x8xf32>
    %58 = tpu.reciprocal %55 {approx = true} : vector<8x1xf32> -> vector<8x1xf32>
    %59 = vector.broadcast %58 : vector<8x1xf32> to vector<8x8xf32>
    %60 = arith.mulf %57, %59 : vector<8x8xf32>
    %61 = arith.truncf %60 : vector<8x8xf32> to vector<8x8xbf16>
    %c0_24 = arith.constant 0 : index
    %c0_25 = arith.constant 0 : index
    %62 = vector.load %arg16[%c0_24, %c0_25] : memref<8x32xbf16, #tpu.memory_space<vmem>>, vector<8x8xbf16>
    tpu.vector_store %arg16[%c0_24, %c0_25], %61 {strides = array<i32>} : memref<8x32xbf16, #tpu.memory_space<vmem>>, vector<8x8xbf16>,
    %63 = vector.extract_strided_slice %33 {offsets = [0, 8], sizes = [8, 8], strides = [1, 1]} : vector<8x32xbf16> to vector<8x8xbf16>
    %64 = vector.extract_strided_slice %36 {offsets = [0, 8], sizes = [8, 8], strides = [1, 1]} : vector<8x32xbf16> to vector<8x8xbf16>
    %65 = vector.extract_strided_slice %39 {offsets = [0, 8], sizes = [8, 8], strides = [1, 1]} : vector<8x32xbf16> to vector<8x8xbf16>
    %cst_26 = arith.constant dense<0.000000e+00> : vector<8x8xf32>
    %66 = tpu.matmul %63, %64, %cst_26 {dimension_numbers = #tpu.dot_dimension_numbers<[1], [1], [0], [0], [0, 0, 1, 0], [], []>} : vector<8x8xbf16>, vector<8x8xbf16>, vector<8x8xf32> -> vector<8x8xf32>
    %cst_27 = arith.constant -1.000000e+30 : f32
    %67 = vector.broadcast %cst_27 : f32 to vector<8x8xf32>
    %68 = arith.select %42, %66, %67 : vector<8x8xi1>, vector<8x8xf32>
    %cst_28 = arith.constant dense<0xFF800000> : vector<8xf32>
    %69 = vector.multi_reduction <maximumf>, %68, %cst_28 [1] : vector<8x8xf32> to vector<8xf32>
    %70 = vector.shape_cast %69 : vector<8xf32> to vector<8x1xf32>
    %71 = vector.broadcast %70 : vector<8x1xf32> to vector<8x8xf32>
    %72 = arith.subf %68, %71 : vector<8x8xf32>
    %73 = math.exp %72 : vector<8x8xf32>
    %cst_29 = arith.constant dense<0.000000e+00> : vector<8xf32>
    %74 = vector.multi_reduction <add>, %73, %cst_29 [1] : vector<8x8xf32> to vector<8xf32>
    %75 = vector.shape_cast %74 : vector<8xf32> to vector<8x1xf32>
    %76 = arith.truncf %73 : vector<8x8xf32> to vector<8x8xbf16>
    %cst_30 = arith.constant dense<0.000000e+00> : vector<8x8xf32>
    %77 = tpu.matmul %76, %65, %cst_30 {dimension_numbers = #tpu.dot_dimension_numbers<[1], [0], [0], [1], [0, 0, 1, 1], [], []>} : vector<8x8xbf16>, vector<8x8xbf16>, vector<8x8xf32> -> vector<8x8xf32>
    %78 = tpu.reciprocal %75 {approx = true} : vector<8x1xf32> -> vector<8x1xf32>
    %79 = vector.broadcast %78 : vector<8x1xf32> to vector<8x8xf32>
    %80 = arith.mulf %77, %79 : vector<8x8xf32>
    %81 = arith.truncf %80 : vector<8x8xf32> to vector<8x8xbf16>
    %c0_31 = arith.constant 0 : index
    %c8 = arith.constant 8 : index
    %82 = vector.load %arg16[%c0_31, %c8] : memref<8x32xbf16, #tpu.memory_space<vmem>>, vector<8x8xbf16>
    tpu.vector_store %arg16[%c0_31, %c8], %81 {strides = array<i32>} : memref<8x32xbf16, #tpu.memory_space<vmem>>, vector<8x8xbf16>,
    %83 = vector.extract_strided_slice %33 {offsets = [0, 16], sizes = [8, 8], strides = [1, 1]} : vector<8x32xbf16> to vector<8x8xbf16>
    %84 = vector.extract_strided_slice %36 {offsets = [0, 16], sizes = [8, 8], strides = [1, 1]} : vector<8x32xbf16> to vector<8x8xbf16>
    %85 = vector.extract_strided_slice %39 {offsets = [0, 16], sizes = [8, 8], strides = [1, 1]} : vector<8x32xbf16> to vector<8x8xbf16>
    %cst_32 = arith.constant dense<0.000000e+00> : vector<8x8xf32>
    %86 = tpu.matmul %83, %84, %cst_32 {dimension_numbers = #tpu.dot_dimension_numbers<[1], [1], [0], [0], [0, 0, 1, 0], [], []>} : vector<8x8xbf16>, vector<8x8xbf16>, vector<8x8xf32> -> vector<8x8xf32>
    %cst_33 = arith.constant -1.000000e+30 : f32
    %87 = vector.broadcast %cst_33 : f32 to vector<8x8xf32>
    %88 = arith.select %42, %86, %87 : vector<8x8xi1>, vector<8x8xf32>
    %cst_34 = arith.constant dense<0xFF800000> : vector<8xf32>
    %89 = vector.multi_reduction <maximumf>, %88, %cst_34 [1] : vector<8x8xf32> to vector<8xf32>
    %90 = vector.shape_cast %89 : vector<8xf32> to vector<8x1xf32>
    %91 = vector.broadcast %90 : vector<8x1xf32> to vector<8x8xf32>
    %92 = arith.subf %88, %91 : vector<8x8xf32>
    %93 = math.exp %92 : vector<8x8xf32>
    %cst_35 = arith.constant dense<0.000000e+00> : vector<8xf32>
    %94 = vector.multi_reduction <add>, %93, %cst_35 [1] : vector<8x8xf32> to vector<8xf32>
    %95 = vector.shape_cast %94 : vector<8xf32> to vector<8x1xf32>
    %96 = arith.truncf %93 : vector<8x8xf32> to vector<8x8xbf16>
    %cst_36 = arith.constant dense<0.000000e+00> : vector<8x8xf32>
    %97 = tpu.matmul %96, %85, %cst_36 {dimension_numbers = #tpu.dot_dimension_numbers<[1], [0], [0], [1], [0, 0, 1, 1], [], []>} : vector<8x8xbf16>, vector<8x8xbf16>, vector<8x8xf32> -> vector<8x8xf32>
    %98 = tpu.reciprocal %95 {approx = true} : vector<8x1xf32> -> vector<8x1xf32>
    %99 = vector.broadcast %98 : vector<8x1xf32> to vector<8x8xf32>
    %100 = arith.mulf %97, %99 : vector<8x8xf32>
    %101 = arith.truncf %100 : vector<8x8xf32> to vector<8x8xbf16>
    %c0_37 = arith.constant 0 : index
    %c16 = arith.constant 16 : index
    %102 = vector.load %arg16[%c0_37, %c16] : memref<8x32xbf16, #tpu.memory_space<vmem>>, vector<8x8xbf16>
    tpu.vector_store %arg16[%c0_37, %c16], %101 {strides = array<i32>} : memref<8x32xbf16, #tpu.memory_space<vmem>>, vector<8x8xbf16>,
    %103 = vector.extract_strided_slice %33 {offsets = [0, 24], sizes = [8, 8], strides = [1, 1]} : vector<8x32xbf16> to vector<8x8xbf16>
    %104 = vector.extract_strided_slice %36 {offsets = [0, 24], sizes = [8, 8], strides = [1, 1]} : vector<8x32xbf16> to vector<8x8xbf16>
    %105 = vector.extract_strided_slice %39 {offsets = [0, 24], sizes = [8, 8], strides = [1, 1]} : vector<8x32xbf16> to vector<8x8xbf16>
    %cst_38 = arith.constant dense<0.000000e+00> : vector<8x8xf32>
    %106 = tpu.matmul %103, %104, %cst_38 {dimension_numbers = #tpu.dot_dimension_numbers<[1], [1], [0], [0], [0, 0, 1, 0], [], []>} : vector<8x8xbf16>, vector<8x8xbf16>, vector<8x8xf32> -> vector<8x8xf32>
    %cst_39 = arith.constant -1.000000e+30 : f32
    %107 = vector.broadcast %cst_39 : f32 to vector<8x8xf32>
    %108 = arith.select %42, %106, %107 : vector<8x8xi1>, vector<8x8xf32>
    %cst_40 = arith.constant dense<0xFF800000> : vector<8xf32>
    %109 = vector.multi_reduction <maximumf>, %108, %cst_40 [1] : vector<8x8xf32> to vector<8xf32>
    %110 = vector.shape_cast %109 : vector<8xf32> to vector<8x1xf32>
    %111 = vector.broadcast %110 : vector<8x1xf32> to vector<8x8xf32>
    %112 = arith.subf %108, %111 : vector<8x8xf32>
    %113 = math.exp %112 : vector<8x8xf32>
    %cst_41 = arith.constant dense<0.000000e+00> : vector<8xf32>
    %114 = vector.multi_reduction <add>, %113, %cst_41 [1] : vector<8x8xf32> to vector<8xf32>
    %115 = vector.shape_cast %114 : vector<8xf32> to vector<8x1xf32>
    %116 = arith.truncf %113 : vector<8x8xf32> to vector<8x8xbf16>
    %cst_42 = arith.constant dense<0.000000e+00> : vector<8x8xf32>
    %117 = tpu.matmul %116, %105, %cst_42 {dimension_numbers = #tpu.dot_dimension_numbers<[1], [0], [0], [1], [0, 0, 1, 1], [], []>} : vector<8x8xbf16>, vector<8x8xbf16>, vector<8x8xf32> -> vector<8x8xf32>
    %118 = tpu.reciprocal %115 {approx = true} : vector<8x1xf32> -> vector<8x1xf32>
    %119 = vector.broadcast %118 : vector<8x1xf32> to vector<8x8xf32>
    %120 = arith.mulf %117, %119 : vector<8x8xf32>
    %121 = arith.truncf %120 : vector<8x8xf32> to vector<8x8xbf16>
    %c0_43 = arith.constant 0 : index
    %c24 = arith.constant 24 : index
    %122 = vector.load %arg16[%c0_43, %c24] : memref<8x32xbf16, #tpu.memory_space<vmem>>, vector<8x8xbf16>
    tpu.vector_store %arg16[%c0_43, %c24], %121 {strides = array<i32>} : memref<8x32xbf16, #tpu.memory_space<vmem>>, vector<8x8xbf16>,
    %c0_44 = arith.constant 0 : index
    %c0_45 = arith.constant 0 : index
    %123 = vector.load %arg16[%c0_44, %c0_45] : memref<8x32xbf16, #tpu.memory_space<vmem>>, vector<8x32xbf16>
    %c0_46 = arith.constant 0 : index
    %c0_47 = arith.constant 0 : index
    %124 = vector.load %arg7[%c0_46, %c0_47] : memref<32x32xbf16, #tpu.memory_space<vmem>>, vector<32x32xbf16>
    %cst_48 = arith.constant dense<0.000000e+00> : vector<8x32xf32>
    %125 = tpu.matmul %123, %124, %cst_48 {dimension_numbers = #tpu.dot_dimension_numbers<[1], [0], [0], [1], [0, 0, 1, 1], [], []>} : vector<8x32xbf16>, vector<32x32xbf16>, vector<8x32xf32> -> vector<8x32xf32>
    %c0_49 = arith.constant 0 : index
    %c0_50 = arith.constant 0 : index
    %126 = vector.load %arg8[%c0_49, %c0_50] : memref<1x32xf32, #tpu.memory_space<vmem>>, vector<1x32xf32>
    %127 = vector.shape_cast %126 : vector<1x32xf32> to vector<32xf32>
    %128 = vector.shape_cast %127 : vector<32xf32> to vector<1x32xf32>
    %129 = vector.broadcast %128 : vector<1x32xf32> to vector<8x32xf32>
    %130 = arith.addf %125, %129 : vector<8x32xf32>
    %131 = arith.addf %1, %130 : vector<8x32xf32>
    %c0_51 = arith.constant 0 : index
    %c0_52 = arith.constant 0 : index
    %132 = vector.load %arg9[%c0_51, %c0_52] : memref<1x32xf32, #tpu.memory_space<vmem>>, vector<1x32xf32>
    %133 = vector.shape_cast %132 : vector<1x32xf32> to vector<32xf32>
    %c0_53 = arith.constant 0 : index
    %c0_54 = arith.constant 0 : index
    %134 = vector.load %arg10[%c0_53, %c0_54] : memref<1x32xf32, #tpu.memory_space<vmem>>, vector<1x32xf32>
    %135 = vector.shape_cast %134 : vector<1x32xf32> to vector<32xf32>
    %cst_55 = arith.constant dense<0.000000e+00> : vector<8xf32>
    %136 = vector.multi_reduction <add>, %131, %cst_55 [1] : vector<8x32xf32> to vector<8xf32>
    %137 = vector.shape_cast %136 : vector<8xf32> to vector<8x1xf32>
    %cst_56 = arith.constant 3.200000e+01 : f32
    %138 = vector.broadcast %cst_56 : f32 to vector<8x1xf32>
    %139 = arith.divf %137, %138 : vector<8x1xf32>
    %140 = vector.broadcast %139 : vector<8x1xf32> to vector<8x32xf32>
    %141 = arith.subf %131, %140 : vector<8x32xf32>
    %142 = arith.mulf %141, %141 : vector<8x32xf32>
    %cst_57 = arith.constant dense<0.000000e+00> : vector<8xf32>
    %143 = vector.multi_reduction <add>, %142, %cst_57 [1] : vector<8x32xf32> to vector<8xf32>
    %144 = vector.shape_cast %143 : vector<8xf32> to vector<8x1xf32>
    %cst_58 = arith.constant 3.200000e+01 : f32
    %145 = vector.broadcast %cst_58 : f32 to vector<8x1xf32>
    %146 = arith.divf %144, %145 : vector<8x1xf32>
    %147 = vector.broadcast %139 : vector<8x1xf32> to vector<8x32xf32>
    %148 = arith.subf %131, %147 : vector<8x32xf32>
    %cst_59 = arith.constant 9.99999974E-6 : f32
    %149 = vector.broadcast %cst_59 : f32 to vector<8x1xf32>
    %150 = arith.addf %146, %149 : vector<8x1xf32>
    %151 = math.sqrt %150 : vector<8x1xf32>
    %152 = vector.broadcast %151 : vector<8x1xf32> to vector<8x32xf32>
    %153 = arith.divf %148, %152 : vector<8x32xf32>
    %154 = vector.shape_cast %133 : vector<32xf32> to vector<1x32xf32>
    %155 = vector.broadcast %154 : vector<1x32xf32> to vector<8x32xf32>
    %156 = arith.mulf %155, %153 : vector<8x32xf32>
    %157 = vector.shape_cast %135 : vector<32xf32> to vector<1x32xf32>
    %158 = vector.broadcast %157 : vector<1x32xf32> to vector<8x32xf32>
    %159 = arith.addf %156, %158 : vector<8x32xf32>
    %160 = arith.truncf %159 : vector<8x32xf32> to vector<8x32xbf16>
    %c0_60 = arith.constant 0 : index
    %c0_61 = arith.constant 0 : index
    %161 = vector.load %arg12[%c0_60, %c0_61] : memref<1x128xf32, #tpu.memory_space<vmem>>, vector<1x128xf32>
    %c0_62 = arith.constant 0 : index
    %c0_63 = arith.constant 0 : index
    %162 = vector.load %arg14[%c0_62, %c0_63] : memref<1x32xf32, #tpu.memory_space<vmem>>, vector<1x32xf32>
    %163 = vector.shape_cast %162 : vector<1x32xf32> to vector<32xf32>
    %164 = vector.shape_cast %163 : vector<32xf32> to vector<1x32xf32>
    %165 = vector.broadcast %164 : vector<1x32xf32> to vector<8x32xf32>
    %166 = arith.addf %131, %165 : vector<8x32xf32>
    %c0_64 = arith.constant 0 : index
    %c0_65 = arith.constant 0 : index
    %167 = vector.load %arg11[%c0_64, %c0_65] : memref<32x128xbf16, #tpu.memory_space<vmem>>, vector<32x128xbf16>
    %cst_66 = arith.constant dense<0.000000e+00> : vector<8x128xf32>
    %168 = tpu.matmul %160, %167, %cst_66 {dimension_numbers = #tpu.dot_dimension_numbers<[1], [0], [0], [1], [0, 0, 1, 1], [], []>} : vector<8x32xbf16>, vector<32x128xbf16>, vector<8x128xf32> -> vector<8x128xf32>
    %169 = vector.broadcast %161 : vector<1x128xf32> to vector<8x128xf32>
    %170 = arith.addf %168, %169 : vector<8x128xf32>
    %cst_67 = arith.constant 0.636619746 : f32
    %171 = math.sqrt %cst_67 : f32
    %cst_68 = arith.constant 5.000000e-01 : f32
    %172 = vector.broadcast %cst_68 : f32 to vector<8x128xf32>
    %173 = arith.mulf %172, %170 : vector<8x128xf32>
    %cst_69 = arith.constant 4.471500e-02 : f32
    %174 = vector.broadcast %cst_69 : f32 to vector<8x128xf32>
    %175 = arith.mulf %174, %170 : vector<8x128xf32>
    %176 = arith.mulf %175, %170 : vector<8x128xf32>
    %177 = arith.mulf %176, %170 : vector<8x128xf32>
    %178 = arith.addf %170, %177 : vector<8x128xf32>
    %179 = vector.broadcast %171 : f32 to vector<8x128xf32>
    %180 = arith.mulf %179, %178 : vector<8x128xf32>
    %181 = math.tanh %180 : vector<8x128xf32>
    %cst_70 = arith.constant 1.000000e+00 : f32
    %182 = vector.broadcast %cst_70 : f32 to vector<8x128xf32>
    %183 = arith.addf %182, %181 : vector<8x128xf32>
    %184 = arith.mulf %173, %183 : vector<8x128xf32>
    %185 = arith.truncf %184 : vector<8x128xf32> to vector<8x128xbf16>
    %c0_71 = arith.constant 0 : index
    %c0_72 = arith.constant 0 : index
    %186 = vector.load %arg13[%c0_71, %c0_72] : memref<128x32xbf16, #tpu.memory_space<vmem>>, vector<128x32xbf16>
    %cst_73 = arith.constant dense<0.000000e+00> : vector<8x32xf32>
    %187 = tpu.matmul %185, %186, %cst_73 {dimension_numbers = #tpu.dot_dimension_numbers<[1], [0], [0], [1], [0, 0, 1, 1], [], []>} : vector<8x128xbf16>, vector<128x32xbf16>, vector<8x32xf32> -> vector<8x32xf32>
    %188 = arith.addf %166, %187 : vector<8x32xf32>
    %c0_74 = arith.constant 0 : index
    %c0_75 = arith.constant 0 : index
    %c0_76 = arith.constant 0 : index
    %189 = vector.load %arg15[%c0_74, %c0_75, %c0_76] : memref<1x8x32xf32, #tpu.memory_space<vmem>>, vector<1x8x32xf32>
    %190 = vector.shape_cast %189 : vector<1x8x32xf32> to vector<8x32xf32>
    %191 = vector.shape_cast %188 : vector<8x32xf32> to vector<1x8x32xf32>
    tpu.vector_store %arg15[%c0_74, %c0_75, %c0_76], %191 {strides = array<i32>} : memref<1x8x32xf32, #tpu.memory_space<vmem>>, vector<1x8x32xf32>,
    return
  }
  func.func @transform_0(%arg0: i32) -> (i32, i32, i32) {
    %c0_i32 = arith.constant 0 : i32
    %c0_i32_0 = arith.constant 0 : i32
    %c0_i32_1 = arith.constant 0 : i32
    return %arg0, %c0_i32, %c0_i32_0 : i32, i32, i32
  }
  func.func @transform_1(%arg0: i32) -> (i32, i32) {
    %c0_i32 = arith.constant 0 : i32
    %c0_i32_0 = arith.constant 0 : i32
    %c0_i32_1 = arith.constant 0 : i32
    return %c0_i32, %c0_i32_0 : i32, i32
  }
  func.func @transform_2(%arg0: i32) -> (i32, i32) {
    %c0_i32 = arith.constant 0 : i32
    %c0_i32_0 = arith.constant 0 : i32
    %c0_i32_1 = arith.constant 0 : i32
    return %c0_i32, %c0_i32_0 : i32, i32
  }
  func.func @transform_3(%arg0: i32) -> (i32, i32) {
    %c0_i32 = arith.constant 0 : i32
    %c0_i32_0 = arith.constant 0 : i32
    %c0_i32_1 = arith.constant 0 : i32
    return %c0_i32, %c0_i32_0 : i32, i32
  }
  func.func @transform_4(%arg0: i32) -> (i32, i32) {
    %c0_i32 = arith.constant 0 : i32
    %c0_i32_0 = arith.constant 0 : i32
    %c0_i32_1 = arith.constant 0 : i32
    return %c0_i32, %c0_i32_0 : i32, i32
  }
  func.func @transform_5(%arg0: i32) -> (i32, i32) {
    %c0_i32 = arith.constant 0 : i32
    %c0_i32_0 = arith.constant 0 : i32
    %c0_i32_1 = arith.constant 0 : i32
    return %c0_i32, %c0_i32_0 : i32, i32
  }
  func.func @transform_6(%arg0: i32) -> (i32, i32) {
    %c0_i32 = arith.constant 0 : i32
    %c0_i32_0 = arith.constant 0 : i32
    %c0_i32_1 = arith.constant 0 : i32
    return %c0_i32, %c0_i32_0 : i32, i32
  }
  func.func @transform_7(%arg0: i32) -> (i32, i32) {
    %c0_i32 = arith.constant 0 : i32
    %c0_i32_0 = arith.constant 0 : i32
    %c0_i32_1 = arith.constant 0 : i32
    return %c0_i32, %c0_i32_0 : i32, i32
  }
  func.func @transform_8(%arg0: i32) -> (i32, i32) {
    %c0_i32 = arith.constant 0 : i32
    %c0_i32_0 = arith.constant 0 : i32
    %c0_i32_1 = arith.constant 0 : i32
    return %c0_i32, %c0_i32_0 : i32, i32
  }
  func.func @transform_9(%arg0: i32) -> (i32, i32) {
    %c0_i32 = arith.constant 0 : i32
    %c0_i32_0 = arith.constant 0 : i32
    %c0_i32_1 = arith.constant 0 : i32
    return %c0_i32, %c0_i32_0 : i32, i32
  }
  func.func @transform_10(%arg0: i32) -> (i32, i32) {
    %c0_i32 = arith.constant 0 : i32
    %c0_i32_0 = arith.constant 0 : i32
    %c0_i32_1 = arith.constant 0 : i32
    return %c0_i32, %c0_i32_0 : i32, i32
  }
  func.func @transform_11(%arg0: i32) -> (i32, i32) {
    %c0_i32 = arith.constant 0 : i32
    %c0_i32_0 = arith.constant 0 : i32
    %c0_i32_1 = arith.constant 0 : i32
    return %c0_i32, %c0_i32_0 : i32, i32
  }
  func.func @transform_12(%arg0: i32) -> (i32, i32) {
    %c0_i32 = arith.constant 0 : i32
    %c0_i32_0 = arith.constant 0 : i32
    %c0_i32_1 = arith.constant 0 : i32
    return %c0_i32, %c0_i32_0 : i32, i32
  }
  func.func @transform_13(%arg0: i32) -> (i32, i32) {
    %c0_i32 = arith.constant 0 : i32
    %c0_i32_0 = arith.constant 0 : i32
    %c0_i32_1 = arith.constant 0 : i32
    return %c0_i32, %c0_i32_0 : i32, i32
  }
  func.func @transform_14(%arg0: i32) -> (i32, i32, i32) {
    %c0_i32 = arith.constant 0 : i32
    %c0_i32_0 = arith.constant 0 : i32
    %c0_i32_1 = arith.constant 0 : i32
    return %arg0, %c0_i32, %c0_i32_0 : i32, i32, i32
  }
}

</mosaic_0001>

<llo_original>
// kernel: tpu_custom_call.1
$region0: #{tpu_custom_call.1}
  #allocation0 [shape = 'u32[]', space=smem, size = 0x4, offset = 0x4, fixed_abs, tag = 'smem constant byte address 0x4 - core index']
  #allocation1 [shape = 'u32[144,128]{1,0:T(1,128)}', space=vmem, size = 0x12000, scoped, tag = 'internal scratch']
  #allocation2 [shape = 'bf16[8,32]{1,0:T(8,128)(2,1)}', space=vmem, size = 0x800, scoped, tag = 'scratch operand']
  %s0 = inlined_call_operand.hbm [shape: f32[2,8,32], index: 0, kind: input, shape index: {}]
  %s1 = inlined_call_operand.hbm [shape: f32[1,32], index: 1, kind: input, shape index: {}]
  %s2 = inlined_call_operand.hbm [shape: f32[1,32], index: 2, kind: input, shape index: {}]
  %s3 = inlined_call_operand.hbm [shape: bf16[32,32], index: 3, kind: input, shape index: {}]
  %s4 = inlined_call_operand.hbm [shape: bf16[32,32], index: 4, kind: input, shape index: {}]
  %s5 = inlined_call_operand.hbm [shape: bf16[32,32], index: 5, kind: input, shape index: {}]
  %s6 = inlined_call_operand.hbm [shape: bf16[32,32], index: 6, kind: input, shape index: {}]
  %s7 = inlined_call_operand.hbm [shape: f32[1,32], index: 7, kind: input, shape index: {}]
  %s8 = inlined_call_operand.hbm [shape: f32[1,32], index: 8, kind: input, shape index: {}]
  %s9 = inlined_call_operand.hbm [shape: f32[1,32], index: 9, kind: input, shape index: {}]
  %s10 = inlined_call_operand.hbm [shape: bf16[32,128], index: 10, kind: input, shape index: {}]
  %s11 = inlined_call_operand.hbm [shape: f32[1,128], index: 11, kind: input, shape index: {}]
  %s12 = inlined_call_operand.hbm [shape: bf16[128,32], index: 12, kind: input, shape index: {}]
  %s13 = inlined_call_operand.hbm [shape: f32[1,32], index: 13, kind: input, shape index: {}]
  %s14 = inlined_call_operand.hbm [shape: f32[2,8,32], index: 14, kind: output, shape index: {}]
  %s15 = sld [smem:[#allocation0]]
  $region145: #{tpu_custom_call.1} parent=0
    _
  %s17 = ssub.s32 1, %s15
  %s18 = scalar_select 0, %s17, %s15
  $region1: #{tpu_custom_call.1} parent=0
    #allocation3 [shape = 'u8[8192]{0}', space=vmem, size = 0x2000, scoped, tag = 'input window, operand 0']
    #allocation4 [shape = 's32[2]{0}', space=sflag, size = 0x8, scoped, tag = 'scoped memory for tpu_custom_call.1']
    #allocation5 [shape = 's32[2]{0}', space=sflag, size = 0x8, scoped, tag = 'scoped memory for tpu_custom_call.1']
    #allocation6 [shape = 'u8[512]{0}', space=vmem, size = 0x400, scoped, tag = 'input window, operand 1, single buffered']
    #allocation7 [shape = 's32[1]{0}', space=sflag, size = 0x4, scoped, tag = 'scoped memory for tpu_custom_call.1']
    #allocation8 [shape = 'u8[512]{0}', space=vmem, size = 0x400, scoped, tag = 'input window, operand 2, single buffered']
    #allocation9 [shape = 'u8[8192]{0}', space=vmem, size = 0x2000, scoped, tag = 'input window, operand 3, single buffered']
    #allocation10 [shape = 's32[1]{0}', space=sflag, size = 0x4, scoped, tag = 'scoped memory for tpu_custom_call.1']
    #allocation11 [shape = 'u8[8192]{0}', space=vmem, size = 0x2000, scoped, tag = 'input window, operand 4, single buffered']
    #allocation12 [shape = 'u8[8192]{0}', space=vmem, size = 0x2000, scoped, tag = 'input window, operand 5, single buffered']
    #allocation13 [shape = 's32[1]{0}', space=sflag, size = 0x4, scoped, tag = 'scoped memory for tpu_custom_call.1']
    #allocation14 [shape = 'u8[8192]{0}', space=vmem, size = 0x2000, scoped, tag = 'input window, operand 6, single buffered']
    #allocation15 [shape = 'u8[512]{0}', space=vmem, size = 0x400, scoped, tag = 'input window, operand 7, single buffered']
    #allocation16 [shape = 's32[1]{0}', space=sflag, size = 0x4, scoped, tag = 'scoped memory for tpu_custom_call.1']
    #allocation17 [shape = 'u8[512]{0}', space=vmem, size = 0x400, scoped, tag = 'input window, operand 8, single buffered']
    #allocation18 [shape = 'u8[512]{0}', space=vmem, size = 0x400, scoped, tag = 'input window, operand 9, single buffered']
    #allocation19 [shape = 's32[1]{0}', space=sflag, size = 0x4, scoped, tag = 'scoped memory for tpu_custom_call.1']
    #allocation20 [shape = 'u8[8192]{0}', space=vmem, size = 0x2000, scoped, tag = 'input window, operand 10, single buffered']
    #allocation21 [shape = 'u8[512]{0}', space=vmem, size = 0x400, scoped, tag = 'input window, operand 11, single buffered']
    #allocation22 [shape = 's32[1]{0}', space=sflag, size = 0x4, scoped, tag = 'scoped memory for tpu_custom_call.1']
    #allocation23 [shape = 'u8[32768]{0}', space=vmem, size = 0x8000, scoped, tag = 'input window, operand 12, single buffered']
    #allocation24 [shape = 'u8[512]{0}', space=vmem, size = 0x400, scoped, tag = 'input window, operand 13, single buffered']
    #allocation25 [shape = 's32[1]{0}', space=sflag, size = 0x4, scoped, tag = 'scoped memory for tpu_custom_call.1']
    #allocation26 [shape = 'u8[8192]{0}', space=vmem, size = 0x2000, scoped, tag = 'output window, operand 0']
    %19 = vsyncpa [#allocation4], 0
    %s20 = scalar_lea.sflag [#allocation4], 1
    %21 = vsyncpa %s20, 0
    %22 = vsyncpa [#allocation7], 0
    %23 = vsyncpa [#allocation10], 0
    %24 = vsyncpa [#allocation13], 0
    %25 = vsyncpa [#allocation16], 0
    %26 = vsyncpa [#allocation19], 0
    %27 = vsyncpa [#allocation22], 0
    %28 = vsyncpa [#allocation25], 0
    %29 = vsyncpa [#allocation5], 0
    %s30 = scalar_lea.sflag [#allocation5], 1
    %31 = vsyncpa %s30, 0
    loop: start=0, step=1, limit=4
    $region2: #{tpu_custom_call.1} parent=1 // loop_pre_header
      _
    $region3: #{tpu_custom_call.1} parent=1 // loop_header
      %s33 = sphi 0, %s37
      %p34 = scmp.ge.s32.totalorder %s33, 4
      %s43 = sphi 0, %s45
      %s46 = sphi 0, %s43
      %s47 = sphi 0, %s46
      %s63 = sphi 0, %s47
      %s67 = sphi 0, %s67
      %s69 = sphi 0, %s67
      %s70 = sphi 0, %s69
      %s84 = sphi 0, %s70
      %s88 = sphi 0, %s88
      %s90 = sphi 0, %s88
      %s91 = sphi 0, %s90
      %s105 = sphi 0, %s91
      %s109 = sphi 0, %s109
      %s111 = sphi 0, %s109
      %s112 = sphi 0, %s111
      %s126 = sphi 0, %s112
      %s130 = sphi 0, %s130
      %s132 = sphi 0, %s130
      %s133 = sphi 0, %s132
      %s147 = sphi 0, %s133
      %s151 = sphi 0, %s151
      %s153 = sphi 0, %s151
      %s154 = sphi 0, %s153
      %s168 = sphi 0, %s154
      %s172 = sphi 0, %s172
      %s174 = sphi 0, %s172
      %s175 = sphi 0, %s174
      %s189 = sphi 0, %s175
      %s193 = sphi 0, %s193
      %s195 = sphi 0, %s193
      %s196 = sphi 0, %s195
      %s210 = sphi 0, %s196
      %s214 = sphi 0, %s214
      %s216 = sphi 0, %s214
      %s217 = sphi 0, %s216
      %s231 = sphi 0, %s217
      %s235 = sphi 0, %s235
      %s237 = sphi 0, %s235
      %s238 = sphi 0, %s237
      %s252 = sphi 0, %s238
      %s256 = sphi 0, %s256
      %s258 = sphi 0, %s256
      %s259 = sphi 0, %s258
      %s273 = sphi 0, %s259
      %s277 = sphi 0, %s277
      %s279 = sphi 0, %s277
      %s280 = sphi 0, %s279
      %s294 = sphi 0, %s280
      %s298 = sphi 0, %s298
      %s300 = sphi 0, %s298
      %s301 = sphi 0, %s300
      %s315 = sphi 0, %s301
      %s319 = sphi 0, %s319
      %s321 = sphi 0, %s319
      %s322 = sphi 0, %s321
      %s336 = sphi 0, %s322
      %s342 = sphi 0, %s344
      %s345 = sphi 0, %s342
      %s346 = sphi 0, %s345
      %s362 = sphi 0, %s346
    $region4: #{tpu_custom_call.1} parent=1 // loop_header_branch
      %36 = sbr.rel (%p34) target = $region8
    $region5: #{tpu_custom_call.1} parent=1 // loop_body
      %s38 = ssub.s32 %s33, 1
      %s39 = ssub.s32 %s33, 2
      %s40 = sadd.s32 %s33, 1
      %s41 = ssub.s32 %s33, %s40
      %p42 = scmp.eq.s32.totalorder %s41, 0
      %s44 = sadd.s32 %s43, 1
      %s45 = scalar_select %p42, %s43, %s44
      %p48 = pneg %p42
      %p49 = scmp.eq.s32.totalorder %s33, 1
      %p50 = por %p48, %p49
      %p51 = scmp.ne.s32.totalorder %s43, %s46
      %p52 = scmp.eq.s32.totalorder %s33, 0
      %p53 = por %p51, %p52
      %p54 = scmp.ne.s32.totalorder %s43, %s46
      %p55 = scmp.eq.s32.totalorder %s38, 1
      %p56 = por %p54, %p55
      %p57 = scmp.ne.s32.totalorder %s46, %s47
      %p58 = scmp.eq.s32.totalorder %s38, 0
      %p59 = por %p57, %p58
      %p60 = scmp.ne.s32.totalorder %s46, %s47
      %p61 = scmp.eq.s32.totalorder %s39, 1
      %p62 = por %p60, %p61
      %p64 = scmp.ne.s32.totalorder %s47, %s63
      %p65 = scmp.eq.s32.totalorder %s39, 0
      %p66 = por %p64, %p65
      %s68 = sadd.s32 %s67, 1
      %p71 = scmp.eq.s32.totalorder %s33, 1
      %p72 = scmp.ne.s32.totalorder %s67, %s69
      %p73 = scmp.eq.s32.totalorder %s33, 0
      %p74 = por %p72, %p73
      %p75 = scmp.ne.s32.totalorder %s67, %s69
      %p76 = scmp.eq.s32.totalorder %s38, 1
      %p77 = por %p75, %p76
      %p78 = scmp.ne.s32.totalorder %s69, %s70
      %p79 = scmp.eq.s32.totalorder %s38, 0
      %p80 = por %p78, %p79
      %p81 = scmp.ne.s32.totalorder %s69, %s70
      %p82 = scmp.eq.s32.totalorder %s39, 1
      %p83 = por %p81, %p82
      %p85 = scmp.ne.s32.totalorder %s70, %s84
      %p86 = scmp.eq.s32.totalorder %s39, 0
      %p87 = por %p85, %p86
      %s89 = sadd.s32 %s88, 1
      %p92 = scmp.eq.s32.totalorder %s33, 1
      %p93 = scmp.ne.s32.totalorder %s88, %s90
      %p94 = scmp.eq.s32.totalorder %s33, 0
      %p95 = por %p93, %p94
      %p96 = scmp.ne.s32.totalorder %s88, %s90
      %p97 = scmp.eq.s32.totalorder %s38, 1
      %p98 = por %p96, %p97
      %p99 = scmp.ne.s32.totalorder %s90, %s91
      %p100 = scmp.eq.s32.totalorder %s38, 0
      %p101 = por %p99, %p100
      %p102 = scmp.ne.s32.totalorder %s90, %s91
      %p103 = scmp.eq.s32.totalorder %s39, 1
      %p104 = por %p102, %p103
      %p106 = scmp.ne.s32.totalorder %s91, %s105
      %p107 = scmp.eq.s32.totalorder %s39, 0
      %p108 = por %p106, %p107
      %s110 = sadd.s32 %s109, 1
      %p113 = scmp.eq.s32.totalorder %s33, 1
      %p114 = scmp.ne.s32.totalorder %s109, %s111
      %p115 = scmp.eq.s32.totalorder %s33, 0
      %p116 = por %p114, %p115
      %p117 = scmp.ne.s32.totalorder %s109, %s111
      %p118 = scmp.eq.s32.totalorder %s38, 1
      %p119 = por %p117, %p118
      %p120 = scmp.ne.s32.totalorder %s111, %s112
      %p121 = scmp.eq.s32.totalorder %s38, 0
      %p122 = por %p120, %p121
      %p123 = scmp.ne.s32.totalorder %s111, %s112
      %p124 = scmp.eq.s32.totalorder %s39, 1
      %p125 = por %p123, %p124
      %p127 = scmp.ne.s32.totalorder %s112, %s126
      %p128 = scmp.eq.s32.totalorder %s39, 0
      %p129 = por %p127, %p128
      %s131 = sadd.s32 %s130, 1
      %p134 = scmp.eq.s32.totalorder %s33, 1
      %p135 = scmp.ne.s32.totalorder %s130, %s132
      %p136 = scmp.eq.s32.totalorder %s33, 0
      %p137 = por %p135, %p136
      %p138 = scmp.ne.s32.totalorder %s130, %s132
      %p139 = scmp.eq.s32.totalorder %s38, 1
      %p140 = por %p138, %p139
      %p141 = scmp.ne.s32.totalorder %s132, %s133
      %p142 = scmp.eq.s32.totalorder %s38, 0
      %p143 = por %p141, %p142
      %p144 = scmp.ne.s32.totalorder %s132, %s133
      %p145 = scmp.eq.s32.totalorder %s39, 1
      %p146 = por %p144, %p145
      %p148 = scmp.ne.s32.totalorder %s133, %s147
      %p149 = scmp.eq.s32.totalorder %s39, 0
      %p150 = por %p148, %p149
      %s152 = sadd.s32 %s151, 1
      %p155 = scmp.eq.s32.totalorder %s33, 1
      %p156 = scmp.ne.s32.totalorder %s151, %s153
      %p157 = scmp.eq.s32.totalorder %s33, 0
      %p158 = por %p156, %p157
      %p159 = scmp.ne.s32.totalorder %s151, %s153
      %p160 = scmp.eq.s32.totalorder %s38, 1
      %p161 = por %p159, %p160
      %p162 = scmp.ne.s32.totalorder %s153, %s154
      %p163 = scmp.eq.s32.totalorder %s38, 0
      %p164 = por %p162, %p163
      %p165 = scmp.ne.s32.totalorder %s153, %s154
      %p166 = scmp.eq.s32.totalorder %s39, 1
      %p167 = por %p165, %p166
      %p169 = scmp.ne.s32.totalorder %s154, %s168
      %p170 = scmp.eq.s32.totalorder %s39, 0
      %p171 = por %p169, %p170
      %s173 = sadd.s32 %s172, 1
      %p176 = scmp.eq.s32.totalorder %s33, 1
      %p177 = scmp.ne.s32.totalorder %s172, %s174
      %p178 = scmp.eq.s32.totalorder %s33, 0
      %p179 = por %p177, %p178
      %p180 = scmp.ne.s32.totalorder %s172, %s174
      %p181 = scmp.eq.s32.totalorder %s38, 1
      %p182 = por %p180, %p181
      %p183 = scmp.ne.s32.totalorder %s174, %s175
      %p184 = scmp.eq.s32.totalorder %s38, 0
      %p185 = por %p183, %p184
      %p186 = scmp.ne.s32.totalorder %s174, %s175
      %p187 = scmp.eq.s32.totalorder %s39, 1
      %p188 = por %p186, %p187
      %p190 = scmp.ne.s32.totalorder %s175, %s189
      %p191 = scmp.eq.s32.totalorder %s39, 0
      %p192 = por %p190, %p191
      %s194 = sadd.s32 %s193, 1
      %p197 = scmp.eq.s32.totalorder %s33, 1
      %p198 = scmp.ne.s32.totalorder %s193, %s195
      %p199 = scmp.eq.s32.totalorder %s33, 0
      %p200 = por %p198, %p199
      %p201 = scmp.ne.s32.totalorder %s193, %s195
      %p202 = scmp.eq.s32.totalorder %s38, 1
      %p203 = por %p201, %p202
      %p204 = scmp.ne.s32.totalorder %s195, %s196
      %p205 = scmp.eq.s32.totalorder %s38, 0
      %p206 = por %p204, %p205
      %p207 = scmp.ne.s32.totalorder %s195, %s196
      %p208 = scmp.eq.s32.totalorder %s39, 1
      %p209 = por %p207, %p208
      %p211 = scmp.ne.s32.totalorder %s196, %s210
      %p212 = scmp.eq.s32.totalorder %s39, 0
      %p213 = por %p211, %p212
      %s215 = sadd.s32 %s214, 1
      %p218 = scmp.eq.s32.totalorder %s33, 1
      %p219 = scmp.ne.s32.totalorder %s214, %s216
      %p220 = scmp.eq.s32.totalorder %s33, 0
      %p221 = por %p219, %p220
      %p222 = scmp.ne.s32.totalorder %s214, %s216
      %p223 = scmp.eq.s32.totalorder %s38, 1
      %p224 = por %p222, %p223
      %p225 = scmp.ne.s32.totalorder %s216, %s217
      %p226 = scmp.eq.s32.totalorder %s38, 0
      %p227 = por %p225, %p226
      %p228 = scmp.ne.s32.totalorder %s216, %s217
      %p229 = scmp.eq.s32.totalorder %s39, 1
      %p230 = por %p228, %p229
      %p232 = scmp.ne.s32.totalorder %s217, %s231
      %p233 = scmp.eq.s32.totalorder %s39, 0
      %p234 = por %p232, %p233
      %s236 = sadd.s32 %s235, 1
      %p239 = scmp.eq.s32.totalorder %s33, 1
      %p240 = scmp.ne.s32.totalorder %s235, %s237
      %p241 = scmp.eq.s32.totalorder %s33, 0
      %p242 = por %p240, %p241
      %p243 = scmp.ne.s32.totalorder %s235, %s237
      %p244 = scmp.eq.s32.totalorder %s38, 1
      %p245 = por %p243, %p244
      %p246 = scmp.ne.s32.totalorder %s237, %s238
      %p247 = scmp.eq.s32.totalorder %s38, 0
      %p248 = por %p246, %p247
      %p249 = scmp.ne.s32.totalorder %s237, %s238
      %p250 = scmp.eq.s32.totalorder %s39, 1
      %p251 = por %p249, %p250
      %p253 = scmp.ne.s32.totalorder %s238, %s252
      %p254 = scmp.eq.s32.totalorder %s39, 0
      %p255 = por %p253, %p254
      %s257 = sadd.s32 %s256, 1
      %p260 = scmp.eq.s32.totalorder %s33, 1
      %p261 = scmp.ne.s32.totalorder %s256, %s258
      %p262 = scmp.eq.s32.totalorder %s33, 0
      %p263 = por %p261, %p262
      %p264 = scmp.ne.s32.totalorder %s256, %s258
      %p265 = scmp.eq.s32.totalorder %s38, 1
      %p266 = por %p264, %p265
      %p267 = scmp.ne.s32.totalorder %s258, %s259
      %p268 = scmp.eq.s32.totalorder %s38, 0
      %p269 = por %p267, %p268
      %p270 = scmp.ne.s32.totalorder %s258, %s259
      %p271 = scmp.eq.s32.totalorder %s39, 1
      %p272 = por %p270, %p271
      %p274 = scmp.ne.s32.totalorder %s259, %s273
      %p275 = scmp.eq.s32.totalorder %s39, 0
      %p276 = por %p274, %p275
      %s278 = sadd.s32 %s277, 1
      %p281 = scmp.eq.s32.totalorder %s33, 1
      %p282 = scmp.ne.s32.totalorder %s277, %s279
      %p283 = scmp.eq.s32.totalorder %s33, 0
      %p284 = por %p282, %p283
      %p285 = scmp.ne.s32.totalorder %s277, %s279
      %p286 = scmp.eq.s32.totalorder %s38, 1
      %p287 = por %p285, %p286
      %p288 = scmp.ne.s32.totalorder %s279, %s280
      %p289 = scmp.eq.s32.totalorder %s38, 0
      %p290 = por %p288, %p289
      %p291 = scmp.ne.s32.totalorder %s279, %s280
      %p292 = scmp.eq.s32.totalorder %s39, 1
      %p293 = por %p291, %p292
      %p295 = scmp.ne.s32.totalorder %s280, %s294
      %p296 = scmp.eq.s32.totalorder %s39, 0
      %p297 = por %p295, %p296
      %s299 = sadd.s32 %s298, 1
      %p302 = scmp.eq.s32.totalorder %s33, 1
      %p303 = scmp.ne.s32.totalorder %s298, %s300
      %p304 = scmp.eq.s32.totalorder %s33, 0
      %p305 = por %p303, %p304
      %p306 = scmp.ne.s32.totalorder %s298, %s300
      %p307 = scmp.eq.s32.totalorder %s38, 1
      %p308 = por %p306, %p307
      %p309 = scmp.ne.s32.totalorder %s300, %s301
      %p310 = scmp.eq.s32.totalorder %s38, 0
      %p311 = por %p309, %p310
      %p312 = scmp.ne.s32.totalorder %s300, %s301
      %p313 = scmp.eq.s32.totalorder %s39, 1
      %p314 = por %p312, %p313
      %p316 = scmp.ne.s32.totalorder %s301, %s315
      %p317 = scmp.eq.s32.totalorder %s39, 0
      %p318 = por %p316, %p317
      %s320 = sadd.s32 %s319, 1
      %p323 = scmp.eq.s32.totalorder %s33, 1
      %p324 = scmp.ne.s32.totalorder %s319, %s321
      %p325 = scmp.eq.s32.totalorder %s33, 0
      %p326 = por %p324, %p325
      %p327 = scmp.ne.s32.totalorder %s319, %s321
      %p328 = scmp.eq.s32.totalorder %s38, 1
      %p329 = por %p327, %p328
      %p330 = scmp.ne.s32.totalorder %s321, %s322
      %p331 = scmp.eq.s32.totalorder %s38, 0
      %p332 = por %p330, %p331
      %p333 = scmp.ne.s32.totalorder %s321, %s322
      %p334 = scmp.eq.s32.totalorder %s39, 1
      %p335 = por %p333, %p334
      %p337 = scmp.ne.s32.totalorder %s322, %s336
      %p338 = scmp.eq.s32.totalorder %s39, 0
      %p339 = por %p337, %p338
      %s340 = ssub.s32 %s33, %s40
      %p341 = scmp.eq.s32.totalorder %s340, 0
      %s343 = sadd.s32 %s342, 1
      %s344 = scalar_select %p341, %s342, %s343
      %p347 = pneg %p341
      %p348 = scmp.eq.s32.totalorder %s33, 1
      %p349 = por %p347, %p348
      %p350 = scmp.ne.s32.totalorder %s342, %s345
      %p351 = scmp.eq.s32.totalorder %s33, 0
      %p352 = por %p350, %p351
      %p353 = scmp.ne.s32.totalorder %s342, %s345
      %p354 = scmp.eq.s32.totalorder %s38, 1
      %p355 = por %p353, %p354
      %p356 = scmp.ne.s32.totalorder %s345, %s346
      %p357 = scmp.eq.s32.totalorder %s38, 0
      %p358 = por %p356, %p357
      %p359 = scmp.ne.s32.totalorder %s345, %s346
      %p360 = scmp.eq.s32.totalorder %s39, 1
      %p361 = por %p359, %p360
      %p363 = scmp.ne.s32.totalorder %s346, %s362
      %p364 = scmp.eq.s32.totalorder %s39, 0
      %p365 = por %p363, %p364
      %p366 = scmp.le.s32.totalorder 1, %s33
      %p367 = scmp.lt.s32.totalorder %s33, 3
      %p368 = pnand %p366, %p367
      %p369 = pneg %p368
      // Predicated region
      $region9: #{tpu_custom_call.1} parent=5 // pred_check
        _
      $region10: #{tpu_custom_call.1} parent=5 // pred_check_branch
        %371 = sbr.rel (%p368) target = $region12
      $region11: #{tpu_custom_call.1} parent=5 // pred_region
        %s372 = ssub.s32 %s33, 1
        // Predicated region
        $region13: #{tpu_custom_call.1} parent=11 // pred_check
          %p373 = pneg %p80
        $region14: #{tpu_custom_call.1} parent=11 // pred_check_branch
          %375 = sbr.rel (%p373) target = $region16
        $region15: #{tpu_custom_call.1} parent=11 // pred_region
          %s377 = ssub.s32 16, 16
          %378 = vsyncadd [#allocation7], %s377
          %s380 = sshll.u32 [#allocation6], 4
          %s381 = int_to_ptr.vmem [resolvable:$true] %s380
          %383 = dma.hbm_to_vmem [thread:$0]  %s1, 16, %s381, [#allocation7]
        $region16: #{tpu_custom_call.1} parent=11 // pred_fallthru
          _
        // Predicated region
        $region17: #{tpu_custom_call.1} parent=11 // pred_check
          %p384 = pneg %p101
        $region18: #{tpu_custom_call.1} parent=11 // pred_check_branch
          %386 = sbr.rel (%p384) target = $region20
        $region19: #{tpu_custom_call.1} parent=11 // pred_region
          %s388 = ssub.s32 16, 16
          %389 = vsyncadd [#allocation7], %s388
          %s391 = sshll.u32 [#allocation8], 4
          %s392 = int_to_ptr.vmem [resolvable:$true] %s391
          %394 = dma.hbm_to_vmem [thread:$0]  %s2, 16, %s392, [#allocation7]
        $region20: #{tpu_custom_call.1} parent=11 // pred_fallthru
          _
        // Predicated region
        $region21: #{tpu_custom_call.1} parent=11 // pred_check
          %p395 = pneg %p122
        $region22: #{tpu_custom_call.1} parent=11 // pred_check_branch
          %397 = sbr.rel (%p395) target = $region24
        $region23: #{tpu_custom_call.1} parent=11 // pred_region
          %s399 = ssub.s32 256, 256
          %400 = vsyncadd [#allocation10], %s399
          %s401 = sshll.u32 [#allocation9], 4
          %s402 = int_to_ptr.vmem [resolvable:$true] %s401
          %407 = dma.hbm_to_vmem [thread:$0]  %s3, 256, %s402, [#allocation10], 64, 64, 4
        $region24: #{tpu_custom_call.1} parent=11 // pred_fallthru
          _
        // Predicated region
        $region25: #{tpu_custom_call.1} parent=11 // pred_check
          %p408 = pneg %p143
        $region26: #{tpu_custom_call.1} parent=11 // pred_check_branch
          %410 = sbr.rel (%p408) target = $region28
        $region27: #{tpu_custom_call.1} parent=11 // pred_region
          %s412 = ssub.s32 256, 256
          %413 = vsyncadd [#allocation10], %s412
          %s414 = sshll.u32 [#allocation11], 4
          %s415 = int_to_ptr.vmem [resolvable:$true] %s414
          %420 = dma.hbm_to_vmem [thread:$0]  %s4, 256, %s415, [#allocation10], 64, 64, 4
        $region28: #{tpu_custom_call.1} parent=11 // pred_fallthru
          _
        // Predicated region
        $region29: #{tpu_custom_call.1} parent=11 // pred_check
          %p421 = pneg %p164
        $region30: #{tpu_custom_call.1} parent=11 // pred_check_branch
          %423 = sbr.rel (%p421) target = $region32
        $region31: #{tpu_custom_call.1} parent=11 // pred_region
          %s425 = ssub.s32 256, 256
          %426 = vsyncadd [#allocation13], %s425
          %s427 = sshll.u32 [#allocation12], 4
          %s428 = int_to_ptr.vmem [resolvable:$true] %s427
          %433 = dma.hbm_to_vmem [thread:$0]  %s5, 256, %s428, [#allocation13], 64, 64, 4
        $region32: #{tpu_custom_call.1} parent=11 // pred_fallthru
          _
        // Predicated region
        $region33: #{tpu_custom_call.1} parent=11 // pred_check
          %p434 = pneg %p185
        $region34: #{tpu_custom_call.1} parent=11 // pred_check_branch
          %436 = sbr.rel (%p434) target = $region36
        $region35: #{tpu_custom_call.1} parent=11 // pred_region
          %s438 = ssub.s32 256, 256
          %439 = vsyncadd [#allocation13], %s438
          %s440 = sshll.u32 [#allocation14], 4
          %s441 = int_to_ptr.vmem [resolvable:$true] %s440
          %446 = dma.hbm_to_vmem [thread:$0]  %s6, 256, %s441, [#allocation13], 64, 64, 4
        $region36: #{tpu_custom_call.1} parent=11 // pred_fallthru
          _
        // Predicated region
        $region37: #{tpu_custom_call.1} parent=11 // pred_check
          %p447 = pneg %p206
        $region38: #{tpu_custom_call.1} parent=11 // pred_check_branch
          %449 = sbr.rel (%p447) target = $region40
        $region39: #{tpu_custom_call.1} parent=11 // pred_region
          %s451 = ssub.s32 16, 16
          %452 = vsyncadd [#allocation16], %s451
          %s454 = sshll.u32 [#allocation15], 4
          %s455 = int_to_ptr.vmem [resolvable:$true] %s454
          %457 = dma.hbm_to_vmem [thread:$0]  %s7, 16, %s455, [#allocation16]
        $region40: #{tpu_custom_call.1} parent=11 // pred_fallthru
          _
        // Predicated region
        $region41: #{tpu_custom_call.1} parent=11 // pred_check
          %p458 = pneg %p227
        $region42: #{tpu_custom_call.1} parent=11 // pred_check_branch
          %460 = sbr.rel (%p458) target = $region44
        $region43: #{tpu_custom_call.1} parent=11 // pred_region
          %s462 = ssub.s32 16, 16
          %463 = vsyncadd [#allocation16], %s462
          %s465 = sshll.u32 [#allocation17], 4
          %s466 = int_to_ptr.vmem [resolvable:$true] %s465
          %468 = dma.hbm_to_vmem [thread:$0]  %s8, 16, %s466, [#allocation16]
        $region44: #{tpu_custom_call.1} parent=11 // pred_fallthru
          _
        // Predicated region
        $region45: #{tpu_custom_call.1} parent=11 // pred_check
          %p469 = pneg %p248
        $region46: #{tpu_custom_call.1} parent=11 // pred_check_branch
          %471 = sbr.rel (%p469) target = $region48
        $region47: #{tpu_custom_call.1} parent=11 // pred_region
          %s473 = ssub.s32 16, 16
          %474 = vsyncadd [#allocation19], %s473
          %s476 = sshll.u32 [#allocation18], 4
          %s477 = int_to_ptr.vmem [resolvable:$true] %s476
          %479 = dma.hbm_to_vmem [thread:$0]  %s9, 16, %s477, [#allocation19]
        $region48: #{tpu_custom_call.1} parent=11 // pred_fallthru
          _
        // Predicated region
        $region49: #{tpu_custom_call.1} parent=11 // pred_check
          %p480 = pneg %p269
        $region50: #{tpu_custom_call.1} parent=11 // pred_check_branch
          %482 = sbr.rel (%p480) target = $region52
        $region51: #{tpu_custom_call.1} parent=11 // pred_region
          %s484 = ssub.s32 256, 256
          %485 = vsyncadd [#allocation19], %s484
          %s486 = sshll.u32 [#allocation20], 4
          %s487 = int_to_ptr.vmem [resolvable:$true] %s486
          %492 = dma.hbm_to_vmem [thread:$0]  %s10, 256, %s487, [#allocation19], 64, 64, 4
        $region52: #{tpu_custom_call.1} parent=11 // pred_fallthru
          _
        // Predicated region
        $region53: #{tpu_custom_call.1} parent=11 // pred_check
          %p493 = pneg %p290
        $region54: #{tpu_custom_call.1} parent=11 // pred_check_branch
          %495 = sbr.rel (%p493) target = $region56
        $region55: #{tpu_custom_call.1} parent=11 // pred_region
          %s497 = ssub.s32 16, 16
          %498 = vsyncadd [#allocation22], %s497
          %s500 = sshll.u32 [#allocation21], 4
          %s501 = int_to_ptr.vmem [resolvable:$true] %s500
          %503 = dma.hbm_to_vmem [thread:$0]  %s11, 16, %s501, [#allocation22]
        $region56: #{tpu_custom_call.1} parent=11 // pred_fallthru
          _
        // Predicated region
        $region57: #{tpu_custom_call.1} parent=11 // pred_check
          %p504 = pneg %p311
        $region58: #{tpu_custom_call.1} parent=11 // pred_check_branch
          %506 = sbr.rel (%p504) target = $region60
        $region59: #{tpu_custom_call.1} parent=11 // pred_region
          %s508 = ssub.s32 1024, 1024
          %509 = vsyncadd [#allocation22], %s508
          %s510 = sshll.u32 [#allocation23], 4
          %s511 = int_to_ptr.vmem [resolvable:$true] %s510
          %516 = dma.hbm_to_vmem [thread:$0]  %s12, 1024, %s511, [#allocation22], 64, 64, 4
        $region60: #{tpu_custom_call.1} parent=11 // pred_fallthru
          _
        // Predicated region
        $region61: #{tpu_custom_call.1} parent=11 // pred_check
          %p517 = pneg %p332
        $region62: #{tpu_custom_call.1} parent=11 // pred_check_branch
          %519 = sbr.rel (%p517) target = $region64
        $region63: #{tpu_custom_call.1} parent=11 // pred_region
          %s521 = ssub.s32 16, 16
          %522 = vsyncadd [#allocation25], %s521
          %s524 = sshll.u32 [#allocation24], 4
          %s525 = int_to_ptr.vmem [resolvable:$true] %s524
          %527 = dma.hbm_to_vmem [thread:$0]  %s13, 16, %s525, [#allocation25]
        $region64: #{tpu_custom_call.1} parent=11 // pred_fallthru
          _
      $region12: #{tpu_custom_call.1} parent=5 // pred_fallthru
        _
      %p528 = scmp.lt.s32.totalorder %s33, 2
      // Predicated region
      $region65: #{tpu_custom_call.1} parent=5 // pred_check
        %p529 = pneg %p528
      $region66: #{tpu_custom_call.1} parent=5 // pred_check_branch
        %531 = sbr.rel (%p529) target = $region68
      $region67: #{tpu_custom_call.1} parent=5 // pred_region
        // Predicated region
        $region69: #{tpu_custom_call.1} parent=67 // pred_check
          %p532 = pneg %p53
        $region70: #{tpu_custom_call.1} parent=67 // pred_check_branch
          %534 = sbr.rel (%p532) target = $region72
        $region71: #{tpu_custom_call.1} parent=67 // pred_region
          %s535 = sand.u32 %s43, 1
          %s536 = scalar_lea.sflag [#allocation4], %s535
          %s537 = sand.u32 %s43, 1
          %s538 = smul.addr %s537, 8
          %s539 = scalar_lea.vmem [#allocation3], %s538
          %s541 = ssub.s32 128, 128
          %542 = vsyncadd %s536, %s541
          %s543 = smul.addr %s33, 128
          %s544 = scalar_lea.hbm %s0, %s543
          %s546 = sshll.u32 %s539, 4
          %s547 = int_to_ptr.vmem [resolvable:$true] %s546
          %549 = dma.hbm_to_vmem [thread:$0]  %s544, 128, %s547, %s536
        $region72: #{tpu_custom_call.1} parent=67 // pred_fallthru
          _
      $region68: #{tpu_custom_call.1} parent=5 // pred_fallthru
        _
      %p550 = scmp.le.s32.totalorder 1, %s33
      %p551 = scmp.lt.s32.totalorder %s33, 3
      %p552 = pnand %p550, %p551
      %p553 = pneg %p552
      // Predicated region
      $region73: #{tpu_custom_call.1} parent=5 // pred_check
        _
      $region74: #{tpu_custom_call.1} parent=5 // pred_check_branch
        %555 = sbr.rel (%p552) target = $region76
      $region75: #{tpu_custom_call.1} parent=5 // pred_region
        %s556 = ssub.s32 %s33, 1
        %s557 = sand.u32 %s46, 1
        %s558 = scalar_lea.sflag [#allocation4], %s557
        %s559 = sand.u32 %s46, 1
        %s560 = smul.addr %s559, 8
        %s561 = scalar_lea.vmem [#allocation3], %s560
        // Predicated region
        $region77: #{tpu_custom_call.1} parent=75 // pred_check
          %p562 = pneg %p59
        $region78: #{tpu_custom_call.1} parent=75 // pred_check_branch
          %564 = sbr.rel (%p562) target = $region80
        $region79: #{tpu_custom_call.1} parent=75 // pred_region
          %565 = dma.done %s558, 128
        $region80: #{tpu_custom_call.1} parent=75 // pred_fallthru
          _
        // Predicated region
        $region81: #{tpu_custom_call.1} parent=75 // pred_check
          %p566 = pneg %p80
        $region82: #{tpu_custom_call.1} parent=75 // pred_check_branch
          %568 = sbr.rel (%p566) target = $region84
        $region83: #{tpu_custom_call.1} parent=75 // pred_region
          %569 = dma.done [#allocation7], 16
        $region84: #{tpu_custom_call.1} parent=75 // pred_fallthru
          _
        // Predicated region
        $region85: #{tpu_custom_call.1} parent=75 // pred_check
          %p570 = pneg %p101
        $region86: #{tpu_custom_call.1} parent=75 // pred_check_branch
          %572 = sbr.rel (%p570) target = $region88
        $region87: #{tpu_custom_call.1} parent=75 // pred_region
          %573 = dma.done [#allocation7], 16
        $region88: #{tpu_custom_call.1} parent=75 // pred_fallthru
          _
        // Predicated region
        $region89: #{tpu_custom_call.1} parent=75 // pred_check
          %p574 = pneg %p122
        $region90: #{tpu_custom_call.1} parent=75 // pred_check_branch
          %576 = sbr.rel (%p574) target = $region92
        $region91: #{tpu_custom_call.1} parent=75 // pred_region
          %577 = dma.done [#allocation10], 256
        $region92: #{tpu_custom_call.1} parent=75 // pred_fallthru
          _
        // Predicated region
        $region93: #{tpu_custom_call.1} parent=75 // pred_check
          %p578 = pneg %p143
        $region94: #{tpu_custom_call.1} parent=75 // pred_check_branch
          %580 = sbr.rel (%p578) target = $region96
        $region95: #{tpu_custom_call.1} parent=75 // pred_region
          %581 = dma.done [#allocation10], 256
        $region96: #{tpu_custom_call.1} parent=75 // pred_fallthru
          _
        // Predicated region
        $region97: #{tpu_custom_call.1} parent=75 // pred_check
          %p582 = pneg %p164
        $region98: #{tpu_custom_call.1} parent=75 // pred_check_branch
          %584 = sbr.rel (%p582) target = $region100
        $region99: #{tpu_custom_call.1} parent=75 // pred_region
          %585 = dma.done [#allocation13], 256
        $region100: #{tpu_custom_call.1} parent=75 // pred_fallthru
          _
        // Predicated region
        $region101: #{tpu_custom_call.1} parent=75 // pred_check
          %p586 = pneg %p185
        $region102: #{tpu_custom_call.1} parent=75 // pred_check_branch
          %588 = sbr.rel (%p586) target = $region104
        $region103: #{tpu_custom_call.1} parent=75 // pred_region
          %589 = dma.done [#allocation13], 256
        $region104: #{tpu_custom_call.1} parent=75 // pred_fallthru
          _
        // Predicated region
        $region105: #{tpu_custom_call.1} parent=75 // pred_check
          %p590 = pneg %p206
        $region106: #{tpu_custom_call.1} parent=75 // pred_check_branch
          %592 = sbr.rel (%p590) target = $region108
        $region107: #{tpu_custom_call.1} parent=75 // pred_region
          %593 = dma.done [#allocation16], 16
        $region108: #{tpu_custom_call.1} parent=75 // pred_fallthru
          _
        // Predicated region
        $region109: #{tpu_custom_call.1} parent=75 // pred_check
          %p594 = pneg %p227
        $region110: #{tpu_custom_call.1} parent=75 // pred_check_branch
          %596 = sbr.rel (%p594) target = $region112
        $region111: #{tpu_custom_call.1} parent=75 // pred_region
          %597 = dma.done [#allocation16], 16
        $region112: #{tpu_custom_call.1} parent=75 // pred_fallthru
          _
        // Predicated region
        $region113: #{tpu_custom_call.1} parent=75 // pred_check
          %p598 = pneg %p248
        $region114: #{tpu_custom_call.1} parent=75 // pred_check_branch
          %600 = sbr.rel (%p598) target = $region116
        $region115: #{tpu_custom_call.1} parent=75 // pred_region
          %601 = dma.done [#allocation19], 16
        $region116: #{tpu_custom_call.1} parent=75 // pred_fallthru
          _
        // Predicated region
        $region117: #{tpu_custom_call.1} parent=75 // pred_check
          %p602 = pneg %p269
        $region118: #{tpu_custom_call.1} parent=75 // pred_check_branch
          %604 = sbr.rel (%p602) target = $region120
        $region119: #{tpu_custom_call.1} parent=75 // pred_region
          %605 = dma.done [#allocation19], 256
        $region120: #{tpu_custom_call.1} parent=75 // pred_fallthru
          _
        // Predicated region
        $region121: #{tpu_custom_call.1} parent=75 // pred_check
          %p606 = pneg %p290
        $region122: #{tpu_custom_call.1} parent=75 // pred_check_branch
          %608 = sbr.rel (%p606) target = $region124
        $region123: #{tpu_custom_call.1} parent=75 // pred_region
          %609 = dma.done [#allocation22], 16
        $region124: #{tpu_custom_call.1} parent=75 // pred_fallthru
          _
        // Predicated region
        $region125: #{tpu_custom_call.1} parent=75 // pred_check
          %p610 = pneg %p311
        $region126: #{tpu_custom_call.1} parent=75 // pred_check_branch
          %612 = sbr.rel (%p610) target = $region128
        $region127: #{tpu_custom_call.1} parent=75 // pred_region
          %613 = dma.done [#allocation22], 1024
        $region128: #{tpu_custom_call.1} parent=75 // pred_fallthru
          _
        // Predicated region
        $region129: #{tpu_custom_call.1} parent=75 // pred_check
          %p614 = pneg %p332
        $region130: #{tpu_custom_call.1} parent=75 // pred_check_branch
          %616 = sbr.rel (%p614) target = $region132
        $region131: #{tpu_custom_call.1} parent=75 // pred_region
          %617 = dma.done [#allocation25], 16
        $region132: #{tpu_custom_call.1} parent=75 // pred_fallthru
          _
        %s618 = sand.u32 %s46, 1
        %s619 = scalar_lea.sflag [#allocation4], %s618
        %s620 = sand.u32 %s46, 1
        %s621 = smul.addr %s620, 8
        %s622 = scalar_lea.vmem [#allocation3], %s621
        %p623 = pneg %p59
        %p624 = pneg %p56
        %p625 = pneg %p80
        %p626 = pneg %p77
        %p627 = pneg %p101
        %p628 = pneg %p98
        %p629 = pneg %p122
        %p630 = pneg %p119
        %p631 = pneg %p143
        %p632 = pneg %p140
        %p633 = pneg %p164
        %p634 = pneg %p161
        %p635 = pneg %p185
        %p636 = pneg %p182
        %p637 = pneg %p206
        %p638 = pneg %p203
        %p639 = pneg %p227
        %p640 = pneg %p224
        %p641 = pneg %p248
        %p642 = pneg %p245
        %p643 = pneg %p269
        %p644 = pneg %p266
        %p645 = pneg %p290
        %p646 = pneg %p287
        %p647 = pneg %p311
        %p648 = pneg %p308
        %p649 = pneg %p332
        %p650 = pneg %p329
        %p651 = pneg %p358
        %p652 = pneg %p355
        %s653 = sand.u32 %s345, 1
        %s654 = scalar_lea.sflag [#allocation5], %s653
        %s655 = sand.u32 %s345, 1
        %s656 = smul.addr %s655, 8
        %s657 = scalar_lea.vmem [#allocation26], %s656
        %v659 = vld [vmem:[%s561] sm:$0xff]
        %v660 = vld [vmem:[#allocation6] sm:$0x1]
        %v661 = vld [vmem:[#allocation8] sm:$0x1]
        %vm662 = vcmask 261120
        %v663 = vsel %vm662, %v659, 0.0
        %664 = vadd.xlane.f32.xlu0 %v663
        %v665 = vpop.xlane.xlu0 %664
        %v666 = vrcp.pop 32.0
        %v667 = vmul.f32 %v665, %v666
        %v668 = vsub.f32 %v659, %v667
        %v669 = vmul.f32 %v668, %v668
        %v670 = vsel %vm662, %v669, 0.0
        %671 = vadd.xlane.f32.xlu0 %v670
        %v672 = vpop.xlane.xlu0 %671
        %v673 = vmul.f32 %v672, %v666
        %v674 = vadd.f32 %v673, 1e-05
        %v675 = vrsqrt.pop %v674
        %v676 = vmul.f32 %v674, %v675
        %vm677 = vcmp.eq.f32.partialorder %v674, inf
        %v678 = vsel %vm677, %v674, %v676
        %vm679 = vcmp.eq.f32.partialorder %v674, 0.0
        %v680 = vand.u32 %v674, 2147483648
        %v681 = vsel %vm679, %v680, %v678
        %v682 = vrcp.pop %v681
        %v683 = vmul.f32 %v668, %v682
        %v685 = vlaneseq
        %v686 = vshrl.u32 %v685, 7
        %v687 = vsub.s32 0, %v686
        %v688 = vrot.slane %v660, %v687
        %v690 = vmul.f32 %v688, %v683
        %v692 = vlaneseq
        %v693 = vshrl.u32 %v692, 7
        %v694 = vsub.s32 0, %v693
        %v695 = vrot.slane %v661, %v694
        %v697 = vadd.f32 %v690, %v695
        %v698 = vpack.c.bf16 %v697, %v697
        %v699 = vld [vmem:[#allocation9] sm:$0xf]
        %v700 = vld [vmem:[#allocation9 + $0x4] sm:$0xf]
        %v701 = vld [vmem:[#allocation9 + $0x8] sm:$0xf]
        %v702 = vld [vmem:[#allocation9 + $0xc] sm:$0xf]
        %v707 = vunpack.c.l.b16 %v699
        %v708 = vunpack.c.l.b16 %v700
        %v709 = vunpack.c.l.b16 %v701
        %v710 = vunpack.c.l.b16 %v702
        %v711 = vpack.c.b16 %v708, %v707
        %v712 = vpack.c.b16 %v710, %v709
        %v716 = vsel %vm662, %v698, 0
        %718 = vmatprep.subr.bf16.mxu0 0
        %719 = vmatpush1.bf16.msra.mxu0 %v711
        %720 = vmatprep.subr.bf16.mxu0 0
        %721 = vmatpush1.bf16.msra.mxu0 %v712
        %722 = vmatprep.subr.bf16.mxu0 0
        %723 = vmatpush1.bf16.msra.mxu0 0
        %724 = vmatprep.subr.bf16.mxu0 0
        %725 = vmatpush1.bf16.msra.mxu0 0
        %726 = vmatprep.subr.bf16.mxu0 0
        %727 = vmatpush1.bf16.msra.mxu0 0
        %728 = vmatprep.subr.bf16.mxu0 0
        %729 = vmatpush1.bf16.msra.mxu0 0
        %730 = vmatprep.subr.bf16.mxu0 0
        %731 = vmatpush1.bf16.msra.mxu0 0
        %732 = vmatprep.subr.bf16.mxu0 0
        %733 = vmatpush1.bf16.msra.mxu0 0
        %734 = vmatprep.subr.bf16.mxu0 0
        %735 = vmatpush1.bf16.msra.mxu0 0
        %736 = vmatprep.subr.bf16.mxu0 0
        %737 = vmatpush1.bf16.msra.mxu0 0
        %738 = vmatprep.subr.bf16.mxu0 0
        %739 = vmatpush1.bf16.msra.mxu0 0
        %740 = vmatprep.subr.bf16.mxu0 0
        %741 = vmatpush1.bf16.msra.mxu0 0
        %742 = vmatprep.subr.bf16.mxu0 0
        %743 = vmatpush1.bf16.msra.mxu0 0
        %744 = vmatprep.subr.bf16.mxu0 0
        %745 = vmatpush1.bf16.msra.mxu0 0
        %746 = vmatprep.subr.bf16.mxu0 0
        %747 = vmatpush1.bf16.msra.mxu0 0
        %748 = vmatprep.subr.bf16.mxu0 0
        %749 = vmatpush1.bf16.msra.mxu0 0
        %750 = vmatprep.mubr.bf16.mxu0 0
        %751 = vmatmul.mubr.bf16.gmra.mrb[0].mxu0 %v716
        %v752 = vpop.f32.mrb[0].mxu0
        %v753 = vadd.f32 0.0, %v752
        %v754 = vpop.f32.mrb[0].mxu0
        %v755 = vpop.f32.mrb[0].mxu0
        %v756 = vpop.f32.mrb[0].mxu0
        %757 = vdwg.mxu0
        %v758 = vpack.c.bf16 %v753, %v753
        %v759 = vld [vmem:[#allocation11] sm:$0xf]
        %v760 = vld [vmem:[#allocation11 + $0x4] sm:$0xf]
        %v761 = vld [vmem:[#allocation11 + $0x8] sm:$0xf]
        %v762 = vld [vmem:[#allocation11 + $0xc] sm:$0xf]
        %v767 = vunpack.c.l.b16 %v759
        %v768 = vunpack.c.l.b16 %v760
        %v769 = vunpack.c.l.b16 %v761
        %v770 = vunpack.c.l.b16 %v762
        %v771 = vpack.c.b16 %v768, %v767
        %v772 = vpack.c.b16 %v770, %v769
        %775 = vmatprep.subr.bf16.mxu0 0
        %776 = vmatpush1.bf16.msra.mxu0 %v771
        %777 = vmatprep.subr.bf16.mxu0 0
        %778 = vmatpush1.bf16.msra.mxu0 %v772
        %779 = vmatprep.subr.bf16.mxu0 0
        %780 = vmatpush1.bf16.msra.mxu0 0
        %781 = vmatprep.subr.bf16.mxu0 0
        %782 = vmatpush1.bf16.msra.mxu0 0
        %783 = vmatprep.subr.bf16.mxu0 0
        %784 = vmatpush1.bf16.msra.mxu0 0
        %785 = vmatprep.subr.bf16.mxu0 0
        %786 = vmatpush1.bf16.msra.mxu0 0
        %787 = vmatprep.subr.bf16.mxu0 0
        %788 = vmatpush1.bf16.msra.mxu0 0
        %789 = vmatprep.subr.bf16.mxu0 0
        %790 = vmatpush1.bf16.msra.mxu0 0
        %791 = vmatprep.subr.bf16.mxu0 0
        %792 = vmatpush1.bf16.msra.mxu0 0
        %793 = vmatprep.subr.bf16.mxu0 0
        %794 = vmatpush1.bf16.msra.mxu0 0
        %795 = vmatprep.subr.bf16.mxu0 0
        %796 = vmatpush1.bf16.msra.mxu0 0
        %797 = vmatprep.subr.bf16.mxu0 0
        %798 = vmatpush1.bf16.msra.mxu0 0
        %799 = vmatprep.subr.bf16.mxu0 0
        %800 = vmatpush1.bf16.msra.mxu0 0
        %801 = vmatprep.subr.bf16.mxu0 0
        %802 = vmatpush1.bf16.msra.mxu0 0
        %803 = vmatprep.subr.bf16.mxu0 0
        %804 = vmatpush1.bf16.msra.mxu0 0
        %805 = vmatprep.subr.bf16.mxu0 0
        %806 = vmatpush1.bf16.msra.mxu0 0
        %807 = vmatprep.mubr.bf16.mxu0 0
        %808 = vmatmul.mubr.bf16.gmra.mrb[0].mxu0 %v716
        %v809 = vpop.f32.mrb[0].mxu0
        %v810 = vadd.f32 0.0, %v809
        %v811 = vpop.f32.mrb[0].mxu0
        %v812 = vpop.f32.mrb[0].mxu0
        %v813 = vpop.f32.mrb[0].mxu0
        %814 = vdwg.mxu0
        %v815 = vpack.c.bf16 %v810, %v810
        %v816 = vld [vmem:[#allocation12] sm:$0xf]
        %v817 = vld [vmem:[#allocation12 + $0x4] sm:$0xf]
        %v818 = vld [vmem:[#allocation12 + $0x8] sm:$0xf]
        %v819 = vld [vmem:[#allocation12 + $0xc] sm:$0xf]
        %v824 = vunpack.c.l.b16 %v816
        %v825 = vunpack.c.l.b16 %v817
        %v826 = vunpack.c.l.b16 %v818
        %v827 = vunpack.c.l.b16 %v819
        %v828 = vpack.c.b16 %v825, %v824
        %v829 = vpack.c.b16 %v827, %v826
        %832 = vmatprep.subr.bf16.mxu0 0
        %833 = vmatpush1.bf16.msra.mxu0 %v828
        %834 = vmatprep.subr.bf16.mxu0 0
        %835 = vmatpush1.bf16.msra.mxu0 %v829
        %836 = vmatprep.subr.bf16.mxu0 0
        %837 = vmatpush1.bf16.msra.mxu0 0
        %838 = vmatprep.subr.bf16.mxu0 0
        %839 = vmatpush1.bf16.msra.mxu0 0
        %840 = vmatprep.subr.bf16.mxu0 0
        %841 = vmatpush1.bf16.msra.mxu0 0
        %842 = vmatprep.subr.bf16.mxu0 0
        %843 = vmatpush1.bf16.msra.mxu0 0
        %844 = vmatprep.subr.bf16.mxu0 0
        %845 = vmatpush1.bf16.msra.mxu0 0
        %846 = vmatprep.subr.bf16.mxu0 0
        %847 = vmatpush1.bf16.msra.mxu0 0
        %848 = vmatprep.subr.bf16.mxu0 0
        %849 = vmatpush1.bf16.msra.mxu0 0
        %850 = vmatprep.subr.bf16.mxu0 0
        %851 = vmatpush1.bf16.msra.mxu0 0
        %852 = vmatprep.subr.bf16.mxu0 0
        %853 = vmatpush1.bf16.msra.mxu0 0
        %854 = vmatprep.subr.bf16.mxu0 0
        %855 = vmatpush1.bf16.msra.mxu0 0
        %856 = vmatprep.subr.bf16.mxu0 0
        %857 = vmatpush1.bf16.msra.mxu0 0
        %858 = vmatprep.subr.bf16.mxu0 0
        %859 = vmatpush1.bf16.msra.mxu0 0
        %860 = vmatprep.subr.bf16.mxu0 0
        %861 = vmatpush1.bf16.msra.mxu0 0
        %862 = vmatprep.subr.bf16.mxu0 0
        %863 = vmatpush1.bf16.msra.mxu0 0
        %864 = vmatprep.mubr.bf16.mxu0 0
        %865 = vmatmul.mubr.bf16.gmra.mrb[0].mxu0 %v716
        %v866 = vpop.f32.mrb[0].mxu0
        %v867 = vadd.f32 0.0, %v866
        %v868 = vpop.f32.mrb[0].mxu0
        %v869 = vpop.f32.mrb[0].mxu0
        %v870 = vpop.f32.mrb[0].mxu0
        %871 = vdwg.mxu0
        %v872 = vpack.c.bf16 %v867, %v867
        %v873 = vlaneseq
        %v874 = vshrl.u32 %v873, 7
        %v875 = vlaneseq
        %v876 = vand.u32 %v875, 127
        %vm877 = vcmp.ge.s32.totalorder %v874, %v876
        %vm878 = vcmask 64512
        %v880 = vsel %vm878, %v758, 0
        %v883 = vsel %vm878, %v815, 0
        %885 = vmatprep.subr.bf16.mxu0 0
        %886 = vmatpush1.bf16.xpose.msra.mxu0 %v883
        %887 = vmatprep.subr.bf16.mxu0 0
        %888 = vmatpush1.bf16.xpose.msra.mxu0 0
        %889 = vmatprep.subr.bf16.mxu0 0
        %890 = vmatpush1.bf16.xpose.msra.mxu0 0
        %891 = vmatprep.subr.bf16.mxu0 0
        %892 = vmatpush1.bf16.xpose.msra.mxu0 0
        %893 = vmatprep.subr.bf16.mxu0 0
        %894 = vmatpush1.bf16.xpose.msra.mxu0 0
        %895 = vmatprep.subr.bf16.mxu0 0
        %896 = vmatpush1.bf16.xpose.msra.mxu0 0
        %897 = vmatprep.subr.bf16.mxu0 0
        %898 = vmatpush1.bf16.xpose.msra.mxu0 0
        %899 = vmatprep.subr.bf16.mxu0 0
        %900 = vmatpush1.bf16.xpose.msra.mxu0 0
        %901 = vmatprep.subr.bf16.mxu0 0
        %902 = vmatpush1.bf16.xpose.msra.mxu0 0
        %903 = vmatprep.subr.bf16.mxu0 0
        %904 = vmatpush1.bf16.xpose.msra.mxu0 0
        %905 = vmatprep.subr.bf16.mxu0 0
        %906 = vmatpush1.bf16.xpose.msra.mxu0 0
        %907 = vmatprep.subr.bf16.mxu0 0
        %908 = vmatpush1.bf16.xpose.msra.mxu0 0
        %909 = vmatprep.subr.bf16.mxu0 0
        %910 = vmatpush1.bf16.xpose.msra.mxu0 0
        %911 = vmatprep.subr.bf16.mxu0 0
        %912 = vmatpush1.bf16.xpose.msra.mxu0 0
        %913 = vmatprep.subr.bf16.mxu0 0
        %914 = vmatpush1.bf16.xpose.msra.mxu0 0
        %915 = vmatprep.subr.bf16.mxu0 0
        %916 = vmatpush1.bf16.xpose.msra.mxu0 0
        %917 = vmatprep.mubr.bf16.mxu0 0
        %918 = vmatmul.mubr.bf16.gmra.mrb[0].mxu0 %v880
        %v919 = vpop.f32.mrb[0].mxu0
        %v920 = vadd.f32 0.0, %v919
        %v921 = vpop.f32.mrb[0].mxu0
        %v922 = vpop.f32.mrb[0].mxu0
        %v923 = vpop.f32.mrb[0].mxu0
        %924 = vdwg.mxu0
        %v925 = vsel %vm877, %v920, -1e+30
        %v926 = vsel %vm878, %v925, -inf
        %927 = vmax.xlane.f32.xlu0 %v926
        %v928 = vpop.xlane.xlu0 %927
        %v929 = vsub.f32 %v925, %v928
        %v930 = vmul.f32 %v929, 1.442695
        %v931 = vpow.pop %v930
        %v932 = vsel %vm878, %v931, 0.0
        %933 = vadd.xlane.f32.xlu0 %v932
        %v934 = vpop.xlane.xlu0 %933
        %v935 = vpack.c.bf16 %v931, %v931
        %v937 = vsel %vm878, %v935, 0
        %vm939 = vcmask 1043456
        %v941 = vsel %vm939, %v872, 0
        %943 = vmatprep.subr.bf16.mxu0 0
        %944 = vmatpush1.bf16.msra.mxu0 %v941
        %945 = vmatprep.subr.bf16.mxu0 0
        %946 = vmatpush1.bf16.msra.mxu0 0
        %947 = vmatprep.subr.bf16.mxu0 0
        %948 = vmatpush1.bf16.msra.mxu0 0
        %949 = vmatprep.subr.bf16.mxu0 0
        %950 = vmatpush1.bf16.msra.mxu0 0
        %951 = vmatprep.subr.bf16.mxu0 0
        %952 = vmatpush1.bf16.msra.mxu0 0
        %953 = vmatprep.subr.bf16.mxu0 0
        %954 = vmatpush1.bf16.msra.mxu0 0
        %955 = vmatprep.subr.bf16.mxu0 0
        %956 = vmatpush1.bf16.msra.mxu0 0
        %957 = vmatprep.subr.bf16.mxu0 0
        %958 = vmatpush1.bf16.msra.mxu0 0
        %959 = vmatprep.subr.bf16.mxu0 0
        %960 = vmatpush1.bf16.msra.mxu0 0
        %961 = vmatprep.subr.bf16.mxu0 0
        %962 = vmatpush1.bf16.msra.mxu0 0
        %963 = vmatprep.subr.bf16.mxu0 0
        %964 = vmatpush1.bf16.msra.mxu0 0
        %965 = vmatprep.subr.bf16.mxu0 0
        %966 = vmatpush1.bf16.msra.mxu0 0
        %967 = vmatprep.subr.bf16.mxu0 0
        %968 = vmatpush1.bf16.msra.mxu0 0
        %969 = vmatprep.subr.bf16.mxu0 0
        %970 = vmatpush1.bf16.msra.mxu0 0
        %971 = vmatprep.subr.bf16.mxu0 0
        %972 = vmatpush1.bf16.msra.mxu0 0
        %973 = vmatprep.subr.bf16.mxu0 0
        %974 = vmatpush1.bf16.msra.mxu0 0
        %975 = vmatprep.mubr.bf16.mxu0 0
        %976 = vmatmul.mubr.bf16.gmra.mrb[0].mxu0 %v937
        %v977 = vpop.f32.mrb[0].mxu0
        %v978 = vadd.f32 0.0, %v977
        %v979 = vpop.f32.mrb[0].mxu0
        %v980 = vpop.f32.mrb[0].mxu0
        %v981 = vpop.f32.mrb[0].mxu0
        %982 = vdwg.mxu0
        %v983 = vrcp.pop %v934
        %v984 = vmul.f32 %v978, %v983
        %v985 = vpack.c.bf16 %v984, %v984
        %vm986 = vcmask 60416
        %987 = vst.msk [vmem:[#allocation2] sm:$0xf] %vm986, %v985
        %989 = vrot.lane.b32.xlu0 %v758, 120
        %v990 = vpop.permute.xlu0 %989
        %992 = vrot.lane.b32.xlu0 %v815, 120
        %v993 = vpop.permute.xlu0 %992
        %v995 = vsel %vm878, %v990, 0
        %v998 = vsel %vm878, %v993, 0
        %1000 = vmatprep.subr.bf16.mxu0 0
        %1001 = vmatpush1.bf16.xpose.msra.mxu0 %v998
        %1002 = vmatprep.subr.bf16.mxu0 0
        %1003 = vmatpush1.bf16.xpose.msra.mxu0 0
        %1004 = vmatprep.subr.bf16.mxu0 0
        %1005 = vmatpush1.bf16.xpose.msra.mxu0 0
        %1006 = vmatprep.subr.bf16.mxu0 0
        %1007 = vmatpush1.bf16.xpose.msra.mxu0 0
        %1008 = vmatprep.subr.bf16.mxu0 0
        %1009 = vmatpush1.bf16.xpose.msra.mxu0 0
        %1010 = vmatprep.subr.bf16.mxu0 0
        %1011 = vmatpush1.bf16.xpose.msra.mxu0 0
        %1012 = vmatprep.subr.bf16.mxu0 0
        %1013 = vmatpush1.bf16.xpose.msra.mxu0 0
        %1014 = vmatprep.subr.bf16.mxu0 0
        %1015 = vmatpush1.bf16.xpose.msra.mxu0 0
        %1016 = vmatprep.subr.bf16.mxu0 0
        %1017 = vmatpush1.bf16.xpose.msra.mxu0 0
        %1018 = vmatprep.subr.bf16.mxu0 0
        %1019 = vmatpush1.bf16.xpose.msra.mxu0 0
        %1020 = vmatprep.subr.bf16.mxu0 0
        %1021 = vmatpush1.bf16.xpose.msra.mxu0 0
        %1022 = vmatprep.subr.bf16.mxu0 0
        %1023 = vmatpush1.bf16.xpose.msra.mxu0 0
        %1024 = vmatprep.subr.bf16.mxu0 0
        %1025 = vmatpush1.bf16.xpose.msra.mxu0 0
        %1026 = vmatprep.subr.bf16.mxu0 0
        %1027 = vmatpush1.bf16.xpose.msra.mxu0 0
        %1028 = vmatprep.subr.bf16.mxu0 0
        %1029 = vmatpush1.bf16.xpose.msra.mxu0 0
        %1030 = vmatprep.subr.bf16.mxu0 0
        %1031 = vmatpush1.bf16.xpose.msra.mxu0 0
        %1032 = vmatprep.mubr.bf16.mxu0 0
        %1033 = vmatmul.mubr.bf16.gmra.mrb[0].mxu0 %v995
        %v1034 = vpop.f32.mrb[0].mxu0
        %v1035 = vadd.f32 0.0, %v1034
        %v1036 = vpop.f32.mrb[0].mxu0
        %v1037 = vpop.f32.mrb[0].mxu0
        %v1038 = vpop.f32.mrb[0].mxu0
        %1039 = vdwg.mxu0
        %v1040 = vsel %vm877, %v1035, -1e+30
        %v1041 = vsel %vm878, %v1040, -inf
        %1042 = vmax.xlane.f32.xlu0 %v1041
        %v1043 = vpop.xlane.xlu0 %1042
        %v1044 = vsub.f32 %v1040, %v1043
        %v1045 = vmul.f32 %v1044, 1.442695
        %v1046 = vpow.pop %v1045
        %v1047 = vsel %vm878, %v1046, 0.0
        %1048 = vadd.xlane.f32.xlu0 %v1047
        %v1049 = vpop.xlane.xlu0 %1048
        %v1050 = vpack.c.bf16 %v1046, %v1046
        %1052 = vrot.lane.b32.xlu0 %v872, 120
        %v1053 = vpop.permute.xlu0 %1052
        %v1055 = vsel %vm878, %v1050, 0
        %v1058 = vsel %vm939, %v1053, 0
        %1060 = vmatprep.subr.bf16.mxu0 0
        %1061 = vmatpush1.bf16.msra.mxu0 %v1058
        %1062 = vmatprep.subr.bf16.mxu0 0
        %1063 = vmatpush1.bf16.msra.mxu0 0
        %1064 = vmatprep.subr.bf16.mxu0 0
        %1065 = vmatpush1.bf16.msra.mxu0 0
        %1066 = vmatprep.subr.bf16.mxu0 0
        %1067 = vmatpush1.bf16.msra.mxu0 0
        %1068 = vmatprep.subr.bf16.mxu0 0
        %1069 = vmatpush1.bf16.msra.mxu0 0
        %1070 = vmatprep.subr.bf16.mxu0 0
        %1071 = vmatpush1.bf16.msra.mxu0 0
        %1072 = vmatprep.subr.bf16.mxu0 0
        %1073 = vmatpush1.bf16.msra.mxu0 0
        %1074 = vmatprep.subr.bf16.mxu0 0
        %1075 = vmatpush1.bf16.msra.mxu0 0
        %1076 = vmatprep.subr.bf16.mxu0 0
        %1077 = vmatpush1.bf16.msra.mxu0 0
        %1078 = vmatprep.subr.bf16.mxu0 0
        %1079 = vmatpush1.bf16.msra.mxu0 0
        %1080 = vmatprep.subr.bf16.mxu0 0
        %1081 = vmatpush1.bf16.msra.mxu0 0
        %1082 = vmatprep.subr.bf16.mxu0 0
        %1083 = vmatpush1.bf16.msra.mxu0 0
        %1084 = vmatprep.subr.bf16.mxu0 0
        %1085 = vmatpush1.bf16.msra.mxu0 0
        %1086 = vmatprep.subr.bf16.mxu0 0
        %1087 = vmatpush1.bf16.msra.mxu0 0
        %1088 = vmatprep.subr.bf16.mxu0 0
        %1089 = vmatpush1.bf16.msra.mxu0 0
        %1090 = vmatprep.subr.bf16.mxu0 0
        %1091 = vmatpush1.bf16.msra.mxu0 0
        %1092 = vmatprep.mubr.bf16.mxu0 0
        %1093 = vmatmul.mubr.bf16.gmra.mrb[0].mxu0 %v1055
        %v1094 = vpop.f32.mrb[0].mxu0
        %v1095 = vadd.f32 0.0, %v1094
        %v1096 = vpop.f32.mrb[0].mxu0
        %v1097 = vpop.f32.mrb[0].mxu0
        %v1098 = vpop.f32.mrb[0].mxu0
        %1099 = vdwg.mxu0
        %v1100 = vrcp.pop %v1049
        %v1101 = vmul.f32 %v1095, %v1100
        %v1102 = vpack.c.bf16 %v1101, %v1101
        %v1104 = vunpack.c.l.b16 %v1102
        %v1105 = vpack.c.b16 %v1104, %v1104
        %1106 = vrot.lane.b32.xlu0 %v1105, 8
        %v1107 = vpop.permute.xlu0 %1106
        %vm1109 = vcmask 126016
        %1110 = vst.msk [vmem:[#allocation2] sm:$0xf] %vm1109, %v1107
        %1111 = vrot.lane.b32.xlu0 %v758, 112
        %v1112 = vpop.permute.xlu0 %1111
        %1113 = vrot.lane.b32.xlu0 %v815, 112
        %v1114 = vpop.permute.xlu0 %1113
        %v1116 = vsel %vm878, %v1112, 0
        %v1119 = vsel %vm878, %v1114, 0
        %1121 = vmatprep.subr.bf16.mxu0 0
        %1122 = vmatpush1.bf16.xpose.msra.mxu0 %v1119
        %1123 = vmatprep.subr.bf16.mxu0 0
        %1124 = vmatpush1.bf16.xpose.msra.mxu0 0
        %1125 = vmatprep.subr.bf16.mxu0 0
        %1126 = vmatpush1.bf16.xpose.msra.mxu0 0
        %1127 = vmatprep.subr.bf16.mxu0 0
        %1128 = vmatpush1.bf16.xpose.msra.mxu0 0
        %1129 = vmatprep.subr.bf16.mxu0 0
        %1130 = vmatpush1.bf16.xpose.msra.mxu0 0
        %1131 = vmatprep.subr.bf16.mxu0 0
        %1132 = vmatpush1.bf16.xpose.msra.mxu0 0
        %1133 = vmatprep.subr.bf16.mxu0 0
        %1134 = vmatpush1.bf16.xpose.msra.mxu0 0
        %1135 = vmatprep.subr.bf16.mxu0 0
        %1136 = vmatpush1.bf16.xpose.msra.mxu0 0
        %1137 = vmatprep.subr.bf16.mxu0 0
        %1138 = vmatpush1.bf16.xpose.msra.mxu0 0
        %1139 = vmatprep.subr.bf16.mxu0 0
        %1140 = vmatpush1.bf16.xpose.msra.mxu0 0
        %1141 = vmatprep.subr.bf16.mxu0 0
        %1142 = vmatpush1.bf16.xpose.msra.mxu0 0
        %1143 = vmatprep.subr.bf16.mxu0 0
        %1144 = vmatpush1.bf16.xpose.msra.mxu0 0
        %1145 = vmatprep.subr.bf16.mxu0 0
        %1146 = vmatpush1.bf16.xpose.msra.mxu0 0
        %1147 = vmatprep.subr.bf16.mxu0 0
        %1148 = vmatpush1.bf16.xpose.msra.mxu0 0
        %1149 = vmatprep.subr.bf16.mxu0 0
        %1150 = vmatpush1.bf16.xpose.msra.mxu0 0
        %1151 = vmatprep.subr.bf16.mxu0 0
        %1152 = vmatpush1.bf16.xpose.msra.mxu0 0
        %1153 = vmatprep.mubr.bf16.mxu0 0
        %1154 = vmatmul.mubr.bf16.gmra.mrb[0].mxu0 %v1116
        %v1155 = vpop.f32.mrb[0].mxu0
        %v1156 = vadd.f32 0.0, %v1155
        %v1157 = vpop.f32.mrb[0].mxu0
        %v1158 = vpop.f32.mrb[0].mxu0
        %v1159 = vpop.f32.mrb[0].mxu0
        %1160 = vdwg.mxu0
        %v1161 = vsel %vm877, %v1156, -1e+30
        %v1162 = vsel %vm878, %v1161, -inf
        %1163 = vmax.xlane.f32.xlu0 %v1162
        %v1164 = vpop.xlane.xlu0 %1163
        %v1165 = vsub.f32 %v1161, %v1164
        %v1166 = vmul.f32 %v1165, 1.442695
        %v1167 = vpow.pop %v1166
        %v1168 = vsel %vm878, %v1167, 0.0
        %1169 = vadd.xlane.f32.xlu0 %v1168
        %v1170 = vpop.xlane.xlu0 %1169
        %v1171 = vpack.c.bf16 %v1167, %v1167
        %1172 = vrot.lane.b32.xlu0 %v872, 112
        %v1173 = vpop.permute.xlu0 %1172
        %v1175 = vsel %vm878, %v1171, 0
        %v1178 = vsel %vm939, %v1173, 0
        %1180 = vmatprep.subr.bf16.mxu0 0
        %1181 = vmatpush1.bf16.msra.mxu0 %v1178
        %1182 = vmatprep.subr.bf16.mxu0 0
        %1183 = vmatpush1.bf16.msra.mxu0 0
        %1184 = vmatprep.subr.bf16.mxu0 0
        %1185 = vmatpush1.bf16.msra.mxu0 0
        %1186 = vmatprep.subr.bf16.mxu0 0
        %1187 = vmatpush1.bf16.msra.mxu0 0
        %1188 = vmatprep.subr.bf16.mxu0 0
        %1189 = vmatpush1.bf16.msra.mxu0 0
        %1190 = vmatprep.subr.bf16.mxu0 0
        %1191 = vmatpush1.bf16.msra.mxu0 0
        %1192 = vmatprep.subr.bf16.mxu0 0
        %1193 = vmatpush1.bf16.msra.mxu0 0
        %1194 = vmatprep.subr.bf16.mxu0 0
        %1195 = vmatpush1.bf16.msra.mxu0 0
        %1196 = vmatprep.subr.bf16.mxu0 0
        %1197 = vmatpush1.bf16.msra.mxu0 0
        %1198 = vmatprep.subr.bf16.mxu0 0
        %1199 = vmatpush1.bf16.msra.mxu0 0
        %1200 = vmatprep.subr.bf16.mxu0 0
        %1201 = vmatpush1.bf16.msra.mxu0 0
        %1202 = vmatprep.subr.bf16.mxu0 0
        %1203 = vmatpush1.bf16.msra.mxu0 0
        %1204 = vmatprep.subr.bf16.mxu0 0
        %1205 = vmatpush1.bf16.msra.mxu0 0
        %1206 = vmatprep.subr.bf16.mxu0 0
        %1207 = vmatpush1.bf16.msra.mxu0 0
        %1208 = vmatprep.subr.bf16.mxu0 0
        %1209 = vmatpush1.bf16.msra.mxu0 0
        %1210 = vmatprep.subr.bf16.mxu0 0
        %1211 = vmatpush1.bf16.msra.mxu0 0
        %1212 = vmatprep.mubr.bf16.mxu0 0
        %1213 = vmatmul.mubr.bf16.gmra.mrb[0].mxu0 %v1175
        %v1214 = vpop.f32.mrb[0].mxu0
        %v1215 = vadd.f32 0.0, %v1214
        %v1216 = vpop.f32.mrb[0].mxu0
        %v1217 = vpop.f32.mrb[0].mxu0
        %v1218 = vpop.f32.mrb[0].mxu0
        %1219 = vdwg.mxu0
        %v1220 = vrcp.pop %v1170
        %v1221 = vmul.f32 %v1215, %v1220
        %v1222 = vpack.c.bf16 %v1221, %v1221
        %v1224 = vunpack.c.l.b16 %v1222
        %v1225 = vpack.c.b16 %v1224, %v1224
        %1226 = vrot.lane.b32.xlu0 %v1225, 16
        %v1227 = vpop.permute.xlu0 %1226
        %vm1229 = vcmask 191616
        %1230 = vst.msk [vmem:[#allocation2] sm:$0xf] %vm1229, %v1227
        %1231 = vrot.lane.b32.xlu0 %v758, 104
        %v1232 = vpop.permute.xlu0 %1231
        %1233 = vrot.lane.b32.xlu0 %v815, 104
        %v1234 = vpop.permute.xlu0 %1233
        %v1236 = vsel %vm878, %v1232, 0
        %v1239 = vsel %vm878, %v1234, 0
        %1241 = vmatprep.subr.bf16.mxu0 0
        %1242 = vmatpush1.bf16.xpose.msra.mxu0 %v1239
        %1243 = vmatprep.subr.bf16.mxu0 0
        %1244 = vmatpush1.bf16.xpose.msra.mxu0 0
        %1245 = vmatprep.subr.bf16.mxu0 0
        %1246 = vmatpush1.bf16.xpose.msra.mxu0 0
        %1247 = vmatprep.subr.bf16.mxu0 0
        %1248 = vmatpush1.bf16.xpose.msra.mxu0 0
        %1249 = vmatprep.subr.bf16.mxu0 0
        %1250 = vmatpush1.bf16.xpose.msra.mxu0 0
        %1251 = vmatprep.subr.bf16.mxu0 0
        %1252 = vmatpush1.bf16.xpose.msra.mxu0 0
        %1253 = vmatprep.subr.bf16.mxu0 0
        %1254 = vmatpush1.bf16.xpose.msra.mxu0 0
        %1255 = vmatprep.subr.bf16.mxu0 0
        %1256 = vmatpush1.bf16.xpose.msra.mxu0 0
        %1257 = vmatprep.subr.bf16.mxu0 0
        %1258 = vmatpush1.bf16.xpose.msra.mxu0 0
        %1259 = vmatprep.subr.bf16.mxu0 0
        %1260 = vmatpush1.bf16.xpose.msra.mxu0 0
        %1261 = vmatprep.subr.bf16.mxu0 0
        %1262 = vmatpush1.bf16.xpose.msra.mxu0 0
        %1263 = vmatprep.subr.bf16.mxu0 0
        %1264 = vmatpush1.bf16.xpose.msra.mxu0 0
        %1265 = vmatprep.subr.bf16.mxu0 0
        %1266 = vmatpush1.bf16.xpose.msra.mxu0 0
        %1267 = vmatprep.subr.bf16.mxu0 0
        %1268 = vmatpush1.bf16.xpose.msra.mxu0 0
        %1269 = vmatprep.subr.bf16.mxu0 0
        %1270 = vmatpush1.bf16.xpose.msra.mxu0 0
        %1271 = vmatprep.subr.bf16.mxu0 0
        %1272 = vmatpush1.bf16.xpose.msra.mxu0 0
        %1273 = vmatprep.mubr.bf16.mxu0 0
        %1274 = vmatmul.mubr.bf16.gmra.mrb[0].mxu0 %v1236
        %v1275 = vpop.f32.mrb[0].mxu0
        %v1276 = vadd.f32 0.0, %v1275
        %v1277 = vpop.f32.mrb[0].mxu0
        %v1278 = vpop.f32.mrb[0].mxu0
        %v1279 = vpop.f32.mrb[0].mxu0
        %1280 = vdwg.mxu0
        %v1281 = vsel %vm877, %v1276, -1e+30
        %v1282 = vsel %vm878, %v1281, -inf
        %1283 = vmax.xlane.f32.xlu0 %v1282
        %v1284 = vpop.xlane.xlu0 %1283
        %v1285 = vsub.f32 %v1281, %v1284
        %v1286 = vmul.f32 %v1285, 1.442695
        %v1287 = vpow.pop %v1286
        %v1288 = vsel %vm878, %v1287, 0.0
        %1289 = vadd.xlane.f32.xlu0 %v1288
        %v1290 = vpop.xlane.xlu0 %1289
        %v1291 = vpack.c.bf16 %v1287, %v1287
        %1292 = vrot.lane.b32.xlu0 %v872, 104
        %v1293 = vpop.permute.xlu0 %1292
        %v1295 = vsel %vm878, %v1291, 0
        %v1298 = vsel %vm939, %v1293, 0
        %1300 = vmatprep.subr.bf16.mxu0 0
        %1301 = vmatpush1.bf16.msra.mxu0 %v1298
        %1302 = vmatprep.subr.bf16.mxu0 0
        %1303 = vmatpush1.bf16.msra.mxu0 0
        %1304 = vmatprep.subr.bf16.mxu0 0
        %1305 = vmatpush1.bf16.msra.mxu0 0
        %1306 = vmatprep.subr.bf16.mxu0 0
        %1307 = vmatpush1.bf16.msra.mxu0 0
        %1308 = vmatprep.subr.bf16.mxu0 0
        %1309 = vmatpush1.bf16.msra.mxu0 0
        %1310 = vmatprep.subr.bf16.mxu0 0
        %1311 = vmatpush1.bf16.msra.mxu0 0
        %1312 = vmatprep.subr.bf16.mxu0 0
        %1313 = vmatpush1.bf16.msra.mxu0 0
        %1314 = vmatprep.subr.bf16.mxu0 0
        %1315 = vmatpush1.bf16.msra.mxu0 0
        %1316 = vmatprep.subr.bf16.mxu0 0
        %1317 = vmatpush1.bf16.msra.mxu0 0
        %1318 = vmatprep.subr.bf16.mxu0 0
        %1319 = vmatpush1.bf16.msra.mxu0 0
        %1320 = vmatprep.subr.bf16.mxu0 0
        %1321 = vmatpush1.bf16.msra.mxu0 0
        %1322 = vmatprep.subr.bf16.mxu0 0
        %1323 = vmatpush1.bf16.msra.mxu0 0
        %1324 = vmatprep.subr.bf16.mxu0 0
        %1325 = vmatpush1.bf16.msra.mxu0 0
        %1326 = vmatprep.subr.bf16.mxu0 0
        %1327 = vmatpush1.bf16.msra.mxu0 0
        %1328 = vmatprep.subr.bf16.mxu0 0
        %1329 = vmatpush1.bf16.msra.mxu0 0
        %1330 = vmatprep.subr.bf16.mxu0 0
        %1331 = vmatpush1.bf16.msra.mxu0 0
        %1332 = vmatprep.mubr.bf16.mxu0 0
        %1333 = vmatmul.mubr.bf16.gmra.mrb[0].mxu0 %v1295
        %v1334 = vpop.f32.mrb[0].mxu0
        %v1335 = vadd.f32 0.0, %v1334
        %v1336 = vpop.f32.mrb[0].mxu0
        %v1337 = vpop.f32.mrb[0].mxu0
        %v1338 = vpop.f32.mrb[0].mxu0
        %1339 = vdwg.mxu0
        %v1340 = vrcp.pop %v1290
        %v1341 = vmul.f32 %v1335, %v1340
        %v1342 = vpack.c.bf16 %v1341, %v1341
        %v1344 = vunpack.c.l.b16 %v1342
        %v1345 = vpack.c.b16 %v1344, %v1344
        %1346 = vrot.lane.b32.xlu0 %v1345, 24
        %v1347 = vpop.permute.xlu0 %1346
        %vm1349 = vcmask 257216
        %1350 = vst.msk [vmem:[#allocation2] sm:$0xf] %vm1349, %v1347
        %v1351 = vld [vmem:[#allocation2] sm:$0xf]
        %v1352 = vld [vmem:[#allocation14] sm:$0xf]
        %v1353 = vld [vmem:[#allocation14 + $0x4] sm:$0xf]
        %v1354 = vld [vmem:[#allocation14 + $0x8] sm:$0xf]
        %v1355 = vld [vmem:[#allocation14 + $0xc] sm:$0xf]
        %v1356 = vld [vmem:[#allocation15] sm:$0x1]
        %v1358 = vlaneseq
        %v1359 = vshrl.u32 %v1358, 7
        %v1360 = vsub.s32 0, %v1359
        %v1361 = vrot.slane %v1356, %v1360
        %v1367 = vunpack.c.l.b16 %v1352
        %v1368 = vunpack.c.l.b16 %v1353
        %v1369 = vunpack.c.l.b16 %v1354
        %v1370 = vunpack.c.l.b16 %v1355
        %v1371 = vpack.c.b16 %v1368, %v1367
        %v1372 = vpack.c.b16 %v1370, %v1369
        %v1376 = vsel %vm662, %v1351, 0
        %1378 = vmatprep.subr.bf16.mxu0 0
        %1379 = vmatpush1.bf16.msra.mxu0 %v1371
        %1380 = vmatprep.subr.bf16.mxu0 0
        %1381 = vmatpush1.bf16.msra.mxu0 %v1372
        %1382 = vmatprep.subr.bf16.mxu0 0
        %1383 = vmatpush1.bf16.msra.mxu0 0
        %1384 = vmatprep.subr.bf16.mxu0 0
        %1385 = vmatpush1.bf16.msra.mxu0 0
        %1386 = vmatprep.subr.bf16.mxu0 0
        %1387 = vmatpush1.bf16.msra.mxu0 0
        %1388 = vmatprep.subr.bf16.mxu0 0
        %1389 = vmatpush1.bf16.msra.mxu0 0
        %1390 = vmatprep.subr.bf16.mxu0 0
        %1391 = vmatpush1.bf16.msra.mxu0 0
        %1392 = vmatprep.subr.bf16.mxu0 0
        %1393 = vmatpush1.bf16.msra.mxu0 0
        %1394 = vmatprep.subr.bf16.mxu0 0
        %1395 = vmatpush1.bf16.msra.mxu0 0
        %1396 = vmatprep.subr.bf16.mxu0 0
        %1397 = vmatpush1.bf16.msra.mxu0 0
        %1398 = vmatprep.subr.bf16.mxu0 0
        %1399 = vmatpush1.bf16.msra.mxu0 0
        %1400 = vmatprep.subr.bf16.mxu0 0
        %1401 = vmatpush1.bf16.msra.mxu0 0
        %1402 = vmatprep.subr.bf16.mxu0 0
        %1403 = vmatpush1.bf16.msra.mxu0 0
        %1404 = vmatprep.subr.bf16.mxu0 0
        %1405 = vmatpush1.bf16.msra.mxu0 0
        %1406 = vmatprep.subr.bf16.mxu0 0
        %1407 = vmatpush1.bf16.msra.mxu0 0
        %1408 = vmatprep.subr.bf16.mxu0 0
        %1409 = vmatpush1.bf16.msra.mxu0 0
        %1410 = vmatprep.mubr.bf16.mxu0 0
        %1411 = vmatmul.mubr.bf16.gmra.mrb[0].mxu0 %v1376
        %v1412 = vpop.f32.mrb[0].mxu0
        %v1413 = vadd.f32 %v1361, %v1412
        %v1414 = vpop.f32.mrb[0].mxu0
        %v1415 = vpop.f32.mrb[0].mxu0
        %v1416 = vpop.f32.mrb[0].mxu0
        %1417 = vdwg.mxu0
        %v1418 = vadd.f32 %v659, %v1413
        %v1419 = vld [vmem:[#allocation17] sm:$0x1]
        %v1420 = vld [vmem:[#allocation18] sm:$0x1]
        %v1421 = vsel %vm662, %v1418, 0.0
        %1422 = vadd.xlane.f32.xlu0 %v1421
        %v1423 = vpop.xlane.xlu0 %1422
        %v1424 = vmul.f32 %v1423, %v666
        %v1425 = vsub.f32 %v1418, %v1424
        %v1426 = vmul.f32 %v1425, %v1425
        %v1427 = vsel %vm662, %v1426, 0.0
        %1428 = vadd.xlane.f32.xlu0 %v1427
        %v1429 = vpop.xlane.xlu0 %1428
        %v1430 = vmul.f32 %v1429, %v666
        %v1431 = vadd.f32 %v1430, 1e-05
        %v1432 = vrsqrt.pop %v1431
        %v1433 = vmul.f32 %v1431, %v1432
        %vm1434 = vcmp.eq.f32.partialorder %v1431, inf
        %v1435 = vsel %vm1434, %v1431, %v1433
        %vm1436 = vcmp.eq.f32.partialorder %v1431, 0.0
        %v1437 = vand.u32 %v1431, 2147483648
        %v1438 = vsel %vm1436, %v1437, %v1435
        %v1439 = vrcp.pop %v1438
        %v1440 = vmul.f32 %v1425, %v1439
        %v1442 = vlaneseq
        %v1443 = vshrl.u32 %v1442, 7
        %v1444 = vsub.s32 0, %v1443
        %v1445 = vrot.slane %v1419, %v1444
        %v1447 = vmul.f32 %v1445, %v1440
        %v1449 = vlaneseq
        %v1450 = vshrl.u32 %v1449, 7
        %v1451 = vsub.s32 0, %v1450
        %v1452 = vrot.slane %v1420, %v1451
        %v1454 = vadd.f32 %v1447, %v1452
        %v1455 = vpack.c.bf16 %v1454, %v1454
        %v1456 = vld [vmem:[#allocation21] sm:$0x1]
        %v1457 = vld [vmem:[#allocation24] sm:$0x1]
        %v1459 = vlaneseq
        %v1460 = vshrl.u32 %v1459, 7
        %v1461 = vsub.s32 0, %v1460
        %v1462 = vrot.slane %v1457, %v1461
        %v1464 = vadd.f32 %v1418, %v1462
        %v1465 = vld [vmem:[#allocation20] sm:$0xf]
        %v1466 = vld [vmem:[#allocation20 + $0x4] sm:$0xf]
        %v1467 = vld [vmem:[#allocation20 + $0x8] sm:$0xf]
        %v1468 = vld [vmem:[#allocation20 + $0xc] sm:$0xf]
        %v1470 = vlaneseq
        %v1471 = vshrl.u32 %v1470, 7
        %v1472 = vsub.s32 0, %v1471
        %v1473 = vrot.slane %v1456, %v1472
        %v1479 = vunpack.c.l.b16 %v1465
        %v1480 = vunpack.c.l.b16 %v1466
        %v1481 = vunpack.c.l.b16 %v1467
        %v1482 = vunpack.c.l.b16 %v1468
        %v1483 = vpack.c.b16 %v1480, %v1479
        %v1484 = vpack.c.b16 %v1482, %v1481
        %v1488 = vsel %vm662, %v1455, 0
        %1490 = vmatprep.subr.bf16.mxu0 0
        %1491 = vmatpush1.bf16.msra.mxu0 %v1483
        %1492 = vmatprep.subr.bf16.mxu0 0
        %1493 = vmatpush1.bf16.msra.mxu0 %v1484
        %1494 = vmatprep.subr.bf16.mxu0 0
        %1495 = vmatpush1.bf16.msra.mxu0 0
        %1496 = vmatprep.subr.bf16.mxu0 0
        %1497 = vmatpush1.bf16.msra.mxu0 0
        %1498 = vmatprep.subr.bf16.mxu0 0
        %1499 = vmatpush1.bf16.msra.mxu0 0
        %1500 = vmatprep.subr.bf16.mxu0 0
        %1501 = vmatpush1.bf16.msra.mxu0 0
        %1502 = vmatprep.subr.bf16.mxu0 0
        %1503 = vmatpush1.bf16.msra.mxu0 0
        %1504 = vmatprep.subr.bf16.mxu0 0
        %1505 = vmatpush1.bf16.msra.mxu0 0
        %1506 = vmatprep.subr.bf16.mxu0 0
        %1507 = vmatpush1.bf16.msra.mxu0 0
        %1508 = vmatprep.subr.bf16.mxu0 0
        %1509 = vmatpush1.bf16.msra.mxu0 0
        %1510 = vmatprep.subr.bf16.mxu0 0
        %1511 = vmatpush1.bf16.msra.mxu0 0
        %1512 = vmatprep.subr.bf16.mxu0 0
        %1513 = vmatpush1.bf16.msra.mxu0 0
        %1514 = vmatprep.subr.bf16.mxu0 0
        %1515 = vmatpush1.bf16.msra.mxu0 0
        %1516 = vmatprep.subr.bf16.mxu0 0
        %1517 = vmatpush1.bf16.msra.mxu0 0
        %1518 = vmatprep.subr.bf16.mxu0 0
        %1519 = vmatpush1.bf16.msra.mxu0 0
        %1520 = vmatprep.subr.bf16.mxu0 0
        %1521 = vmatpush1.bf16.msra.mxu0 0
        %1522 = vmatprep.mubr.bf16.mxu0 0
        %1523 = vmatmul.mubr.bf16.gmra.mrb[0].mxu0 %v1488
        %v1524 = vpop.f32.mrb[0].mxu0
        %v1525 = vadd.f32 %v1473, %v1524
        %v1526 = vpop.f32.mrb[0].mxu0
        %v1527 = vpop.f32.mrb[0].mxu0
        %v1528 = vpop.f32.mrb[0].mxu0
        %1529 = vdwg.mxu0
        %v1530 = vmul.f32 %v1525, 0.5
        %v1531 = vmul.f32 %v1525, 0.044715
        %v1532 = vmul.f32 %v1531, %v1525
        %v1533 = vmul.f32 %v1532, %v1525
        %v1534 = vadd.f32 %v1525, %v1533
        %v1535 = vmul.f32 %v1534, 0.7978845
        %v1536 = vtanh.pop %v1535
        %v1537 = vadd.f32 %v1536, 1.0
        %v1538 = vmul.f32 %v1530, %v1537
        %v1539 = vpack.c.bf16 %v1538, %v1538
        %v1540 = vld [vmem:[#allocation23] sm:$0xf]
        %v1541 = vld [vmem:[#allocation23 + $0x4] sm:$0xf]
        %v1542 = vld [vmem:[#allocation23 + $0x8] sm:$0xf]
        %v1543 = vld [vmem:[#allocation23 + $0xc] sm:$0xf]
        %v1544 = vld [vmem:[#allocation23 + $0x10] sm:$0xf]
        %v1545 = vld [vmem:[#allocation23 + $0x14] sm:$0xf]
        %v1546 = vld [vmem:[#allocation23 + $0x18] sm:$0xf]
        %v1547 = vld [vmem:[#allocation23 + $0x1c] sm:$0xf]
        %v1548 = vld [vmem:[#allocation23 + $0x20] sm:$0xf]
        %v1549 = vld [vmem:[#allocation23 + $0x24] sm:$0xf]
        %v1550 = vld [vmem:[#allocation23 + $0x28] sm:$0xf]
        %v1551 = vld [vmem:[#allocation23 + $0x2c] sm:$0xf]
        %v1552 = vld [vmem:[#allocation23 + $0x30] sm:$0xf]
        %v1553 = vld [vmem:[#allocation23 + $0x34] sm:$0xf]
        %v1554 = vld [vmem:[#allocation23 + $0x38] sm:$0xf]
        %v1555 = vld [vmem:[#allocation23 + $0x3c] sm:$0xf]
        %v1572 = vunpack.c.l.b16 %v1540
        %v1573 = vunpack.c.l.b16 %v1541
        %v1574 = vunpack.c.l.b16 %v1542
        %v1575 = vunpack.c.l.b16 %v1543
        %v1576 = vunpack.c.l.b16 %v1544
        %v1577 = vunpack.c.l.b16 %v1545
        %v1578 = vunpack.c.l.b16 %v1546
        %v1579 = vunpack.c.l.b16 %v1547
        %v1580 = vunpack.c.l.b16 %v1548
        %v1581 = vunpack.c.l.b16 %v1549
        %v1582 = vunpack.c.l.b16 %v1550
        %v1583 = vunpack.c.l.b16 %v1551
        %v1584 = vunpack.c.l.b16 %v1552
        %v1585 = vunpack.c.l.b16 %v1553
        %v1586 = vunpack.c.l.b16 %v1554
        %v1587 = vunpack.c.l.b16 %v1555
        %v1588 = vpack.c.b16 %v1573, %v1572
        %v1589 = vpack.c.b16 %v1575, %v1574
        %v1590 = vpack.c.b16 %v1577, %v1576
        %v1591 = vpack.c.b16 %v1579, %v1578
        %v1592 = vpack.c.b16 %v1581, %v1580
        %v1593 = vpack.c.b16 %v1583, %v1582
        %v1594 = vpack.c.b16 %v1585, %v1584
        %v1595 = vpack.c.b16 %v1587, %v1586
        %1604 = vmatprep.subr.bf16.mxu0 0
        %1605 = vmatpush1.bf16.msra.mxu0 %v1588
        %1606 = vmatprep.subr.bf16.mxu0 0
        %1607 = vmatpush1.bf16.msra.mxu0 %v1589
        %1608 = vmatprep.subr.bf16.mxu0 0
        %1609 = vmatpush1.bf16.msra.mxu0 %v1590
        %1610 = vmatprep.subr.bf16.mxu0 0
        %1611 = vmatpush1.bf16.msra.mxu0 %v1591
        %1612 = vmatprep.subr.bf16.mxu0 0
        %1613 = vmatpush1.bf16.msra.mxu0 %v1592
        %1614 = vmatprep.subr.bf16.mxu0 0
        %1615 = vmatpush1.bf16.msra.mxu0 %v1593
        %1616 = vmatprep.subr.bf16.mxu0 0
        %1617 = vmatpush1.bf16.msra.mxu0 %v1594
        %1618 = vmatprep.subr.bf16.mxu0 0
        %1619 = vmatpush1.bf16.msra.mxu0 %v1595
        %1620 = vmatprep.subr.bf16.mxu0 0
        %1621 = vmatpush1.bf16.msra.mxu0 0
        %1622 = vmatprep.subr.bf16.mxu0 0
        %1623 = vmatpush1.bf16.msra.mxu0 0
        %1624 = vmatprep.subr.bf16.mxu0 0
        %1625 = vmatpush1.bf16.msra.mxu0 0
        %1626 = vmatprep.subr.bf16.mxu0 0
        %1627 = vmatpush1.bf16.msra.mxu0 0
        %1628 = vmatprep.subr.bf16.mxu0 0
        %1629 = vmatpush1.bf16.msra.mxu0 0
        %1630 = vmatprep.subr.bf16.mxu0 0
        %1631 = vmatpush1.bf16.msra.mxu0 0
        %1632 = vmatprep.subr.bf16.mxu0 0
        %1633 = vmatpush1.bf16.msra.mxu0 0
        %1634 = vmatprep.subr.bf16.mxu0 0
        %1635 = vmatpush1.bf16.msra.mxu0 0
        %1636 = vmatprep.mubr.bf16.mxu0 0
        %1637 = vmatmul.mubr.bf16.gmra.mrb[0].mxu0 %v1539
        %v1638 = vpop.f32.mrb[0].mxu0
        %v1639 = vadd.f32 0.0, %v1638
        %v1640 = vpop.f32.mrb[0].mxu0
        %v1641 = vpop.f32.mrb[0].mxu0
        %v1642 = vpop.f32.mrb[0].mxu0
        %1643 = vdwg.mxu0
        %v1644 = vadd.f32 %v1464, %v1639
        %1645 = vst.msk [vmem:[%s657] sm:$0xff] %vm662, %v1644
        %s1646 = sand.u32 %s345, 1
        %s1647 = scalar_lea.sflag [#allocation5], %s1646
        %s1648 = sand.u32 %s345, 1
        %s1649 = smul.addr %s1648, 8
        %s1650 = scalar_lea.vmem [#allocation26], %s1649
        // Predicated region
        $region133: #{tpu_custom_call.1} parent=75 // pred_check
          %p1651 = pneg %p355
        $region134: #{tpu_custom_call.1} parent=75 // pred_check_branch
          %1653 = sbr.rel (%p1651) target = $region136
        $region135: #{tpu_custom_call.1} parent=75 // pred_region
          %s1655 = ssub.s32 128, 128
          %1656 = vsyncadd %s1647, %s1655
          %s1657 = smul.addr %s38, 128
          %s1658 = scalar_lea.hbm %s14, %s1657
          %s1660 = sshll.u32 %s1650, 4
          %s1661 = int_to_ptr.vmem [resolvable:$true] %s1660
          %1663 = dma.vmem_to_hbm [thread:$0]  %s1661, 128, %s1658, %s1647
        $region136: #{tpu_custom_call.1} parent=75 // pred_fallthru
          _
      $region76: #{tpu_custom_call.1} parent=5 // pred_fallthru
        _
      %p1664 = scmp.le.s32.totalorder 2, %s33
      // Predicated region
      $region137: #{tpu_custom_call.1} parent=5 // pred_check
        %p1665 = pneg %p1664
      $region138: #{tpu_custom_call.1} parent=5 // pred_check_branch
        %1667 = sbr.rel (%p1665) target = $region140
      $region139: #{tpu_custom_call.1} parent=5 // pred_region
        %s1668 = ssub.s32 %s33, 2
        // Predicated region
        $region141: #{tpu_custom_call.1} parent=139 // pred_check
          %p1669 = pneg %p361
        $region142: #{tpu_custom_call.1} parent=139 // pred_check_branch
          %1671 = sbr.rel (%p1669) target = $region144
        $region143: #{tpu_custom_call.1} parent=139 // pred_region
          %s1672 = sand.u32 %s346, 1
          %s1673 = scalar_lea.sflag [#allocation5], %s1672
          %s1674 = sand.u32 %s346, 1
          %s1675 = smul.addr %s1674, 8
          %s1676 = scalar_lea.vmem [#allocation26], %s1675
          %1677 = dma.done %s1673, 128
        $region144: #{tpu_custom_call.1} parent=139 // pred_fallthru
          _
      $region140: #{tpu_custom_call.1} parent=5 // pred_fallthru
        _
    $region6: #{tpu_custom_call.1} parent=1 // loop_footer
      %s37 = sadd.s32 1, %s33
    $region7: #{tpu_custom_call.1} parent=1 // loop_footer_branch
      %32 = sbr.rel target = $region3
    $region8: #{tpu_custom_call.1} parent=1 // loop_exit
      _
    %1678 = vsyncpa [#allocation4], 1
    %s1679 = scalar_lea.sflag [#allocation4], 1
    %1680 = vsyncpa %s1679, 1
    %1681 = vsyncpa [#allocation7], 1
    %1682 = vsyncpa [#allocation10], 1
    %1683 = vsyncpa [#allocation13], 1
    %1684 = vsyncpa [#allocation16], 1
    %1685 = vsyncpa [#allocation19], 1
    %1686 = vsyncpa [#allocation22], 1
    %1687 = vsyncpa [#allocation25], 1
    %1688 = vsyncpa [#allocation5], 1
    %s1689 = scalar_lea.sflag [#allocation5], 1
    %1690 = vsyncpa %s1689, 1

// kernel: tpu_custom_call.1
$region0: #{tpu_custom_call.1}
  #allocation0 [shape = 'u32[]', space=smem, size = 0x4, offset = 0x4, fixed_abs, tag = 'smem constant byte address 0x4 - core index']
  #allocation1 [shape = 'u32[144,128]{1,0:T(1,128)}', space=vmem, size = 0x12000, scoped, tag = 'internal scratch']
  #allocation2 [shape = 'bf16[8,32]{1,0:T(8,128)(2,1)}', space=vmem, size = 0x800, scoped, tag = 'scratch operand']
  %s0 = inlined_call_operand.hbm [shape: f32[2,8,32], index: 0, kind: input, shape index: {}]
  %s1 = inlined_call_operand.hbm [shape: f32[1,32], index: 1, kind: input, shape index: {}]
  %s2 = inlined_call_operand.hbm [shape: f32[1,32], index: 2, kind: input, shape index: {}]
  %s3 = inlined_call_operand.hbm [shape: bf16[32,32], index: 3, kind: input, shape index: {}]
  %s4 = inlined_call_operand.hbm [shape: bf16[32,32], index: 4, kind: input, shape index: {}]
  %s5 = inlined_call_operand.hbm [shape: bf16[32,32], index: 5, kind: input, shape index: {}]
  %s6 = inlined_call_operand.hbm [shape: bf16[32,32], index: 6, kind: input, shape index: {}]
  %s7 = inlined_call_operand.hbm [shape: f32[1,32], index: 7, kind: input, shape index: {}]
  %s8 = inlined_call_operand.hbm [shape: f32[1,32], index: 8, kind: input, shape index: {}]
  %s9 = inlined_call_operand.hbm [shape: f32[1,32], index: 9, kind: input, shape index: {}]
  %s10 = inlined_call_operand.hbm [shape: bf16[32,128], index: 10, kind: input, shape index: {}]
  %s11 = inlined_call_operand.hbm [shape: f32[1,128], index: 11, kind: input, shape index: {}]
  %s12 = inlined_call_operand.hbm [shape: bf16[128,32], index: 12, kind: input, shape index: {}]
  %s13 = inlined_call_operand.hbm [shape: f32[1,32], index: 13, kind: input, shape index: {}]
  %s14 = inlined_call_operand.hbm [shape: f32[2,8,32], index: 14, kind: output, shape index: {}]
  %s15 = sld [smem:[#allocation0]]
  $region145: #{tpu_custom_call.1} parent=0
    _
  %s17 = ssub.s32 1, %s15
  %s18 = scalar_select 0, %s17, %s15
  $region1: #{tpu_custom_call.1} parent=0
    #allocation3 [shape = 'u8[8192]{0}', space=vmem, size = 0x2000, scoped, tag = 'input window, operand 0']
    #allocation4 [shape = 's32[2]{0}', space=sflag, size = 0x8, scoped, tag = 'scoped memory for tpu_custom_call.1']
    #allocation5 [shape = 's32[2]{0}', space=sflag, size = 0x8, scoped, tag = 'scoped memory for tpu_custom_call.1']
    #allocation6 [shape = 'u8[512]{0}', space=vmem, size = 0x400, scoped, tag = 'input window, operand 1, single buffered']
    #allocation7 [shape = 's32[1]{0}', space=sflag, size = 0x4, scoped, tag = 'scoped memory for tpu_custom_call.1']
    #allocation8 [shape = 'u8[512]{0}', space=vmem, size = 0x400, scoped, tag = 'input window, operand 2, single buffered']
    #allocation9 [shape = 'u8[8192]{0}', space=vmem, size = 0x2000, scoped, tag = 'input window, operand 3, single buffered']
    #allocation10 [shape = 's32[1]{0}', space=sflag, size = 0x4, scoped, tag = 'scoped memory for tpu_custom_call.1']
    #allocation11 [shape = 'u8[8192]{0}', space=vmem, size = 0x2000, scoped, tag = 'input window, operand 4, single buffered']
    #allocation12 [shape = 'u8[8192]{0}', space=vmem, size = 0x2000, scoped, tag = 'input window, operand 5, single buffered']
    #allocation13 [shape = 's32[1]{0}', space=sflag, size = 0x4, scoped, tag = 'scoped memory for tpu_custom_call.1']
    #allocation14 [shape = 'u8[8192]{0}', space=vmem, size = 0x2000, scoped, tag = 'input window, operand 6, single buffered']
    #allocation15 [shape = 'u8[512]{0}', space=vmem, size = 0x400, scoped, tag = 'input window, operand 7, single buffered']
    #allocation16 [shape = 's32[1]{0}', space=sflag, size = 0x4, scoped, tag = 'scoped memory for tpu_custom_call.1']
    #allocation17 [shape = 'u8[512]{0}', space=vmem, size = 0x400, scoped, tag = 'input window, operand 8, single buffered']
    #allocation18 [shape = 'u8[512]{0}', space=vmem, size = 0x400, scoped, tag = 'input window, operand 9, single buffered']
    #allocation19 [shape = 's32[1]{0}', space=sflag, size = 0x4, scoped, tag = 'scoped memory for tpu_custom_call.1']
    #allocation20 [shape = 'u8[8192]{0}', space=vmem, size = 0x2000, scoped, tag = 'input window, operand 10, single buffered']
    #allocation21 [shape = 'u8[512]{0}', space=vmem, size = 0x400, scoped, tag = 'input window, operand 11, single buffered']
    #allocation22 [shape = 's32[1]{0}', space=sflag, size = 0x4, scoped, tag = 'scoped memory for tpu_custom_call.1']
    #allocation23 [shape = 'u8[32768]{0}', space=vmem, size = 0x8000, scoped, tag = 'input window, operand 12, single buffered']
    #allocation24 [shape = 'u8[512]{0}', space=vmem, size = 0x400, scoped, tag = 'input window, operand 13, single buffered']
    #allocation25 [shape = 's32[1]{0}', space=sflag, size = 0x4, scoped, tag = 'scoped memory for tpu_custom_call.1']
    #allocation26 [shape = 'u8[8192]{0}', space=vmem, size = 0x2000, scoped, tag = 'output window, operand 0']
    %19 = vsyncpa [#allocation4], 0
    %s20 = scalar_lea.sflag [#allocation4], 1
    %21 = vsyncpa %s20, 0
    %22 = vsyncpa [#allocation7], 0
    %23 = vsyncpa [#allocation10], 0
    %24 = vsyncpa [#allocation13], 0
    %25 = vsyncpa [#allocation16], 0
    %26 = vsyncpa [#allocation19], 0
    %27 = vsyncpa [#allocation22], 0
    %28 = vsyncpa [#allocation25], 0
    %29 = vsyncpa [#allocation5], 0
    %s30 = scalar_lea.sflag [#allocation5], 1
    %31 = vsyncpa %s30, 0
    loop: start=0, step=1, limit=4
    $region2: #{tpu_custom_call.1} parent=1 // loop_pre_header
      _
    $region3: #{tpu_custom_call.1} parent=1 // loop_header
      %s33 = sphi 0, %s37
      %p34 = scmp.ge.s32.totalorder %s33, 4
      %s43 = sphi 0, %s45
      %s46 = sphi 0, %s43
      %s47 = sphi 0, %s46
      %s63 = sphi 0, %s47
      %s67 = sphi 0, %s67
      %s69 = sphi 0, %s67
      %s70 = sphi 0, %s69
      %s84 = sphi 0, %s70
      %s88 = sphi 0, %s88
      %s90 = sphi 0, %s88
      %s91 = sphi 0, %s90
      %s105 = sphi 0, %s91
      %s109 = sphi 0, %s109
      %s111 = sphi 0, %s109
      %s112 = sphi 0, %s111
      %s126 = sphi 0, %s112
      %s130 = sphi 0, %s130
      %s132 = sphi 0, %s130
      %s133 = sphi 0, %s132
      %s147 = sphi 0, %s133
      %s151 = sphi 0, %s151
      %s153 = sphi 0, %s151
      %s154 = sphi 0, %s153
      %s168 = sphi 0, %s154
      %s172 = sphi 0, %s172
      %s174 = sphi 0, %s172
      %s175 = sphi 0, %s174
      %s189 = sphi 0, %s175
      %s193 = sphi 0, %s193
      %s195 = sphi 0, %s193
      %s196 = sphi 0, %s195
      %s210 = sphi 0, %s196
      %s214 = sphi 0, %s214
      %s216 = sphi 0, %s214
      %s217 = sphi 0, %s216
      %s231 = sphi 0, %s217
      %s235 = sphi 0, %s235
      %s237 = sphi 0, %s235
      %s238 = sphi 0, %s237
      %s252 = sphi 0, %s238
      %s256 = sphi 0, %s256
      %s258 = sphi 0, %s256
      %s259 = sphi 0, %s258
      %s273 = sphi 0, %s259
      %s277 = sphi 0, %s277
      %s279 = sphi 0, %s277
      %s280 = sphi 0, %s279
      %s294 = sphi 0, %s280
      %s298 = sphi 0, %s298
      %s300 = sphi 0, %s298
      %s301 = sphi 0, %s300
      %s315 = sphi 0, %s301
      %s319 = sphi 0, %s319
      %s321 = sphi 0, %s319
      %s322 = sphi 0, %s321
      %s336 = sphi 0, %s322
      %s342 = sphi 0, %s344
      %s345 = sphi 0, %s342
      %s346 = sphi 0, %s345
      %s362 = sphi 0, %s346
    $region4: #{tpu_custom_call.1} parent=1 // loop_header_branch
      %36 = sbr.rel (%p34) target = $region8
    $region5: #{tpu_custom_call.1} parent=1 // loop_body
      %s38 = ssub.s32 %s33, 1
      %s39 = ssub.s32 %s33, 2
      %s40 = sadd.s32 %s33, 1
      %s41 = ssub.s32 %s33, %s40
      %p42 = scmp.eq.s32.totalorder %s41, 0
      %s44 = sadd.s32 %s43, 1
      %s45 = scalar_select %p42, %s43, %s44
      %p48 = pneg %p42
      %p49 = scmp.eq.s32.totalorder %s33, 1
      %p50 = por %p48, %p49
      %p51 = scmp.ne.s32.totalorder %s43, %s46
      %p52 = scmp.eq.s32.totalorder %s33, 0
      %p53 = por %p51, %p52
      %p54 = scmp.ne.s32.totalorder %s43, %s46
      %p55 = scmp.eq.s32.totalorder %s38, 1
      %p56 = por %p54, %p55
      %p57 = scmp.ne.s32.totalorder %s46, %s47
      %p58 = scmp.eq.s32.totalorder %s38, 0
      %p59 = por %p57, %p58
      %p60 = scmp.ne.s32.totalorder %s46, %s47
      %p61 = scmp.eq.s32.totalorder %s39, 1
      %p62 = por %p60, %p61
      %p64 = scmp.ne.s32.totalorder %s47, %s63
      %p65 = scmp.eq.s32.totalorder %s39, 0
      %p66 = por %p64, %p65
      %s68 = sadd.s32 %s67, 1
      %p71 = scmp.eq.s32.totalorder %s33, 1
      %p72 = scmp.ne.s32.totalorder %s67, %s69
      %p73 = scmp.eq.s32.totalorder %s33, 0
      %p74 = por %p72, %p73
      %p75 = scmp.ne.s32.totalorder %s67, %s69
      %p76 = scmp.eq.s32.totalorder %s38, 1
      %p77 = por %p75, %p76
      %p78 = scmp.ne.s32.totalorder %s69, %s70
      %p79 = scmp.eq.s32.totalorder %s38, 0
      %p80 = por %p78, %p79
      %p81 = scmp.ne.s32.totalorder %s69, %s70
      %p82 = scmp.eq.s32.totalorder %s39, 1
      %p83 = por %p81, %p82
      %p85 = scmp.ne.s32.totalorder %s70, %s84
      %p86 = scmp.eq.s32.totalorder %s39, 0
      %p87 = por %p85, %p86
      %s89 = sadd.s32 %s88, 1
      %p92 = scmp.eq.s32.totalorder %s33, 1
      %p93 = scmp.ne.s32.totalorder %s88, %s90
      %p94 = scmp.eq.s32.totalorder %s33, 0
      %p95 = por %p93, %p94
      %p96 = scmp.ne.s32.totalorder %s88, %s90
      %p97 = scmp.eq.s32.totalorder %s38, 1
      %p98 = por %p96, %p97
      %p99 = scmp.ne.s32.totalorder %s90, %s91
      %p100 = scmp.eq.s32.totalorder %s38, 0
      %p101 = por %p99, %p100
      %p102 = scmp.ne.s32.totalorder %s90, %s91
      %p103 = scmp.eq.s32.totalorder %s39, 1
      %p104 = por %p102, %p103
      %p106 = scmp.ne.s32.totalorder %s91, %s105
      %p107 = scmp.eq.s32.totalorder %s39, 0
      %p108 = por %p106, %p107
      %s110 = sadd.s32 %s109, 1
      %p113 = scmp.eq.s32.totalorder %s33, 1
      %p114 = scmp.ne.s32.totalorder %s109, %s111
      %p115 = scmp.eq.s32.totalorder %s33, 0
      %p116 = por %p114, %p115
      %p117 = scmp.ne.s32.totalorder %s109, %s111
      %p118 = scmp.eq.s32.totalorder %s38, 1
      %p119 = por %p117, %p118
      %p120 = scmp.ne.s32.totalorder %s111, %s112
      %p121 = scmp.eq.s32.totalorder %s38, 0
      %p122 = por %p120, %p121
      %p123 = scmp.ne.s32.totalorder %s111, %s112
      %p124 = scmp.eq.s32.totalorder %s39, 1
      %p125 = por %p123, %p124
      %p127 = scmp.ne.s32.totalorder %s112, %s126
      %p128 = scmp.eq.s32.totalorder %s39, 0
      %p129 = por %p127, %p128
      %s131 = sadd.s32 %s130, 1
      %p134 = scmp.eq.s32.totalorder %s33, 1
      %p135 = scmp.ne.s32.totalorder %s130, %s132
      %p136 = scmp.eq.s32.totalorder %s33, 0
      %p137 = por %p135, %p136
      %p138 = scmp.ne.s32.totalorder %s130, %s132
      %p139 = scmp.eq.s32.totalorder %s38, 1
      %p140 = por %p138, %p139
      %p141 = scmp.ne.s32.totalorder %s132, %s133
      %p142 = scmp.eq.s32.totalorder %s38, 0
      %p143 = por %p141, %p142
      %p144 = scmp.ne.s32.totalorder %s132, %s133
      %p145 = scmp.eq.s32.totalorder %s39, 1
      %p146 = por %p144, %p145
      %p148 = scmp.ne.s32.totalorder %s133, %s147
      %p149 = scmp.eq.s32.totalorder %s39, 0
      %p150 = por %p148, %p149
      %s152 = sadd.s32 %s151, 1
      %p155 = scmp.eq.s32.totalorder %s33, 1
      %p156 = scmp.ne.s32.totalorder %s151, %s153
      %p157 = scmp.eq.s32.totalorder %s33, 0
      %p158 = por %p156, %p157
      %p159 = scmp.ne.s32.totalorder %s151, %s153
      %p160 = scmp.eq.s32.totalorder %s38, 1
      %p161 = por %p159, %p160
      %p162 = scmp.ne.s32.totalorder %s153, %s154
      %p163 = scmp.eq.s32.totalorder %s38, 0
      %p164 = por %p162, %p163
      %p165 = scmp.ne.s32.totalorder %s153, %s154
      %p166 = scmp.eq.s32.totalorder %s39, 1
      %p167 = por %p165, %p166
      %p169 = scmp.ne.s32.totalorder %s154, %s168
      %p170 = scmp.eq.s32.totalorder %s39, 0
      %p171 = por %p169, %p170
      %s173 = sadd.s32 %s172, 1
      %p176 = scmp.eq.s32.totalorder %s33, 1
      %p177 = scmp.ne.s32.totalorder %s172, %s174
      %p178 = scmp.eq.s32.totalorder %s33, 0
      %p179 = por %p177, %p178
      %p180 = scmp.ne.s32.totalorder %s172, %s174
      %p181 = scmp.eq.s32.totalorder %s38, 1
      %p182 = por %p180, %p181
      %p183 = scmp.ne.s32.totalorder %s174, %s175
      %p184 = scmp.eq.s32.totalorder %s38, 0
      %p185 = por %p183, %p184
      %p186 = scmp.ne.s32.totalorder %s174, %s175
      %p187 = scmp.eq.s32.totalorder %s39, 1
      %p188 = por %p186, %p187
      %p190 = scmp.ne.s32.totalorder %s175, %s189
      %p191 = scmp.eq.s32.totalorder %s39, 0
      %p192 = por %p190, %p191
      %s194 = sadd.s32 %s193, 1
      %p197 = scmp.eq.s32.totalorder %s33, 1
      %p198 = scmp.ne.s32.totalorder %s193, %s195
      %p199 = scmp.eq.s32.totalorder %s33, 0
      %p200 = por %p198, %p199
      %p201 = scmp.ne.s32.totalorder %s193, %s195
      %p202 = scmp.eq.s32.totalorder %s38, 1
      %p203 = por %p201, %p202
      %p204 = scmp.ne.s32.totalorder %s195, %s196
      %p205 = scmp.eq.s32.totalorder %s38, 0
      %p206 = por %p204, %p205
      %p207 = scmp.ne.s32.totalorder %s195, %s196
      %p208 = scmp.eq.s32.totalorder %s39, 1
      %p209 = por %p207, %p208
      %p211 = scmp.ne.s32.totalorder %s196, %s210
      %p212 = scmp.eq.s32.totalorder %s39, 0
      %p213 = por %p211, %p212
      %s215 = sadd.s32 %s214, 1
      %p218 = scmp.eq.s32.totalorder %s33, 1
      %p219 = scmp.ne.s32.totalorder %s214, %s216
      %p220 = scmp.eq.s32.totalorder %s33, 0
      %p221 = por %p219, %p220
      %p222 = scmp.ne.s32.totalorder %s214, %s216
      %p223 = scmp.eq.s32.totalorder %s38, 1
      %p224 = por %p222, %p223
      %p225 = scmp.ne.s32.totalorder %s216, %s217
      %p226 = scmp.eq.s32.totalorder %s38, 0
      %p227 = por %p225, %p226
      %p228 = scmp.ne.s32.totalorder %s216, %s217
      %p229 = scmp.eq.s32.totalorder %s39, 1
      %p230 = por %p228, %p229
      %p232 = scmp.ne.s32.totalorder %s217, %s231
      %p233 = scmp.eq.s32.totalorder %s39, 0
      %p234 = por %p232, %p233
      %s236 = sadd.s32 %s235, 1
      %p239 = scmp.eq.s32.totalorder %s33, 1
      %p240 = scmp.ne.s32.totalorder %s235, %s237
      %p241 = scmp.eq.s32.totalorder %s33, 0
      %p242 = por %p240, %p241
      %p243 = scmp.ne.s32.totalorder %s235, %s237
      %p244 = scmp.eq.s32.totalorder %s38, 1
      %p245 = por %p243, %p244
      %p246 = scmp.ne.s32.totalorder %s237, %s238
      %p247 = scmp.eq.s32.totalorder %s38, 0
      %p248 = por %p246, %p247
      %p249 = scmp.ne.s32.totalorder %s237, %s238
      %p250 = scmp.eq.s32.totalorder %s39, 1
      %p251 = por %p249, %p250
      %p253 = scmp.ne.s32.totalorder %s238, %s252
      %p254 = scmp.eq.s32.totalorder %s39, 0
      %p255 = por %p253, %p254
      %s257 = sadd.s32 %s256, 1
      %p260 = scmp.eq.s32.totalorder %s33, 1
      %p261 = scmp.ne.s32.totalorder %s256, %s258
      %p262 = scmp.eq.s32.totalorder %s33, 0
      %p263 = por %p261, %p262
      %p264 = scmp.ne.s32.totalorder %s256, %s258
      %p265 = scmp.eq.s32.totalorder %s38, 1
      %p266 = por %p264, %p265
      %p267 = scmp.ne.s32.totalorder %s258, %s259
      %p268 = scmp.eq.s32.totalorder %s38, 0
      %p269 = por %p267, %p268
      %p270 = scmp.ne.s32.totalorder %s258, %s259
      %p271 = scmp.eq.s32.totalorder %s39, 1
      %p272 = por %p270, %p271
      %p274 = scmp.ne.s32.totalorder %s259, %s273
      %p275 = scmp.eq.s32.totalorder %s39, 0
      %p276 = por %p274, %p275
      %s278 = sadd.s32 %s277, 1
      %p281 = scmp.eq.s32.totalorder %s33, 1
      %p282 = scmp.ne.s32.totalorder %s277, %s279
      %p283 = scmp.eq.s32.totalorder %s33, 0
      %p284 = por %p282, %p283
      %p285 = scmp.ne.s32.totalorder %s277, %s279
      %p286 = scmp.eq.s32.totalorder %s38, 1
      %p287 = por %p285, %p286
      %p288 = scmp.ne.s32.totalorder %s279, %s280
      %p289 = scmp.eq.s32.totalorder %s38, 0
      %p290 = por %p288, %p289
      %p291 = scmp.ne.s32.totalorder %s279, %s280
      %p292 = scmp.eq.s32.totalorder %s39, 1
      %p293 = por %p291, %p292
      %p295 = scmp.ne.s32.totalorder %s280, %s294
      %p296 = scmp.eq.s32.totalorder %s39, 0
      %p297 = por %p295, %p296
      %s299 = sadd.s32 %s298, 1
      %p302 = scmp.eq.s32.totalorder %s33, 1
      %p303 = scmp.ne.s32.totalorder %s298, %s300
      %p304 = scmp.eq.s32.totalorder %s33, 0
      %p305 = por %p303, %p304
      %p306 = scmp.ne.s32.totalorder %s298, %s300
      %p307 = scmp.eq.s32.totalorder %s38, 1
      %p308 = por %p306, %p307
      %p309 = scmp.ne.s32.totalorder %s300, %s301
      %p310 = scmp.eq.s32.totalorder %s38, 0
      %p311 = por %p309, %p310
      %p312 = scmp.ne.s32.totalorder %s300, %s301
      %p313 = scmp.eq.s32.totalorder %s39, 1
      %p314 = por %p312, %p313
      %p316 = scmp.ne.s32.totalorder %s301, %s315
      %p317 = scmp.eq.s32.totalorder %s39, 0
      %p318 = por %p316, %p317
      %s320 = sadd.s32 %s319, 1
      %p323 = scmp.eq.s32.totalorder %s33, 1
      %p324 = scmp.ne.s32.totalorder %s319, %s321
      %p325 = scmp.eq.s32.totalorder %s33, 0
      %p326 = por %p324, %p325
      %p327 = scmp.ne.s32.totalorder %s319, %s321
      %p328 = scmp.eq.s32.totalorder %s38, 1
      %p329 = por %p327, %p328
      %p330 = scmp.ne.s32.totalorder %s321, %s322
      %p331 = scmp.eq.s32.totalorder %s38, 0
      %p332 = por %p330, %p331
      %p333 = scmp.ne.s32.totalorder %s321, %s322
      %p334 = scmp.eq.s32.totalorder %s39, 1
      %p335 = por %p333, %p334
      %p337 = scmp.ne.s32.totalorder %s322, %s336
      %p338 = scmp.eq.s32.totalorder %s39, 0
      %p339 = por %p337, %p338
      %s340 = ssub.s32 %s33, %s40
      %p341 = scmp.eq.s32.totalorder %s340, 0
      %s343 = sadd.s32 %s342, 1
      %s344 = scalar_select %p341, %s342, %s343
      %p347 = pneg %p341
      %p348 = scmp.eq.s32.totalorder %s33, 1
      %p349 = por %p347, %p348
      %p350 = scmp.ne.s32.totalorder %s342, %s345
      %p351 = scmp.eq.s32.totalorder %s33, 0
      %p352 = por %p350, %p351
      %p353 = scmp.ne.s32.totalorder %s342, %s345
      %p354 = scmp.eq.s32.totalorder %s38, 1
      %p355 = por %p353, %p354
      %p356 = scmp.ne.s32.totalorder %s345, %s346
      %p357 = scmp.eq.s32.totalorder %s38, 0
      %p358 = por %p356, %p357
      %p359 = scmp.ne.s32.totalorder %s345, %s346
      %p360 = scmp.eq.s32.totalorder %s39, 1
      %p361 = por %p359, %p360
      %p363 = scmp.ne.s32.totalorder %s346, %s362
      %p364 = scmp.eq.s32.totalorder %s39, 0
      %p365 = por %p363, %p364
      %p366 = scmp.le.s32.totalorder 1, %s33
      %p367 = scmp.lt.s32.totalorder %s33, 3
      %p368 = pnand %p366, %p367
      %p369 = pneg %p368
      // Predicated region
      $region9: #{tpu_custom_call.1} parent=5 // pred_check
        _
      $region10: #{tpu_custom_call.1} parent=5 // pred_check_branch
        %371 = sbr.rel (%p368) target = $region12
      $region11: #{tpu_custom_call.1} parent=5 // pred_region
        %s372 = ssub.s32 %s33, 1
        // Predicated region
        $region13: #{tpu_custom_call.1} parent=11 // pred_check
          %p373 = pneg %p80
        $region14: #{tpu_custom_call.1} parent=11 // pred_check_branch
          %375 = sbr.rel (%p373) target = $region16
        $region15: #{tpu_custom_call.1} parent=11 // pred_region
          %s377 = ssub.s32 16, 16
          %378 = vsyncadd [#allocation7], %s377
          %s380 = sshll.u32 [#allocation6], 4
          %s381 = int_to_ptr.vmem [resolvable:$true] %s380
          %383 = dma.hbm_to_vmem [thread:$0]  %s1, 16, %s381, [#allocation7]
        $region16: #{tpu_custom_call.1} parent=11 // pred_fallthru
          _
        // Predicated region
        $region17: #{tpu_custom_call.1} parent=11 // pred_check
          %p384 = pneg %p101
        $region18: #{tpu_custom_call.1} parent=11 // pred_check_branch
          %386 = sbr.rel (%p384) target = $region20
        $region19: #{tpu_custom_call.1} parent=11 // pred_region
          %s388 = ssub.s32 16, 16
          %389 = vsyncadd [#allocation7], %s388
          %s391 = sshll.u32 [#allocation8], 4
          %s392 = int_to_ptr.vmem [resolvable:$true] %s391
          %394 = dma.hbm_to_vmem [thread:$0]  %s2, 16, %s392, [#allocation7]
        $region20: #{tpu_custom_call.1} parent=11 // pred_fallthru
          _
        // Predicated region
        $region21: #{tpu_custom_call.1} parent=11 // pred_check
          %p395 = pneg %p122
        $region22: #{tpu_custom_call.1} parent=11 // pred_check_branch
          %397 = sbr.rel (%p395) target = $region24
        $region23: #{tpu_custom_call.1} parent=11 // pred_region
          %s399 = ssub.s32 256, 256
          %400 = vsyncadd [#allocation10], %s399
          %s401 = sshll.u32 [#allocation9], 4
          %s402 = int_to_ptr.vmem [resolvable:$true] %s401
          %407 = dma.hbm_to_vmem [thread:$0]  %s3, 256, %s402, [#allocation10], 64, 64, 4
        $region24: #{tpu_custom_call.1} parent=11 // pred_fallthru
          _
        // Predicated region
        $region25: #{tpu_custom_call.1} parent=11 // pred_check
          %p408 = pneg %p143
        $region26: #{tpu_custom_call.1} parent=11 // pred_check_branch
          %410 = sbr.rel (%p408) target = $region28
        $region27: #{tpu_custom_call.1} parent=11 // pred_region
          %s412 = ssub.s32 256, 256
          %413 = vsyncadd [#allocation10], %s412
          %s414 = sshll.u32 [#allocation11], 4
          %s415 = int_to_ptr.vmem [resolvable:$true] %s414
          %420 = dma.hbm_to_vmem [thread:$0]  %s4, 256, %s415, [#allocation10], 64, 64, 4
        $region28: #{tpu_custom_call.1} parent=11 // pred_fallthru
          _
        // Predicated region
        $region29: #{tpu_custom_call.1} parent=11 // pred_check
          %p421 = pneg %p164
        $region30: #{tpu_custom_call.1} parent=11 // pred_check_branch
          %423 = sbr.rel (%p421) target = $region32
        $region31: #{tpu_custom_call.1} parent=11 // pred_region
          %s425 = ssub.s32 256, 256
          %426 = vsyncadd [#allocation13], %s425
          %s427 = sshll.u32 [#allocation12], 4
          %s428 = int_to_ptr.vmem [resolvable:$true] %s427
          %433 = dma.hbm_to_vmem [thread:$0]  %s5, 256, %s428, [#allocation13], 64, 64, 4
        $region32: #{tpu_custom_call.1} parent=11 // pred_fallthru
          _
        // Predicated region
        $region33: #{tpu_custom_call.1} parent=11 // pred_check
          %p434 = pneg %p185
        $region34: #{tpu_custom_call.1} parent=11 // pred_check_branch
          %436 = sbr.rel (%p434) target = $region36
        $region35: #{tpu_custom_call.1} parent=11 // pred_region
          %s438 = ssub.s32 256, 256
          %439 = vsyncadd [#allocation13], %s438
          %s440 = sshll.u32 [#allocation14], 4
          %s441 = int_to_ptr.vmem [resolvable:$true] %s440
          %446 = dma.hbm_to_vmem [thread:$0]  %s6, 256, %s441, [#allocation13], 64, 64, 4
        $region36: #{tpu_custom_call.1} parent=11 // pred_fallthru
          _
        // Predicated region
        $region37: #{tpu_custom_call.1} parent=11 // pred_check
          %p447 = pneg %p206
        $region38: #{tpu_custom_call.1} parent=11 // pred_check_branch
          %449 = sbr.rel (%p447) target = $region40
        $region39: #{tpu_custom_call.1} parent=11 // pred_region
          %s451 = ssub.s32 16, 16
          %452 = vsyncadd [#allocation16], %s451
          %s454 = sshll.u32 [#allocation15], 4
          %s455 = int_to_ptr.vmem [resolvable:$true] %s454
          %457 = dma.hbm_to_vmem [thread:$0]  %s7, 16, %s455, [#allocation16]
        $region40: #{tpu_custom_call.1} parent=11 // pred_fallthru
          _
        // Predicated region
        $region41: #{tpu_custom_call.1} parent=11 // pred_check
          %p458 = pneg %p227
        $region42: #{tpu_custom_call.1} parent=11 // pred_check_branch
          %460 = sbr.rel (%p458) target = $region44
        $region43: #{tpu_custom_call.1} parent=11 // pred_region
          %s462 = ssub.s32 16, 16
          %463 = vsyncadd [#allocation16], %s462
          %s465 = sshll.u32 [#allocation17], 4
          %s466 = int_to_ptr.vmem [resolvable:$true] %s465
          %468 = dma.hbm_to_vmem [thread:$0]  %s8, 16, %s466, [#allocation16]
        $region44: #{tpu_custom_call.1} parent=11 // pred_fallthru
          _
        // Predicated region
        $region45: #{tpu_custom_call.1} parent=11 // pred_check
          %p469 = pneg %p248
        $region46: #{tpu_custom_call.1} parent=11 // pred_check_branch
          %471 = sbr.rel (%p469) target = $region48
        $region47: #{tpu_custom_call.1} parent=11 // pred_region
          %s473 = ssub.s32 16, 16
          %474 = vsyncadd [#allocation19], %s473
          %s476 = sshll.u32 [#allocation18], 4
          %s477 = int_to_ptr.vmem [resolvable:$true] %s476
          %479 = dma.hbm_to_vmem [thread:$0]  %s9, 16, %s477, [#allocation19]
        $region48: #{tpu_custom_call.1} parent=11 // pred_fallthru
          _
        // Predicated region
        $region49: #{tpu_custom_call.1} parent=11 // pred_check
          %p480 = pneg %p269
        $region50: #{tpu_custom_call.1} parent=11 // pred_check_branch
          %482 = sbr.rel (%p480) target = $region52
        $region51: #{tpu_custom_call.1} parent=11 // pred_region
          %s484 = ssub.s32 256, 256
          %485 = vsyncadd [#allocation19], %s484
          %s486 = sshll.u32 [#allocation20], 4
          %s487 = int_to_ptr.vmem [resolvable:$true] %s486
          %492 = dma.hbm_to_vmem [thread:$0]  %s10, 256, %s487, [#allocation19], 64, 64, 4
        $region52: #{tpu_custom_call.1} parent=11 // pred_fallthru
          _
        // Predicated region
        $region53: #{tpu_custom_call.1} parent=11 // pred_check
          %p493 = pneg %p290
        $region54: #{tpu_custom_call.1} parent=11 // pred_check_branch
          %495 = sbr.rel (%p493) target = $region56
        $region55: #{tpu_custom_call.1} parent=11 // pred_region
          %s497 = ssub.s32 16, 16
          %498 = vsyncadd [#allocation22], %s497
          %s500 = sshll.u32 [#allocation21], 4
          %s501 = int_to_ptr.vmem [resolvable:$true] %s500
          %503 = dma.hbm_to_vmem [thread:$0]  %s11, 16, %s501, [#allocation22]
        $region56: #{tpu_custom_call.1} parent=11 // pred_fallthru
          _
        // Predicated region
        $region57: #{tpu_custom_call.1} parent=11 // pred_check
          %p504 = pneg %p311
        $region58: #{tpu_custom_call.1} parent=11 // pred_check_branch
          %506 = sbr.rel (%p504) target = $region60
        $region59: #{tpu_custom_call.1} parent=11 // pred_region
          %s508 = ssub.s32 1024, 1024
          %509 = vsyncadd [#allocation22], %s508
          %s510 = sshll.u32 [#allocation23], 4
          %s511 = int_to_ptr.vmem [resolvable:$true] %s510
          %516 = dma.hbm_to_vmem [thread:$0]  %s12, 1024, %s511, [#allocation22], 64, 64, 4
        $region60: #{tpu_custom_call.1} parent=11 // pred_fallthru
          _
        // Predicated region
        $region61: #{tpu_custom_call.1} parent=11 // pred_check
          %p517 = pneg %p332
        $region62: #{tpu_custom_call.1} parent=11 // pred_check_branch
          %519 = sbr.rel (%p517) target = $region64
        $region63: #{tpu_custom_call.1} parent=11 // pred_region
          %s521 = ssub.s32 16, 16
          %522 = vsyncadd [#allocation25], %s521
          %s524 = sshll.u32 [#allocation24], 4
          %s525 = int_to_ptr.vmem [resolvable:$true] %s524
          %527 = dma.hbm_to_vmem [thread:$0]  %s13, 16, %s525, [#allocation25]
        $region64: #{tpu_custom_call.1} parent=11 // pred_fallthru
          _
      $region12: #{tpu_custom_call.1} parent=5 // pred_fallthru
        _
      %p528 = scmp.lt.s32.totalorder %s33, 2
      // Predicated region
      $region65: #{tpu_custom_call.1} parent=5 // pred_check
        %p529 = pneg %p528
      $region66: #{tpu_custom_call.1} parent=5 // pred_check_branch
        %531 = sbr.rel (%p529) target = $region68
      $region67: #{tpu_custom_call.1} parent=5 // pred_region
        // Predicated region
        $region69: #{tpu_custom_call.1} parent=67 // pred_check
          %p532 = pneg %p53
        $region70: #{tpu_custom_call.1} parent=67 // pred_check_branch
          %534 = sbr.rel (%p532) target = $region72
        $region71: #{tpu_custom_call.1} parent=67 // pred_region
          %s535 = sand.u32 %s43, 1
          %s536 = scalar_lea.sflag [#allocation4], %s535
          %s537 = sand.u32 %s43, 1
          %s538 = smul.addr %s537, 8
          %s539 = scalar_lea.vmem [#allocation3], %s538
          %s541 = ssub.s32 128, 128
          %542 = vsyncadd %s536, %s541
          %s543 = smul.addr %s33, 128
          %s544 = scalar_lea.hbm %s0, %s543
          %s546 = sshll.u32 %s539, 4
          %s547 = int_to_ptr.vmem [resolvable:$true] %s546
          %549 = dma.hbm_to_vmem [thread:$0]  %s544, 128, %s547, %s536
        $region72: #{tpu_custom_call.1} parent=67 // pred_fallthru
          _
      $region68: #{tpu_custom_call.1} parent=5 // pred_fallthru
        _
      %p550 = scmp.le.s32.totalorder 1, %s33
      %p551 = scmp.lt.s32.totalorder %s33, 3
      %p552 = pnand %p550, %p551
      %p553 = pneg %p552
      // Predicated region
      $region73: #{tpu_custom_call.1} parent=5 // pred_check
        _
      $region74: #{tpu_custom_call.1} parent=5 // pred_check_branch
        %555 = sbr.rel (%p552) target = $region76
      $region75: #{tpu_custom_call.1} parent=5 // pred_region
        %s556 = ssub.s32 %s33, 1
        %s557 = sand.u32 %s46, 1
        %s558 = scalar_lea.sflag [#allocation4], %s557
        %s559 = sand.u32 %s46, 1
        %s560 = smul.addr %s559, 8
        %s561 = scalar_lea.vmem [#allocation3], %s560
        // Predicated region
        $region77: #{tpu_custom_call.1} parent=75 // pred_check
          %p562 = pneg %p59
        $region78: #{tpu_custom_call.1} parent=75 // pred_check_branch
          %564 = sbr.rel (%p562) target = $region80
        $region79: #{tpu_custom_call.1} parent=75 // pred_region
          %565 = dma.done %s558, 128
        $region80: #{tpu_custom_call.1} parent=75 // pred_fallthru
          _
        // Predicated region
        $region81: #{tpu_custom_call.1} parent=75 // pred_check
          %p566 = pneg %p80
        $region82: #{tpu_custom_call.1} parent=75 // pred_check_branch
          %568 = sbr.rel (%p566) target = $region84
        $region83: #{tpu_custom_call.1} parent=75 // pred_region
          %569 = dma.done [#allocation7], 16
        $region84: #{tpu_custom_call.1} parent=75 // pred_fallthru
          _
        // Predicated region
        $region85: #{tpu_custom_call.1} parent=75 // pred_check
          %p570 = pneg %p101
        $region86: #{tpu_custom_call.1} parent=75 // pred_check_branch
          %572 = sbr.rel (%p570) target = $region88
        $region87: #{tpu_custom_call.1} parent=75 // pred_region
          %573 = dma.done [#allocation7], 16
        $region88: #{tpu_custom_call.1} parent=75 // pred_fallthru
          _
        // Predicated region
        $region89: #{tpu_custom_call.1} parent=75 // pred_check
          %p574 = pneg %p122
        $region90: #{tpu_custom_call.1} parent=75 // pred_check_branch
          %576 = sbr.rel (%p574) target = $region92
        $region91: #{tpu_custom_call.1} parent=75 // pred_region
          %577 = dma.done [#allocation10], 256
        $region92: #{tpu_custom_call.1} parent=75 // pred_fallthru
          _
        // Predicated region
        $region93: #{tpu_custom_call.1} parent=75 // pred_check
          %p578 = pneg %p143
        $region94: #{tpu_custom_call.1} parent=75 // pred_check_branch
          %580 = sbr.rel (%p578) target = $region96
        $region95: #{tpu_custom_call.1} parent=75 // pred_region
          %581 = dma.done [#allocation10], 256
        $region96: #{tpu_custom_call.1} parent=75 // pred_fallthru
          _
        // Predicated region
        $region97: #{tpu_custom_call.1} parent=75 // pred_check
          %p582 = pneg %p164
        $region98: #{tpu_custom_call.1} parent=75 // pred_check_branch
          %584 = sbr.rel (%p582) target = $region100
        $region99: #{tpu_custom_call.1} parent=75 // pred_region
          %585 = dma.done [#allocation13], 256
        $region100: #{tpu_custom_call.1} parent=75 // pred_fallthru
          _
        // Predicated region
        $region101: #{tpu_custom_call.1} parent=75 // pred_check
          %p586 = pneg %p185
        $region102: #{tpu_custom_call.1} parent=75 // pred_check_branch
          %588 = sbr.rel (%p586) target = $region104
        $region103: #{tpu_custom_call.1} parent=75 // pred_region
          %589 = dma.done [#allocation13], 256
        $region104: #{tpu_custom_call.1} parent=75 // pred_fallthru
          _
        // Predicated region
        $region105: #{tpu_custom_call.1} parent=75 // pred_check
          %p590 = pneg %p206
        $region106: #{tpu_custom_call.1} parent=75 // pred_check_branch
          %592 = sbr.rel (%p590) target = $region108
        $region107: #{tpu_custom_call.1} parent=75 // pred_region
          %593 = dma.done [#allocation16], 16
        $region108: #{tpu_custom_call.1} parent=75 // pred_fallthru
          _
        // Predicated region
        $region109: #{tpu_custom_call.1} parent=75 // pred_check
          %p594 = pneg %p227
        $region110: #{tpu_custom_call.1} parent=75 // pred_check_branch
          %596 = sbr.rel (%p594) target = $region112
        $region111: #{tpu_custom_call.1} parent=75 // pred_region
          %597 = dma.done [#allocation16], 16
        $region112: #{tpu_custom_call.1} parent=75 // pred_fallthru
          _
        // Predicated region
        $region113: #{tpu_custom_call.1} parent=75 // pred_check
          %p598 = pneg %p248
        $region114: #{tpu_custom_call.1} parent=75 // pred_check_branch
          %600 = sbr.rel (%p598) target = $region116
        $region115: #{tpu_custom_call.1} parent=75 // pred_region
          %601 = dma.done [#allocation19], 16
        $region116: #{tpu_custom_call.1} parent=75 // pred_fallthru
          _
        // Predicated region
        $region117: #{tpu_custom_call.1} parent=75 // pred_check
          %p602 = pneg %p269
        $region118: #{tpu_custom_call.1} parent=75 // pred_check_branch
          %604 = sbr.rel (%p602) target = $region120
        $region119: #{tpu_custom_call.1} parent=75 // pred_region
          %605 = dma.done [#allocation19], 256
        $region120: #{tpu_custom_call.1} parent=75 // pred_fallthru
          _
        // Predicated region
        $region121: #{tpu_custom_call.1} parent=75 // pred_check
          %p606 = pneg %p290
        $region122: #{tpu_custom_call.1} parent=75 // pred_check_branch
          %608 = sbr.rel (%p606) target = $region124
        $region123: #{tpu_custom_call.1} parent=75 // pred_region
          %609 = dma.done [#allocation22], 16
        $region124: #{tpu_custom_call.1} parent=75 // pred_fallthru
          _
        // Predicated region
        $region125: #{tpu_custom_call.1} parent=75 // pred_check
          %p610 = pneg %p311
        $region126: #{tpu_custom_call.1} parent=75 // pred_check_branch
          %612 = sbr.rel (%p610) target = $region128
        $region127: #{tpu_custom_call.1} parent=75 // pred_region
          %613 = dma.done [#allocation22], 1024
        $region128: #{tpu_custom_call.1} parent=75 // pred_fallthru
          _
        // Predicated region
        $region129: #{tpu_custom_call.1} parent=75 // pred_check
          %p614 = pneg %p332
        $region130: #{tpu_custom_call.1} parent=75 // pred_check_branch
          %616 = sbr.rel (%p614) target = $region132
        $region131: #{tpu_custom_call.1} parent=75 // pred_region
          %617 = dma.done [#allocation25], 16
        $region132: #{tpu_custom_call.1} parent=75 // pred_fallthru
          _
        %s618 = sand.u32 %s46, 1
        %s619 = scalar_lea.sflag [#allocation4], %s618
        %s620 = sand.u32 %s46, 1
        %s621 = smul.addr %s620, 8
        %s622 = scalar_lea.vmem [#allocation3], %s621
        %p623 = pneg %p59
        %p624 = pneg %p56
        %p625 = pneg %p80
        %p626 = pneg %p77
        %p627 = pneg %p101
        %p628 = pneg %p98
        %p629 = pneg %p122
        %p630 = pneg %p119
        %p631 = pneg %p143
        %p632 = pneg %p140
        %p633 = pneg %p164
        %p634 = pneg %p161
        %p635 = pneg %p185
        %p636 = pneg %p182
        %p637 = pneg %p206
        %p638 = pneg %p203
        %p639 = pneg %p227
        %p640 = pneg %p224
        %p641 = pneg %p248
        %p642 = pneg %p245
        %p643 = pneg %p269
        %p644 = pneg %p266
        %p645 = pneg %p290
        %p646 = pneg %p287
        %p647 = pneg %p311
        %p648 = pneg %p308
        %p649 = pneg %p332
        %p650 = pneg %p329
        %p651 = pneg %p358
        %p652 = pneg %p355
        %s653 = sand.u32 %s345, 1
        %s654 = scalar_lea.sflag [#allocation5], %s653
        %s655 = sand.u32 %s345, 1
        %s656 = smul.addr %s655, 8
        %s657 = scalar_lea.vmem [#allocation26], %s656
        %v659 = vld [vmem:[%s561] sm:$0xff]
        %v660 = vld [vmem:[#allocation6] sm:$0x1]
        %v661 = vld [vmem:[#allocation8] sm:$0x1]
        %vm662 = vcmask 261120
        %v663 = vsel %vm662, %v659, 0.0
        %664 = vadd.xlane.f32.xlu0 %v663
        %v665 = vpop.xlane.xlu0 %664
        %v666 = vrcp.pop 32.0
        %v667 = vmul.f32 %v665, %v666
        %v668 = vsub.f32 %v659, %v667
        %v669 = vmul.f32 %v668, %v668
        %v670 = vsel %vm662, %v669, 0.0
        %671 = vadd.xlane.f32.xlu0 %v670
        %v672 = vpop.xlane.xlu0 %671
        %v673 = vmul.f32 %v672, %v666
        %v674 = vadd.f32 %v673, 1e-05
        %v675 = vrsqrt.pop %v674
        %v676 = vmul.f32 %v674, %v675
        %vm677 = vcmp.eq.f32.partialorder %v674, inf
        %v678 = vsel %vm677, %v674, %v676
        %vm679 = vcmp.eq.f32.partialorder %v674, 0.0
        %v680 = vand.u32 %v674, 2147483648
        %v681 = vsel %vm679, %v680, %v678
        %v682 = vrcp.pop %v681
        %v683 = vmul.f32 %v668, %v682
        %v685 = vlaneseq
        %v686 = vshrl.u32 %v685, 7
        %v687 = vsub.s32 0, %v686
        %v688 = vrot.slane %v660, %v687
        %v690 = vmul.f32 %v688, %v683
        %v692 = vlaneseq
        %v693 = vshrl.u32 %v692, 7
        %v694 = vsub.s32 0, %v693
        %v695 = vrot.slane %v661, %v694
        %v697 = vadd.f32 %v690, %v695
        %v698 = vpack.c.bf16 %v697, %v697
        %v699 = vld [vmem:[#allocation9] sm:$0xf]
        %v700 = vld [vmem:[#allocation9 + $0x4] sm:$0xf]
        %v701 = vld [vmem:[#allocation9 + $0x8] sm:$0xf]
        %v702 = vld [vmem:[#allocation9 + $0xc] sm:$0xf]
        %v707 = vunpack.c.l.b16 %v699
        %v708 = vunpack.c.l.b16 %v700
        %v709 = vunpack.c.l.b16 %v701
        %v710 = vunpack.c.l.b16 %v702
        %v711 = vpack.c.b16 %v708, %v707
        %v712 = vpack.c.b16 %v710, %v709
        %v716 = vsel %vm662, %v698, 0
        %718 = vmatprep.subr.bf16.mxu0 0
        %719 = vmatpush1.bf16.msra.mxu0 %v711
        %720 = vmatprep.subr.bf16.mxu0 0
        %721 = vmatpush1.bf16.msra.mxu0 %v712
        %722 = vmatprep.subr.bf16.mxu0 0
        %723 = vmatpush1.bf16.msra.mxu0 0
        %724 = vmatprep.subr.bf16.mxu0 0
        %725 = vmatpush1.bf16.msra.mxu0 0
        %726 = vmatprep.subr.bf16.mxu0 0
        %727 = vmatpush1.bf16.msra.mxu0 0
        %728 = vmatprep.subr.bf16.mxu0 0
        %729 = vmatpush1.bf16.msra.mxu0 0
        %730 = vmatprep.subr.bf16.mxu0 0
        %731 = vmatpush1.bf16.msra.mxu0 0
        %732 = vmatprep.subr.bf16.mxu0 0
        %733 = vmatpush1.bf16.msra.mxu0 0
        %734 = vmatprep.subr.bf16.mxu0 0
        %735 = vmatpush1.bf16.msra.mxu0 0
        %736 = vmatprep.subr.bf16.mxu0 0
        %737 = vmatpush1.bf16.msra.mxu0 0
        %738 = vmatprep.subr.bf16.mxu0 0
        %739 = vmatpush1.bf16.msra.mxu0 0
        %740 = vmatprep.subr.bf16.mxu0 0
        %741 = vmatpush1.bf16.msra.mxu0 0
        %742 = vmatprep.subr.bf16.mxu0 0
        %743 = vmatpush1.bf16.msra.mxu0 0
        %744 = vmatprep.subr.bf16.mxu0 0
        %745 = vmatpush1.bf16.msra.mxu0 0
        %746 = vmatprep.subr.bf16.mxu0 0
        %747 = vmatpush1.bf16.msra.mxu0 0
        %748 = vmatprep.subr.bf16.mxu0 0
        %749 = vmatpush1.bf16.msra.mxu0 0
        %750 = vmatprep.mubr.bf16.mxu0 0
        %751 = vmatmul.mubr.bf16.gmra.mrb[0].mxu0 %v716
        %v752 = vpop.f32.mrb[0].mxu0
        %v753 = vadd.f32 0.0, %v752
        %v754 = vpop.f32.mrb[0].mxu0
        %v755 = vpop.f32.mrb[0].mxu0
        %v756 = vpop.f32.mrb[0].mxu0
        %757 = vdwg.mxu0
        %v758 = vpack.c.bf16 %v753, %v753
        %v759 = vld [vmem:[#allocation11] sm:$0xf]
        %v760 = vld [vmem:[#allocation11 + $0x4] sm:$0xf]
        %v761 = vld [vmem:[#allocation11 + $0x8] sm:$0xf]
        %v762 = vld [vmem:[#allocation11 + $0xc] sm:$0xf]
        %v767 = vunpack.c.l.b16 %v759
        %v768 = vunpack.c.l.b16 %v760
        %v769 = vunpack.c.l.b16 %v761
        %v770 = vunpack.c.l.b16 %v762
        %v771 = vpack.c.b16 %v768, %v767
        %v772 = vpack.c.b16 %v770, %v769
        %775 = vmatprep.subr.bf16.mxu0 0
        %776 = vmatpush1.bf16.msra.mxu0 %v771
        %777 = vmatprep.subr.bf16.mxu0 0
        %778 = vmatpush1.bf16.msra.mxu0 %v772
        %779 = vmatprep.subr.bf16.mxu0 0
        %780 = vmatpush1.bf16.msra.mxu0 0
        %781 = vmatprep.subr.bf16.mxu0 0
        %782 = vmatpush1.bf16.msra.mxu0 0
        %783 = vmatprep.subr.bf16.mxu0 0
        %784 = vmatpush1.bf16.msra.mxu0 0
        %785 = vmatprep.subr.bf16.mxu0 0
        %786 = vmatpush1.bf16.msra.mxu0 0
        %787 = vmatprep.subr.bf16.mxu0 0
        %788 = vmatpush1.bf16.msra.mxu0 0
        %789 = vmatprep.subr.bf16.mxu0 0
        %790 = vmatpush1.bf16.msra.mxu0 0
        %791 = vmatprep.subr.bf16.mxu0 0
        %792 = vmatpush1.bf16.msra.mxu0 0
        %793 = vmatprep.subr.bf16.mxu0 0
        %794 = vmatpush1.bf16.msra.mxu0 0
        %795 = vmatprep.subr.bf16.mxu0 0
        %796 = vmatpush1.bf16.msra.mxu0 0
        %797 = vmatprep.subr.bf16.mxu0 0
        %798 = vmatpush1.bf16.msra.mxu0 0
        %799 = vmatprep.subr.bf16.mxu0 0
        %800 = vmatpush1.bf16.msra.mxu0 0
        %801 = vmatprep.subr.bf16.mxu0 0
        %802 = vmatpush1.bf16.msra.mxu0 0
        %803 = vmatprep.subr.bf16.mxu0 0
        %804 = vmatpush1.bf16.msra.mxu0 0
        %805 = vmatprep.subr.bf16.mxu0 0
        %806 = vmatpush1.bf16.msra.mxu0 0
        %807 = vmatprep.mubr.bf16.mxu0 0
        %808 = vmatmul.mubr.bf16.gmra.mrb[0].mxu0 %v716
        %v809 = vpop.f32.mrb[0].mxu0
        %v810 = vadd.f32 0.0, %v809
        %v811 = vpop.f32.mrb[0].mxu0
        %v812 = vpop.f32.mrb[0].mxu0
        %v813 = vpop.f32.mrb[0].mxu0
        %814 = vdwg.mxu0
        %v815 = vpack.c.bf16 %v810, %v810
        %v816 = vld [vmem:[#allocation12] sm:$0xf]
        %v817 = vld [vmem:[#allocation12 + $0x4] sm:$0xf]
        %v818 = vld [vmem:[#allocation12 + $0x8] sm:$0xf]
        %v819 = vld [vmem:[#allocation12 + $0xc] sm:$0xf]
        %v824 = vunpack.c.l.b16 %v816
        %v825 = vunpack.c.l.b16 %v817
        %v826 = vunpack.c.l.b16 %v818
        %v827 = vunpack.c.l.b16 %v819
        %v828 = vpack.c.b16 %v825, %v824
        %v829 = vpack.c.b16 %v827, %v826
        %832 = vmatprep.subr.bf16.mxu0 0
        %833 = vmatpush1.bf16.msra.mxu0 %v828
        %834 = vmatprep.subr.bf16.mxu0 0
        %835 = vmatpush1.bf16.msra.mxu0 %v829
        %836 = vmatprep.subr.bf16.mxu0 0
        %837 = vmatpush1.bf16.msra.mxu0 0
        %838 = vmatprep.subr.bf16.mxu0 0
        %839 = vmatpush1.bf16.msra.mxu0 0
        %840 = vmatprep.subr.bf16.mxu0 0
        %841 = vmatpush1.bf16.msra.mxu0 0
        %842 = vmatprep.subr.bf16.mxu0 0
        %843 = vmatpush1.bf16.msra.mxu0 0
        %844 = vmatprep.subr.bf16.mxu0 0
        %845 = vmatpush1.bf16.msra.mxu0 0
        %846 = vmatprep.subr.bf16.mxu0 0
        %847 = vmatpush1.bf16.msra.mxu0 0
        %848 = vmatprep.subr.bf16.mxu0 0
        %849 = vmatpush1.bf16.msra.mxu0 0
        %850 = vmatprep.subr.bf16.mxu0 0
        %851 = vmatpush1.bf16.msra.mxu0 0
        %852 = vmatprep.subr.bf16.mxu0 0
        %853 = vmatpush1.bf16.msra.mxu0 0
        %854 = vmatprep.subr.bf16.mxu0 0
        %855 = vmatpush1.bf16.msra.mxu0 0
        %856 = vmatprep.subr.bf16.mxu0 0
        %857 = vmatpush1.bf16.msra.mxu0 0
        %858 = vmatprep.subr.bf16.mxu0 0
        %859 = vmatpush1.bf16.msra.mxu0 0
        %860 = vmatprep.subr.bf16.mxu0 0
        %861 = vmatpush1.bf16.msra.mxu0 0
        %862 = vmatprep.subr.bf16.mxu0 0
        %863 = vmatpush1.bf16.msra.mxu0 0
        %864 = vmatprep.mubr.bf16.mxu0 0
        %865 = vmatmul.mubr.bf16.gmra.mrb[0].mxu0 %v716
        %v866 = vpop.f32.mrb[0].mxu0
        %v867 = vadd.f32 0.0, %v866
        %v868 = vpop.f32.mrb[0].mxu0
        %v869 = vpop.f32.mrb[0].mxu0
        %v870 = vpop.f32.mrb[0].mxu0
        %871 = vdwg.mxu0
        %v872 = vpack.c.bf16 %v867, %v867
        %v873 = vlaneseq
        %v874 = vshrl.u32 %v873, 7
        %v875 = vlaneseq
        %v876 = vand.u32 %v875, 127
        %vm877 = vcmp.ge.s32.totalorder %v874, %v876
        %vm878 = vcmask 64512
        %v880 = vsel %vm878, %v758, 0
        %v883 = vsel %vm878, %v815, 0
        %885 = vmatprep.subr.bf16.mxu0 0
        %886 = vmatpush1.bf16.xpose.msra.mxu0 %v883
        %887 = vmatprep.subr.bf16.mxu0 0
        %888 = vmatpush1.bf16.xpose.msra.mxu0 0
        %889 = vmatprep.subr.bf16.mxu0 0
        %890 = vmatpush1.bf16.xpose.msra.mxu0 0
        %891 = vmatprep.subr.bf16.mxu0 0
        %892 = vmatpush1.bf16.xpose.msra.mxu0 0
        %893 = vmatprep.subr.bf16.mxu0 0
        %894 = vmatpush1.bf16.xpose.msra.mxu0 0
        %895 = vmatprep.subr.bf16.mxu0 0
        %896 = vmatpush1.bf16.xpose.msra.mxu0 0
        %897 = vmatprep.subr.bf16.mxu0 0
        %898 = vmatpush1.bf16.xpose.msra.mxu0 0
        %899 = vmatprep.subr.bf16.mxu0 0
        %900 = vmatpush1.bf16.xpose.msra.mxu0 0
        %901 = vmatprep.subr.bf16.mxu0 0
        %902 = vmatpush1.bf16.xpose.msra.mxu0 0
        %903 = vmatprep.subr.bf16.mxu0 0
        %904 = vmatpush1.bf16.xpose.msra.mxu0 0
        %905 = vmatprep.subr.bf16.mxu0 0
        %906 = vmatpush1.bf16.xpose.msra.mxu0 0
        %907 = vmatprep.subr.bf16.mxu0 0
        %908 = vmatpush1.bf16.xpose.msra.mxu0 0
        %909 = vmatprep.subr.bf16.mxu0 0
        %910 = vmatpush1.bf16.xpose.msra.mxu0 0
        %911 = vmatprep.subr.bf16.mxu0 0
        %912 = vmatpush1.bf16.xpose.msra.mxu0 0
        %913 = vmatprep.subr.bf16.mxu0 0
        %914 = vmatpush1.bf16.xpose.msra.mxu0 0
        %915 = vmatprep.subr.bf16.mxu0 0
        %916 = vmatpush1.bf16.xpose.msra.mxu0 0
        %917 = vmatprep.mubr.bf16.mxu0 0
        %918 = vmatmul.mubr.bf16.gmra.mrb[0].mxu0 %v880
        %v919 = vpop.f32.mrb[0].mxu0
        %v920 = vadd.f32 0.0, %v919
        %v921 = vpop.f32.mrb[0].mxu0
        %v922 = vpop.f32.mrb[0].mxu0
        %v923 = vpop.f32.mrb[0].mxu0
        %924 = vdwg.mxu0
        %v925 = vsel %vm877, %v920, -1e+30
        %v926 = vsel %vm878, %v925, -inf
        %927 = vmax.xlane.f32.xlu0 %v926
        %v928 = vpop.xlane.xlu0 %927
        %v929 = vsub.f32 %v925, %v928
        %v930 = vmul.f32 %v929, 1.442695
        %v931 = vpow.pop %v930
        %v932 = vsel %vm878, %v931, 0.0
        %933 = vadd.xlane.f32.xlu0 %v932
        %v934 = vpop.xlane.xlu0 %933
        %v935 = vpack.c.bf16 %v931, %v931
        %v937 = vsel %vm878, %v935, 0
        %vm939 = vcmask 1043456
        %v941 = vsel %vm939, %v872, 0
        %943 = vmatprep.subr.bf16.mxu0 0
        %944 = vmatpush1.bf16.msra.mxu0 %v941
        %945 = vmatprep.subr.bf16.mxu0 0
        %946 = vmatpush1.bf16.msra.mxu0 0
        %947 = vmatprep.subr.bf16.mxu0 0
        %948 = vmatpush1.bf16.msra.mxu0 0
        %949 = vmatprep.subr.bf16.mxu0 0
        %950 = vmatpush1.bf16.msra.mxu0 0
        %951 = vmatprep.subr.bf16.mxu0 0
        %952 = vmatpush1.bf16.msra.mxu0 0
        %953 = vmatprep.subr.bf16.mxu0 0
        %954 = vmatpush1.bf16.msra.mxu0 0
        %955 = vmatprep.subr.bf16.mxu0 0
        %956 = vmatpush1.bf16.msra.mxu0 0
        %957 = vmatprep.subr.bf16.mxu0 0
        %958 = vmatpush1.bf16.msra.mxu0 0
        %959 = vmatprep.subr.bf16.mxu0 0
        %960 = vmatpush1.bf16.msra.mxu0 0
        %961 = vmatprep.subr.bf16.mxu0 0
        %962 = vmatpush1.bf16.msra.mxu0 0
        %963 = vmatprep.subr.bf16.mxu0 0
        %964 = vmatpush1.bf16.msra.mxu0 0
        %965 = vmatprep.subr.bf16.mxu0 0
        %966 = vmatpush1.bf16.msra.mxu0 0
        %967 = vmatprep.subr.bf16.mxu0 0
        %968 = vmatpush1.bf16.msra.mxu0 0
        %969 = vmatprep.subr.bf16.mxu0 0
        %970 = vmatpush1.bf16.msra.mxu0 0
        %971 = vmatprep.subr.bf16.mxu0 0
        %972 = vmatpush1.bf16.msra.mxu0 0
        %973 = vmatprep.subr.bf16.mxu0 0
        %974 = vmatpush1.bf16.msra.mxu0 0
        %975 = vmatprep.mubr.bf16.mxu0 0
        %976 = vmatmul.mubr.bf16.gmra.mrb[0].mxu0 %v937
        %v977 = vpop.f32.mrb[0].mxu0
        %v978 = vadd.f32 0.0, %v977
        %v979 = vpop.f32.mrb[0].mxu0
        %v980 = vpop.f32.mrb[0].mxu0
        %v981 = vpop.f32.mrb[0].mxu0
        %982 = vdwg.mxu0
        %v983 = vrcp.pop %v934
        %v984 = vmul.f32 %v978, %v983
        %v985 = vpack.c.bf16 %v984, %v984
        %vm986 = vcmask 60416
        %987 = vst.msk [vmem:[#allocation2] sm:$0xf] %vm986, %v985
        %989 = vrot.lane.b32.xlu0 %v758, 120
        %v990 = vpop.permute.xlu0 %989
        %992 = vrot.lane.b32.xlu0 %v815, 120
        %v993 = vpop.permute.xlu0 %992
        %v995 = vsel %vm878, %v990, 0
        %v998 = vsel %vm878, %v993, 0
        %1000 = vmatprep.subr.bf16.mxu0 0
        %1001 = vmatpush1.bf16.xpose.msra.mxu0 %v998
        %1002 = vmatprep.subr.bf16.mxu0 0
        %1003 = vmatpush1.bf16.xpose.msra.mxu0 0
        %1004 = vmatprep.subr.bf16.mxu0 0
        %1005 = vmatpush1.bf16.xpose.msra.mxu0 0
        %1006 = vmatprep.subr.bf16.mxu0 0
        %1007 = vmatpush1.bf16.xpose.msra.mxu0 0
        %1008 = vmatprep.subr.bf16.mxu0 0
        %1009 = vmatpush1.bf16.xpose.msra.mxu0 0
        %1010 = vmatprep.subr.bf16.mxu0 0
        %1011 = vmatpush1.bf16.xpose.msra.mxu0 0
        %1012 = vmatprep.subr.bf16.mxu0 0
        %1013 = vmatpush1.bf16.xpose.msra.mxu0 0
        %1014 = vmatprep.subr.bf16.mxu0 0
        %1015 = vmatpush1.bf16.xpose.msra.mxu0 0
        %1016 = vmatprep.subr.bf16.mxu0 0
        %1017 = vmatpush1.bf16.xpose.msra.mxu0 0
        %1018 = vmatprep.subr.bf16.mxu0 0
        %1019 = vmatpush1.bf16.xpose.msra.mxu0 0
        %1020 = vmatprep.subr.bf16.mxu0 0
        %1021 = vmatpush1.bf16.xpose.msra.mxu0 0
        %1022 = vmatprep.subr.bf16.mxu0 0
        %1023 = vmatpush1.bf16.xpose.msra.mxu0 0
        %1024 = vmatprep.subr.bf16.mxu0 0
        %1025 = vmatpush1.bf16.xpose.msra.mxu0 0
        %1026 = vmatprep.subr.bf16.mxu0 0
        %1027 = vmatpush1.bf16.xpose.msra.mxu0 0
        %1028 = vmatprep.subr.bf16.mxu0 0
        %1029 = vmatpush1.bf16.xpose.msra.mxu0 0
        %1030 = vmatprep.subr.bf16.mxu0 0
        %1031 = vmatpush1.bf16.xpose.msra.mxu0 0
        %1032 = vmatprep.mubr.bf16.mxu0 0
        %1033 = vmatmul.mubr.bf16.gmra.mrb[0].mxu0 %v995
        %v1034 = vpop.f32.mrb[0].mxu0
        %v1035 = vadd.f32 0.0, %v1034
        %v1036 = vpop.f32.mrb[0].mxu0
        %v1037 = vpop.f32.mrb[0].mxu0
        %v1038 = vpop.f32.mrb[0].mxu0
        %1039 = vdwg.mxu0
        %v1040 = vsel %vm877, %v1035, -1e+30
        %v1041 = vsel %vm878, %v1040, -inf
        %1042 = vmax.xlane.f32.xlu0 %v1041
        %v1043 = vpop.xlane.xlu0 %1042
        %v1044 = vsub.f32 %v1040, %v1043
        %v1045 = vmul.f32 %v1044, 1.442695
        %v1046 = vpow.pop %v1045
        %v1047 = vsel %vm878, %v1046, 0.0
        %1048 = vadd.xlane.f32.xlu0 %v1047
        %v1049 = vpop.xlane.xlu0 %1048
        %v1050 = vpack.c.bf16 %v1046, %v1046
        %1052 = vrot.lane.b32.xlu0 %v872, 120
        %v1053 = vpop.permute.xlu0 %1052
        %v1055 = vsel %vm878, %v1050, 0
        %v1058 = vsel %vm939, %v1053, 0
        %1060 = vmatprep.subr.bf16.mxu0 0
        %1061 = vmatpush1.bf16.msra.mxu0 %v1058
        %1062 = vmatprep.subr.bf16.mxu0 0
        %1063 = vmatpush1.bf16.msra.mxu0 0
        %1064 = vmatprep.subr.bf16.mxu0 0
        %1065 = vmatpush1.bf16.msra.mxu0 0
        %1066 = vmatprep.subr.bf16.mxu0 0
        %1067 = vmatpush1.bf16.msra.mxu0 0
        %1068 = vmatprep.subr.bf16.mxu0 0
        %1069 = vmatpush1.bf16.msra.mxu0 0
        %1070 = vmatprep.subr.bf16.mxu0 0
        %1071 = vmatpush1.bf16.msra.mxu0 0
        %1072 = vmatprep.subr.bf16.mxu0 0
        %1073 = vmatpush1.bf16.msra.mxu0 0
        %1074 = vmatprep.subr.bf16.mxu0 0
        %1075 = vmatpush1.bf16.msra.mxu0 0
        %1076 = vmatprep.subr.bf16.mxu0 0
        %1077 = vmatpush1.bf16.msra.mxu0 0
        %1078 = vmatprep.subr.bf16.mxu0 0
        %1079 = vmatpush1.bf16.msra.mxu0 0
        %1080 = vmatprep.subr.bf16.mxu0 0
        %1081 = vmatpush1.bf16.msra.mxu0 0
        %1082 = vmatprep.subr.bf16.mxu0 0
        %1083 = vmatpush1.bf16.msra.mxu0 0
        %1084 = vmatprep.subr.bf16.mxu0 0
        %1085 = vmatpush1.bf16.msra.mxu0 0
        %1086 = vmatprep.subr.bf16.mxu0 0
        %1087 = vmatpush1.bf16.msra.mxu0 0
        %1088 = vmatprep.subr.bf16.mxu0 0
        %1089 = vmatpush1.bf16.msra.mxu0 0
        %1090 = vmatprep.subr.bf16.mxu0 0
        %1091 = vmatpush1.bf16.msra.mxu0 0
        %1092 = vmatprep.mubr.bf16.mxu0 0
        %1093 = vmatmul.mubr.bf16.gmra.mrb[0].mxu0 %v1055
        %v1094 = vpop.f32.mrb[0].mxu0
        %v1095 = vadd.f32 0.0, %v1094
        %v1096 = vpop.f32.mrb[0].mxu0
        %v1097 = vpop.f32.mrb[0].mxu0
        %v1098 = vpop.f32.mrb[0].mxu0
        %1099 = vdwg.mxu0
        %v1100 = vrcp.pop %v1049
        %v1101 = vmul.f32 %v1095, %v1100
        %v1102 = vpack.c.bf16 %v1101, %v1101
        %v1104 = vunpack.c.l.b16 %v1102
        %v1105 = vpack.c.b16 %v1104, %v1104
        %1106 = vrot.lane.b32.xlu0 %v1105, 8
        %v1107 = vpop.permute.xlu0 %1106
        %vm1109 = vcmask 126016
        %1110 = vst.msk [vmem:[#allocation2] sm:$0xf] %vm1109, %v1107
        %1111 = vrot.lane.b32.xlu0 %v758, 112
        %v1112 = vpop.permute.xlu0 %1111
        %1113 = vrot.lane.b32.xlu0 %v815, 112
        %v1114 = vpop.permute.xlu0 %1113
        %v1116 = vsel %vm878, %v1112, 0
        %v1119 = vsel %vm878, %v1114, 0
        %1121 = vmatprep.subr.bf16.mxu0 0
        %1122 = vmatpush1.bf16.xpose.msra.mxu0 %v1119
        %1123 = vmatprep.subr.bf16.mxu0 0
        %1124 = vmatpush1.bf16.xpose.msra.mxu0 0
        %1125 = vmatprep.subr.bf16.mxu0 0
        %1126 = vmatpush1.bf16.xpose.msra.mxu0 0
        %1127 = vmatprep.subr.bf16.mxu0 0
        %1128 = vmatpush1.bf16.xpose.msra.mxu0 0
        %1129 = vmatprep.subr.bf16.mxu0 0
        %1130 = vmatpush1.bf16.xpose.msra.mxu0 0
        %1131 = vmatprep.subr.bf16.mxu0 0
        %1132 = vmatpush1.bf16.xpose.msra.mxu0 0
        %1133 = vmatprep.subr.bf16.mxu0 0
        %1134 = vmatpush1.bf16.xpose.msra.mxu0 0
        %1135 = vmatprep.subr.bf16.mxu0 0
        %1136 = vmatpush1.bf16.xpose.msra.mxu0 0
        %1137 = vmatprep.subr.bf16.mxu0 0
        %1138 = vmatpush1.bf16.xpose.msra.mxu0 0
        %1139 = vmatprep.subr.bf16.mxu0 0
        %1140 = vmatpush1.bf16.xpose.msra.mxu0 0
        %1141 = vmatprep.subr.bf16.mxu0 0
        %1142 = vmatpush1.bf16.xpose.msra.mxu0 0
        %1143 = vmatprep.subr.bf16.mxu0 0
        %1144 = vmatpush1.bf16.xpose.msra.mxu0 0
        %1145 = vmatprep.subr.bf16.mxu0 0
        %1146 = vmatpush1.bf16.xpose.msra.mxu0 0
        %1147 = vmatprep.subr.bf16.mxu0 0
        %1148 = vmatpush1.bf16.xpose.msra.mxu0 0
        %1149 = vmatprep.subr.bf16.mxu0 0
        %1150 = vmatpush1.bf16.xpose.msra.mxu0 0
        %1151 = vmatprep.subr.bf16.mxu0 0
        %1152 = vmatpush1.bf16.xpose.msra.mxu0 0
        %1153 = vmatprep.mubr.bf16.mxu0 0
        %1154 = vmatmul.mubr.bf16.gmra.mrb[0].mxu0 %v1116
        %v1155 = vpop.f32.mrb[0].mxu0
        %v1156 = vadd.f32 0.0, %v1155
        %v1157 = vpop.f32.mrb[0].mxu0
        %v1158 = vpop.f32.mrb[0].mxu0
        %v1159 = vpop.f32.mrb[0].mxu0
        %1160 = vdwg.mxu0
        %v1161 = vsel %vm877, %v1156, -1e+30
        %v1162 = vsel %vm878, %v1161, -inf
        %1163 = vmax.xlane.f32.xlu0 %v1162
        %v1164 = vpop.xlane.xlu0 %1163
        %v1165 = vsub.f32 %v1161, %v1164
        %v1166 = vmul.f32 %v1165, 1.442695
        %v1167 = vpow.pop %v1166
        %v1168 = vsel %vm878, %v1167, 0.0
        %1169 = vadd.xlane.f32.xlu0 %v1168
        %v1170 = vpop.xlane.xlu0 %1169
        %v1171 = vpack.c.bf16 %v1167, %v1167
        %1172 = vrot.lane.b32.xlu0 %v872, 112
        %v1173 = vpop.permute.xlu0 %1172
        %v1175 = vsel %vm878, %v1171, 0
        %v1178 = vsel %vm939, %v1173, 0
        %1180 = vmatprep.subr.bf16.mxu0 0
        %1181 = vmatpush1.bf16.msra.mxu0 %v1178
        %1182 = vmatprep.subr.bf16.mxu0 0
        %1183 = vmatpush1.bf16.msra.mxu0 0
        %1184 = vmatprep.subr.bf16.mxu0 0
        %1185 = vmatpush1.bf16.msra.mxu0 0
        %1186 = vmatprep.subr.bf16.mxu0 0
        %1187 = vmatpush1.bf16.msra.mxu0 0
        %1188 = vmatprep.subr.bf16.mxu0 0
        %1189 = vmatpush1.bf16.msra.mxu0 0
        %1190 = vmatprep.subr.bf16.mxu0 0
        %1191 = vmatpush1.bf16.msra.mxu0 0
        %1192 = vmatprep.subr.bf16.mxu0 0
        %1193 = vmatpush1.bf16.msra.mxu0 0
        %1194 = vmatprep.subr.bf16.mxu0 0
        %1195 = vmatpush1.bf16.msra.mxu0 0
        %1196 = vmatprep.subr.bf16.mxu0 0
        %1197 = vmatpush1.bf16.msra.mxu0 0
        %1198 = vmatprep.subr.bf16.mxu0 0
        %1199 = vmatpush1.bf16.msra.mxu0 0
        %1200 = vmatprep.subr.bf16.mxu0 0
        %1201 = vmatpush1.bf16.msra.mxu0 0
        %1202 = vmatprep.subr.bf16.mxu0 0
        %1203 = vmatpush1.bf16.msra.mxu0 0
        %1204 = vmatprep.subr.bf16.mxu0 0
        %1205 = vmatpush1.bf16.msra.mxu0 0
        %1206 = vmatprep.subr.bf16.mxu0 0
        %1207 = vmatpush1.bf16.msra.mxu0 0
        %1208 = vmatprep.subr.bf16.mxu0 0
        %1209 = vmatpush1.bf16.msra.mxu0 0
        %1210 = vmatprep.subr.bf16.mxu0 0
        %1211 = vmatpush1.bf16.msra.mxu0 0
        %1212 = vmatprep.mubr.bf16.mxu0 0
        %1213 = vmatmul.mubr.bf16.gmra.mrb[0].mxu0 %v1175
        %v1214 = vpop.f32.mrb[0].mxu0
        %v1215 = vadd.f32 0.0, %v1214
        %v1216 = vpop.f32.mrb[0].mxu0
        %v1217 = vpop.f32.mrb[0].mxu0
        %v1218 = vpop.f32.mrb[0].mxu0
        %1219 = vdwg.mxu0
        %v1220 = vrcp.pop %v1170
        %v1221 = vmul.f32 %v1215, %v1220
        %v1222 = vpack.c.bf16 %v1221, %v1221
        %v1224 = vunpack.c.l.b16 %v1222
        %v1225 = vpack.c.b16 %v1224, %v1224
        %1226 = vrot.lane.b32.xlu0 %v1225, 16
        %v1227 = vpop.permute.xlu0 %1226
        %vm1229 = vcmask 191616
        %1230 = vst.msk [vmem:[#allocation2] sm:$0xf] %vm1229, %v1227
        %1231 = vrot.lane.b32.xlu0 %v758, 104
        %v1232 = vpop.permute.xlu0 %1231
        %1233 = vrot.lane.b32.xlu0 %v815, 104
        %v1234 = vpop.permute.xlu0 %1233
        %v1236 = vsel %vm878, %v1232, 0
        %v1239 = vsel %vm878, %v1234, 0
        %1241 = vmatprep.subr.bf16.mxu0 0
        %1242 = vmatpush1.bf16.xpose.msra.mxu0 %v1239
        %1243 = vmatprep.subr.bf16.mxu0 0
        %1244 = vmatpush1.bf16.xpose.msra.mxu0 0
        %1245 = vmatprep.subr.bf16.mxu0 0
        %1246 = vmatpush1.bf16.xpose.msra.mxu0 0
        %1247 = vmatprep.subr.bf16.mxu0 0
        %1248 = vmatpush1.bf16.xpose.msra.mxu0 0
        %1249 = vmatprep.subr.bf16.mxu0 0
        %1250 = vmatpush1.bf16.xpose.msra.mxu0 0
        %1251 = vmatprep.subr.bf16.mxu0 0
        %1252 = vmatpush1.bf16.xpose.msra.mxu0 0
        %1253 = vmatprep.subr.bf16.mxu0 0
        %1254 = vmatpush1.bf16.xpose.msra.mxu0 0
        %1255 = vmatprep.subr.bf16.mxu0 0
        %1256 = vmatpush1.bf16.xpose.msra.mxu0 0
        %1257 = vmatprep.subr.bf16.mxu0 0
        %1258 = vmatpush1.bf16.xpose.msra.mxu0 0
        %1259 = vmatprep.subr.bf16.mxu0 0
        %1260 = vmatpush1.bf16.xpose.msra.mxu0 0
        %1261 = vmatprep.subr.bf16.mxu0 0
        %1262 = vmatpush1.bf16.xpose.msra.mxu0 0
        %1263 = vmatprep.subr.bf16.mxu0 0
        %1264 = vmatpush1.bf16.xpose.msra.mxu0 0
        %1265 = vmatprep.subr.bf16.mxu0 0
        %1266 = vmatpush1.bf16.xpose.msra.mxu0 0
        %1267 = vmatprep.subr.bf16.mxu0 0
        %1268 = vmatpush1.bf16.xpose.msra.mxu0 0
        %1269 = vmatprep.subr.bf16.mxu0 0
        %1270 = vmatpush1.bf16.xpose.msra.mxu0 0
        %1271 = vmatprep.subr.bf16.mxu0 0
        %1272 = vmatpush1.bf16.xpose.msra.mxu0 0
        %1273 = vmatprep.mubr.bf16.mxu0 0
        %1274 = vmatmul.mubr.bf16.gmra.mrb[0].mxu0 %v1236
        %v1275 = vpop.f32.mrb[0].mxu0
        %v1276 = vadd.f32 0.0, %v1275
        %v1277 = vpop.f32.mrb[0].mxu0
        %v1278 = vpop.f32.mrb[0].mxu0
        %v1279 = vpop.f32.mrb[0].mxu0
        %1280 = vdwg.mxu0
        %v1281 = vsel %vm877, %v1276, -1e+30
        %v1282 = vsel %vm878, %v1281, -inf
        %1283 = vmax.xlane.f32.xlu0 %v1282
        %v1284 = vpop.xlane.xlu0 %1283
        %v1285 = vsub.f32 %v1281, %v1284
        %v1286 = vmul.f32 %v1285, 1.442695
        %v1287 = vpow.pop %v1286
        %v1288 = vsel %vm878, %v1287, 0.0
        %1289 = vadd.xlane.f32.xlu0 %v1288
        %v1290 = vpop.xlane.xlu0 %1289
        %v1291 = vpack.c.bf16 %v1287, %v1287
        %1292 = vrot.lane.b32.xlu0 %v872, 104
        %v1293 = vpop.permute.xlu0 %1292
        %v1295 = vsel %vm878, %v1291, 0
        %v1298 = vsel %vm939, %v1293, 0
        %1300 = vmatprep.subr.bf16.mxu0 0
        %1301 = vmatpush1.bf16.msra.mxu0 %v1298
        %1302 = vmatprep.subr.bf16.mxu0 0
        %1303 = vmatpush1.bf16.msra.mxu0 0
        %1304 = vmatprep.subr.bf16.mxu0 0
        %1305 = vmatpush1.bf16.msra.mxu0 0
        %1306 = vmatprep.subr.bf16.mxu0 0
        %1307 = vmatpush1.bf16.msra.mxu0 0
        %1308 = vmatprep.subr.bf16.mxu0 0
        %1309 = vmatpush1.bf16.msra.mxu0 0
        %1310 = vmatprep.subr.bf16.mxu0 0
        %1311 = vmatpush1.bf16.msra.mxu0 0
        %1312 = vmatprep.subr.bf16.mxu0 0
        %1313 = vmatpush1.bf16.msra.mxu0 0
        %1314 = vmatprep.subr.bf16.mxu0 0
        %1315 = vmatpush1.bf16.msra.mxu0 0
        %1316 = vmatprep.subr.bf16.mxu0 0
        %1317 = vmatpush1.bf16.msra.mxu0 0
        %1318 = vmatprep.subr.bf16.mxu0 0
        %1319 = vmatpush1.bf16.msra.mxu0 0
        %1320 = vmatprep.subr.bf16.mxu0 0
        %1321 = vmatpush1.bf16.msra.mxu0 0
        %1322 = vmatprep.subr.bf16.mxu0 0
        %1323 = vmatpush1.bf16.msra.mxu0 0
        %1324 = vmatprep.subr.bf16.mxu0 0
        %1325 = vmatpush1.bf16.msra.mxu0 0
        %1326 = vmatprep.subr.bf16.mxu0 0
        %1327 = vmatpush1.bf16.msra.mxu0 0
        %1328 = vmatprep.subr.bf16.mxu0 0
        %1329 = vmatpush1.bf16.msra.mxu0 0
        %1330 = vmatprep.subr.bf16.mxu0 0
        %1331 = vmatpush1.bf16.msra.mxu0 0
        %1332 = vmatprep.mubr.bf16.mxu0 0
        %1333 = vmatmul.mubr.bf16.gmra.mrb[0].mxu0 %v1295
        %v1334 = vpop.f32.mrb[0].mxu0
        %v1335 = vadd.f32 0.0, %v1334
        %v1336 = vpop.f32.mrb[0].mxu0
        %v1337 = vpop.f32.mrb[0].mxu0
        %v1338 = vpop.f32.mrb[0].mxu0
        %1339 = vdwg.mxu0
        %v1340 = vrcp.pop %v1290
        %v1341 = vmul.f32 %v1335, %v1340
        %v1342 = vpack.c.bf16 %v1341, %v1341
        %v1344 = vunpack.c.l.b16 %v1342
        %v1345 = vpack.c.b16 %v1344, %v1344
        %1346 = vrot.lane.b32.xlu0 %v1345, 24
        %v1347 = vpop.permute.xlu0 %1346
        %vm1349 = vcmask 257216
        %1350 = vst.msk [vmem:[#allocation2] sm:$0xf] %vm1349, %v1347
        %v1351 = vld [vmem:[#allocation2] sm:$0xf]
        %v1352 = vld [vmem:[#allocation14] sm:$0xf]
        %v1353 = vld [vmem:[#allocation14 + $0x4] sm:$0xf]
        %v1354 = vld [vmem:[#allocation14 + $0x8] sm:$0xf]
        %v1355 = vld [vmem:[#allocation14 + $0xc] sm:$0xf]
        %v1356 = vld [vmem:[#allocation15] sm:$0x1]
        %v1358 = vlaneseq
        %v1359 = vshrl.u32 %v1358, 7
        %v1360 = vsub.s32 0, %v1359
        %v1361 = vrot.slane %v1356, %v1360
        %v1367 = vunpack.c.l.b16 %v1352
        %v1368 = vunpack.c.l.b16 %v1353
        %v1369 = vunpack.c.l.b16 %v1354
        %v1370 = vunpack.c.l.b16 %v1355
        %v1371 = vpack.c.b16 %v1368, %v1367
        %v1372 = vpack.c.b16 %v1370, %v1369
        %v1376 = vsel %vm662, %v1351, 0
        %1378 = vmatprep.subr.bf16.mxu0 0
        %1379 = vmatpush1.bf16.msra.mxu0 %v1371
        %1380 = vmatprep.subr.bf16.mxu0 0
        %1381 = vmatpush1.bf16.msra.mxu0 %v1372
        %1382 = vmatprep.subr.bf16.mxu0 0
        %1383 = vmatpush1.bf16.msra.mxu0 0
        %1384 = vmatprep.subr.bf16.mxu0 0
        %1385 = vmatpush1.bf16.msra.mxu0 0
        %1386 = vmatprep.subr.bf16.mxu0 0
        %1387 = vmatpush1.bf16.msra.mxu0 0
        %1388 = vmatprep.subr.bf16.mxu0 0
        %1389 = vmatpush1.bf16.msra.mxu0 0
        %1390 = vmatprep.subr.bf16.mxu0 0
        %1391 = vmatpush1.bf16.msra.mxu0 0
        %1392 = vmatprep.subr.bf16.mxu0 0
        %1393 = vmatpush1.bf16.msra.mxu0 0
        %1394 = vmatprep.subr.bf16.mxu0 0
        %1395 = vmatpush1.bf16.msra.mxu0 0
        %1396 = vmatprep.subr.bf16.mxu0 0
        %1397 = vmatpush1.bf16.msra.mxu0 0
        %1398 = vmatprep.subr.bf16.mxu0 0
        %1399 = vmatpush1.bf16.msra.mxu0 0
        %1400 = vmatprep.subr.bf16.mxu0 0
        %1401 = vmatpush1.bf16.msra.mxu0 0
        %1402 = vmatprep.subr.bf16.mxu0 0
        %1403 = vmatpush1.bf16.msra.mxu0 0
        %1404 = vmatprep.subr.bf16.mxu0 0
        %1405 = vmatpush1.bf16.msra.mxu0 0
        %1406 = vmatprep.subr.bf16.mxu0 0
        %1407 = vmatpush1.bf16.msra.mxu0 0
        %1408 = vmatprep.subr.bf16.mxu0 0
        %1409 = vmatpush1.bf16.msra.mxu0 0
        %1410 = vmatprep.mubr.bf16.mxu0 0
        %1411 = vmatmul.mubr.bf16.gmra.mrb[0].mxu0 %v1376
        %v1412 = vpop.f32.mrb[0].mxu0
        %v1413 = vadd.f32 %v1361, %v1412
        %v1414 = vpop.f32.mrb[0].mxu0
        %v1415 = vpop.f32.mrb[0].mxu0
        %v1416 = vpop.f32.mrb[0].mxu0
        %1417 = vdwg.mxu0
        %v1418 = vadd.f32 %v659, %v1413
        %v1419 = vld [vmem:[#allocation17] sm:$0x1]
        %v1420 = vld [vmem:[#allocation18] sm:$0x1]
        %v1421 = vsel %vm662, %v1418, 0.0
        %1422 = vadd.xlane.f32.xlu0 %v1421
        %v1423 = vpop.xlane.xlu0 %1422
        %v1424 = vmul.f32 %v1423, %v666
        %v1425 = vsub.f32 %v1418, %v1424
        %v1426 = vmul.f32 %v1425, %v1425
        %v1427 = vsel %vm662, %v1426, 0.0
        %1428 = vadd.xlane.f32.xlu0 %v1427
        %v1429 = vpop.xlane.xlu0 %1428
        %v1430 = vmul.f32 %v1429, %v666
        %v1431 = vadd.f32 %v1430, 1e-05
        %v1432 = vrsqrt.pop %v1431
        %v1433 = vmul.f32 %v1431, %v1432
        %vm1434 = vcmp.eq.f32.partialorder %v1431, inf
        %v1435 = vsel %vm1434, %v1431, %v1433
        %vm1436 = vcmp.eq.f32.partialorder %v1431, 0.0
        %v1437 = vand.u32 %v1431, 2147483648
        %v1438 = vsel %vm1436, %v1437, %v1435
        %v1439 = vrcp.pop %v1438
        %v1440 = vmul.f32 %v1425, %v1439
        %v1442 = vlaneseq
        %v1443 = vshrl.u32 %v1442, 7
        %v1444 = vsub.s32 0, %v1443
        %v1445 = vrot.slane %v1419, %v1444
        %v1447 = vmul.f32 %v1445, %v1440
        %v1449 = vlaneseq
        %v1450 = vshrl.u32 %v1449, 7
        %v1451 = vsub.s32 0, %v1450
        %v1452 = vrot.slane %v1420, %v1451
        %v1454 = vadd.f32 %v1447, %v1452
        %v1455 = vpack.c.bf16 %v1454, %v1454
        %v1456 = vld [vmem:[#allocation21] sm:$0x1]
        %v1457 = vld [vmem:[#allocation24] sm:$0x1]
        %v1459 = vlaneseq
        %v1460 = vshrl.u32 %v1459, 7
        %v1461 = vsub.s32 0, %v1460
        %v1462 = vrot.slane %v1457, %v1461
        %v1464 = vadd.f32 %v1418, %v1462
        %v1465 = vld [vmem:[#allocation20] sm:$0xf]
        %v1466 = vld [vmem:[#allocation20 + $0x4] sm:$0xf]
        %v1467 = vld [vmem:[#allocation20 + $0x8] sm:$0xf]
        %v1468 = vld [vmem:[#allocation20 + $0xc] sm:$0xf]
        %v1470 = vlaneseq
        %v1471 = vshrl.u32 %v1470, 7
        %v1472 = vsub.s32 0, %v1471
        %v1473 = vrot.slane %v1456, %v1472
        %v1479 = vunpack.c.l.b16 %v1465
        %v1480 = vunpack.c.l.b16 %v1466
        %v1481 = vunpack.c.l.b16 %v1467
        %v1482 = vunpack.c.l.b16 %v1468
        %v1483 = vpack.c.b16 %v1480, %v1479
        %v1484 = vpack.c.b16 %v1482, %v1481
        %v1488 = vsel %vm662, %v1455, 0
        %1490 = vmatprep.subr.bf16.mxu0 0
        %1491 = vmatpush1.bf16.msra.mxu0 %v1483
        %1492 = vmatprep.subr.bf16.mxu0 0
        %1493 = vmatpush1.bf16.msra.mxu0 %v1484
        %1494 = vmatprep.subr.bf16.mxu0 0
        %1495 = vmatpush1.bf16.msra.mxu0 0
        %1496 = vmatprep.subr.bf16.mxu0 0
        %1497 = vmatpush1.bf16.msra.mxu0 0
        %1498 = vmatprep.subr.bf16.mxu0 0
        %1499 = vmatpush1.bf16.msra.mxu0 0
        %1500 = vmatprep.subr.bf16.mxu0 0
        %1501 = vmatpush1.bf16.msra.mxu0 0
        %1502 = vmatprep.subr.bf16.mxu0 0
        %1503 = vmatpush1.bf16.msra.mxu0 0
        %1504 = vmatprep.subr.bf16.mxu0 0
        %1505 = vmatpush1.bf16.msra.mxu0 0
        %1506 = vmatprep.subr.bf16.mxu0 0
        %1507 = vmatpush1.bf16.msra.mxu0 0
        %1508 = vmatprep.subr.bf16.mxu0 0
        %1509 = vmatpush1.bf16.msra.mxu0 0
        %1510 = vmatprep.subr.bf16.mxu0 0
        %1511 = vmatpush1.bf16.msra.mxu0 0
        %1512 = vmatprep.subr.bf16.mxu0 0
        %1513 = vmatpush1.bf16.msra.mxu0 0
        %1514 = vmatprep.subr.bf16.mxu0 0
        %1515 = vmatpush1.bf16.msra.mxu0 0
        %1516 = vmatprep.subr.bf16.mxu0 0
        %1517 = vmatpush1.bf16.msra.mxu0 0
        %1518 = vmatprep.subr.bf16.mxu0 0
        %1519 = vmatpush1.bf16.msra.mxu0 0
        %1520 = vmatprep.subr.bf16.mxu0 0
        %1521 = vmatpush1.bf16.msra.mxu0 0
        %1522 = vmatprep.mubr.bf16.mxu0 0
        %1523 = vmatmul.mubr.bf16.gmra.mrb[0].mxu0 %v1488
        %v1524 = vpop.f32.mrb[0].mxu0
        %v1525 = vadd.f32 %v1473, %v1524
        %v1526 = vpop.f32.mrb[0].mxu0
        %v1527 = vpop.f32.mrb[0].mxu0
        %v1528 = vpop.f32.mrb[0].mxu0
        %1529 = vdwg.mxu0
        %v1530 = vmul.f32 %v1525, 0.5
        %v1531 = vmul.f32 %v1525, 0.044715
        %v1532 = vmul.f32 %v1531, %v1525
        %v1533 = vmul.f32 %v1532, %v1525
        %v1534 = vadd.f32 %v1525, %v1533
        %v1535 = vmul.f32 %v1534, 0.7978845
        %v1536 = vtanh.pop %v1535
        %v1537 = vadd.f32 %v1536, 1.0
        %v1538 = vmul.f32 %v1530, %v1537
        %v1539 = vpack.c.bf16 %v1538, %v1538
        %v1540 = vld [vmem:[#allocation23] sm:$0xf]
        %v1541 = vld [vmem:[#allocation23 + $0x4] sm:$0xf]
        %v1542 = vld [vmem:[#allocation23 + $0x8] sm:$0xf]
        %v1543 = vld [vmem:[#allocation23 + $0xc] sm:$0xf]
        %v1544 = vld [vmem:[#allocation23 + $0x10] sm:$0xf]
        %v1545 = vld [vmem:[#allocation23 + $0x14] sm:$0xf]
        %v1546 = vld [vmem:[#allocation23 + $0x18] sm:$0xf]
        %v1547 = vld [vmem:[#allocation23 + $0x1c] sm:$0xf]
        %v1548 = vld [vmem:[#allocation23 + $0x20] sm:$0xf]
        %v1549 = vld [vmem:[#allocation23 + $0x24] sm:$0xf]
        %v1550 = vld [vmem:[#allocation23 + $0x28] sm:$0xf]
        %v1551 = vld [vmem:[#allocation23 + $0x2c] sm:$0xf]
        %v1552 = vld [vmem:[#allocation23 + $0x30] sm:$0xf]
        %v1553 = vld [vmem:[#allocation23 + $0x34] sm:$0xf]
        %v1554 = vld [vmem:[#allocation23 + $0x38] sm:$0xf]
        %v1555 = vld [vmem:[#allocation23 + $0x3c] sm:$0xf]
        %v1572 = vunpack.c.l.b16 %v1540
        %v1573 = vunpack.c.l.b16 %v1541
        %v1574 = vunpack.c.l.b16 %v1542
        %v1575 = vunpack.c.l.b16 %v1543
        %v1576 = vunpack.c.l.b16 %v1544
        %v1577 = vunpack.c.l.b16 %v1545
        %v1578 = vunpack.c.l.b16 %v1546
        %v1579 = vunpack.c.l.b16 %v1547
        %v1580 = vunpack.c.l.b16 %v1548
        %v1581 = vunpack.c.l.b16 %v1549
        %v1582 = vunpack.c.l.b16 %v1550
        %v1583 = vunpack.c.l.b16 %v1551
        %v1584 = vunpack.c.l.b16 %v1552
        %v1585 = vunpack.c.l.b16 %v1553
        %v1586 = vunpack.c.l.b16 %v1554
        %v1587 = vunpack.c.l.b16 %v1555
        %v1588 = vpack.c.b16 %v1573, %v1572
        %v1589 = vpack.c.b16 %v1575, %v1574
        %v1590 = vpack.c.b16 %v1577, %v1576
        %v1591 = vpack.c.b16 %v1579, %v1578
        %v1592 = vpack.c.b16 %v1581, %v1580
        %v1593 = vpack.c.b16 %v1583, %v1582
        %v1594 = vpack.c.b16 %v1585, %v1584
        %v1595 = vpack.c.b16 %v1587, %v1586
        %1604 = vmatprep.subr.bf16.mxu0 0
        %1605 = vmatpush1.bf16.msra.mxu0 %v1588
        %1606 = vmatprep.subr.bf16.mxu0 0
        %1607 = vmatpush1.bf16.msra.mxu0 %v1589
        %1608 = vmatprep.subr.bf16.mxu0 0
        %1609 = vmatpush1.bf16.msra.mxu0 %v1590
        %1610 = vmatprep.subr.bf16.mxu0 0
        %1611 = vmatpush1.bf16.msra.mxu0 %v1591
        %1612 = vmatprep.subr.bf16.mxu0 0
        %1613 = vmatpush1.bf16.msra.mxu0 %v1592
        %1614 = vmatprep.subr.bf16.mxu0 0
        %1615 = vmatpush1.bf16.msra.mxu0 %v1593
        %1616 = vmatprep.subr.bf16.mxu0 0
        %1617 = vmatpush1.bf16.msra.mxu0 %v1594
        %1618 = vmatprep.subr.bf16.mxu0 0
        %1619 = vmatpush1.bf16.msra.mxu0 %v1595
        %1620 = vmatprep.subr.bf16.mxu0 0
        %1621 = vmatpush1.bf16.msra.mxu0 0
        %1622 = vmatprep.subr.bf16.mxu0 0
        %1623 = vmatpush1.bf16.msra.mxu0 0
        %1624 = vmatprep.subr.bf16.mxu0 0
        %1625 = vmatpush1.bf16.msra.mxu0 0
        %1626 = vmatprep.subr.bf16.mxu0 0
        %1627 = vmatpush1.bf16.msra.mxu0 0
        %1628 = vmatprep.subr.bf16.mxu0 0
        %1629 = vmatpush1.bf16.msra.mxu0 0
        %1630 = vmatprep.subr.bf16.mxu0 0
        %1631 = vmatpush1.bf16.msra.mxu0 0
        %1632 = vmatprep.subr.bf16.mxu0 0
        %1633 = vmatpush1.bf16.msra.mxu0 0
        %1634 = vmatprep.subr.bf16.mxu0 0
        %1635 = vmatpush1.bf16.msra.mxu0 0
        %1636 = vmatprep.mubr.bf16.mxu0 0
        %1637 = vmatmul.mubr.bf16.gmra.mrb[0].mxu0 %v1539
        %v1638 = vpop.f32.mrb[0].mxu0
        %v1639 = vadd.f32 0.0, %v1638
        %v1640 = vpop.f32.mrb[0].mxu0
        %v1641 = vpop.f32.mrb[0].mxu0
        %v1642 = vpop.f32.mrb[0].mxu0
        %1643 = vdwg.mxu0
        %v1644 = vadd.f32 %v1464, %v1639
        %1645 = vst.msk [vmem:[%s657] sm:$0xff] %vm662, %v1644
        %s1646 = sand.u32 %s345, 1
        %s1647 = scalar_lea.sflag [#allocation5], %s1646
        %s1648 = sand.u32 %s345, 1
        %s1649 = smul.addr %s1648, 8
        %s1650 = scalar_lea.vmem [#allocation26], %s1649
        // Predicated region
        $region133: #{tpu_custom_call.1} parent=75 // pred_check
          %p1651 = pneg %p355
        $region134: #{tpu_custom_call.1} parent=75 // pred_check_branch
          %1653 = sbr.rel (%p1651) target = $region136
        $region135: #{tpu_custom_call.1} parent=75 // pred_region
          %s1655 = ssub.s32 128, 128
          %1656 = vsyncadd %s1647, %s1655
          %s1657 = smul.addr %s38, 128
          %s1658 = scalar_lea.hbm %s14, %s1657
          %s1660 = sshll.u32 %s1650, 4
          %s1661 = int_to_ptr.vmem [resolvable:$true] %s1660
          %1663 = dma.vmem_to_hbm [thread:$0]  %s1661, 128, %s1658, %s1647
        $region136: #{tpu_custom_call.1} parent=75 // pred_fallthru
          _
      $region76: #{tpu_custom_call.1} parent=5 // pred_fallthru
        _
      %p1664 = scmp.le.s32.totalorder 2, %s33
      // Predicated region
      $region137: #{tpu_custom_call.1} parent=5 // pred_check
        %p1665 = pneg %p1664
      $region138: #{tpu_custom_call.1} parent=5 // pred_check_branch
        %1667 = sbr.rel (%p1665) target = $region140
      $region139: #{tpu_custom_call.1} parent=5 // pred_region
        %s1668 = ssub.s32 %s33, 2
        // Predicated region
        $region141: #{tpu_custom_call.1} parent=139 // pred_check
          %p1669 = pneg %p361
        $region142: #{tpu_custom_call.1} parent=139 // pred_check_branch
          %1671 = sbr.rel (%p1669) target = $region144
        $region143: #{tpu_custom_call.1} parent=139 // pred_region
          %s1672 = sand.u32 %s346, 1
          %s1673 = scalar_lea.sflag [#allocation5], %s1672
          %s1674 = sand.u32 %s346, 1
          %s1675 = smul.addr %s1674, 8
          %s1676 = scalar_lea.vmem [#allocation26], %s1675
          %1677 = dma.done %s1673, 128
        $region144: #{tpu_custom_call.1} parent=139 // pred_fallthru
          _
      $region140: #{tpu_custom_call.1} parent=5 // pred_fallthru
        _
    $region6: #{tpu_custom_call.1} parent=1 // loop_footer
      %s37 = sadd.s32 1, %s33
    $region7: #{tpu_custom_call.1} parent=1 // loop_footer_branch
      %32 = sbr.rel target = $region3
    $region8: #{tpu_custom_call.1} parent=1 // loop_exit
      _
    %1678 = vsyncpa [#allocation4], 1
    %s1679 = scalar_lea.sflag [#allocation4], 1
    %1680 = vsyncpa %s1679, 1
    %1681 = vsyncpa [#allocation7], 1
    %1682 = vsyncpa [#allocation10], 1
    %1683 = vsyncpa [#allocation13], 1
    %1684 = vsyncpa [#allocation16], 1
    %1685 = vsyncpa [#allocation19], 1
    %1686 = vsyncpa [#allocation22], 1
    %1687 = vsyncpa [#allocation25], 1
    %1688 = vsyncpa [#allocation5], 1
    %s1689 = scalar_lea.sflag [#allocation5], 1
    %1690 = vsyncpa %s1689, 1

</llo_original>
